<compile_context>
chip_gen: v6e
topology: v6e:2x2x1
jax: 0.10.0
libtpu: 0.0.40
codegen_flags: <defaults>
</compile_context>

<pallas_src>
import functools

import jax
import jax.numpy as jnp
from jax.experimental import pallas as pl
from jax.experimental.pallas import tpu as pltpu

EPS = 1e-5

# Conv-output rows (TH * W) produced per grid step.  512 rows x 128 lanes f32
# is ~256 KiB of accumulator; per-step VMEM (double-buffered halo input block
# + Cout-wide output block + weights + spills) stays in the low-MiB range, so
# this fits v5e/v6e comfortably and v7x's smaller 64 MiB physical VMEM too.
_TARGET_TILE_ROWS = 512

# Cross-generation compromise: raised well above the old 32 MiB for v5e/v6e
# (128 MiB physical) while staying <= ~48 MiB for v7x (64 MiB physical).
# Actual per-step usage of this kernel is only a few MiB, so this is headroom.
_VMEM_LIMIT = 48 * 1024 * 1024


def _pick_tile_h(H, W, target_rows=_TARGET_TILE_ROWS):
    """Largest divisor of H with TH * W <= target_rows (at least 1).

    TODO(synk): allow non-divisor TH with a masked ragged last tile so the
    tile size becomes shape-independent (matters if H is prime and W is tiny).
    """
    cap = max(1, target_rows // W)
    best = 1
    for th in range(1, H + 1):
        if H % th == 0 and th <= cap:
            best = th
    return best


def _conv_tile(x_ref, w_ref, *, KH, KW, TH, W, Cin):
    """3x3 conv of one halo row tile as KH*KW per-tap MXU matmuls.

    x_ref: [1, 1, TH+KH-1, Wp, Cin]  halo-blocked padded-input rows (VMEM)
    w_ref: [KH*KW, Cin, Cpad]        taps, VMEM resident (constant index_map)
    Returns the (TH*W, Cpad) f32 conv output *without* bias (the bias cancels
    exactly under training-mode BatchNorm, see conv_bn_relu2d).
    """
    acc = None
    for kh in range(KH):
        for kw in range(KW):
            patch = x_ref[0, 0, kh:kh + TH, kw:kw + W, :]        # (TH, W, Cin)
            patch = patch.reshape(TH * W, Cin).astype(jnp.float32)
            contrib = jnp.dot(patch, w_ref[kh * KW + kw],
                              preferred_element_type=jnp.float32)
            acc = contrib if acc is None else acc + contrib
    return acc                                                   # (TH*W, Cpad)


def _conv_stats_kernel(x_ref, w_ref, stats_ref, *, KH, KW, TH, W, Cin):
    """Pass 1: per-tile partial BN statistics only (no conv written to HBM)."""
    acc = _conv_tile(x_ref, w_ref, KH=KH, KW=KW, TH=TH, W=W, Cin=Cin)
    s = jnp.sum(acc, axis=0, keepdims=True)                      # (1, Cpad)
    ss = jnp.sum(acc * acc, axis=0, keepdims=True)               # (1, Cpad)
    stats_ref[0, 0, :, :] = jnp.concatenate([s, ss], axis=0)     # (2, Cpad)


def _conv_bn_relu_kernel(x_ref, w_ref, scale_ref, shift_ref, o_ref,
                         *, KH, KW, TH, W, Cin, Cout):
    """Pass 2: recompute the cheap conv, apply scale/shift + ReLU, write the
    final unpadded (Cout-channel) NHWC tile directly."""
    acc = _conv_tile(x_ref, w_ref, KH=KH, KW=KW, TH=TH, W=W, Cin=Cin)
    y = acc * scale_ref[...] + shift_ref[...]
    y = jnp.maximum(y, 0.0)
    o_ref[...] = y[:, :Cout].reshape(1, TH, W, Cout)


def conv_bn_relu2d(x_nchw, w_oihw, bias, gamma, beta, *, padding=1, eps=EPS):
    """Fused Conv2d(3x3, p=1, s=1) + BatchNorm2d(train) + ReLU.  NCHW in/out."""
    N, Cin, H, W = x_nchw.shape
    Cout, _, KH, KW = w_oihw.shape
    Cpad = ((Cout + 127) // 128) * 128
    TH = _pick_tile_h(H, W)
    nh = H // TH
    halo = KH - 1                       # extra input rows needed per row tile
    Wp = W + 2 * padding

    # ---- layout glue (touches only the small Cin-channel input + params) ----
    x_nhwc = jnp.transpose(x_nchw, (0, 2, 3, 1)).astype(jnp.float32)
    x_pad = jnp.pad(x_nhwc,
                    ((0, 0), (padding, padding), (padding, padding), (0, 0)))
    # Halo-blocked row tiles: each grid step sees only TH+halo padded rows, so
    # the kernel never keeps the whole padded image VMEM-resident.
    x_tiles = jnp.stack(
        [x_pad[:, h * TH: h * TH + TH + halo] for h in range(nh)], axis=1)
    # x_tiles: (N, nh, TH+halo, Wp, Cin)

    # Weight as (tap, Cin, Cpad); Cout is zero-padded to 128 so the matmul
    # accumulator / stats lanes are dense (padded channels are all-zero and
    # never written to HBM).  Operands stay f32 (see header note on bf16).
    w_taps = jnp.transpose(w_oihw, (2, 3, 1, 0)).reshape(KH * KW, Cin, Cout)
    w_p = jnp.zeros((KH * KW, Cin, Cpad), jnp.float32).at[..., :Cout].set(
        w_taps.astype(jnp.float32))

    # ---- pass 1: conv (recomputed later) + per-tile partial BN stats ----
    kern1 = functools.partial(_conv_stats_kernel,
                              KH=KH, KW=KW, TH=TH, W=W, Cin=Cin)
    stats = pl.pallas_call(
        kern1,
        out_shape=jax.ShapeDtypeStruct((N, nh, 2, Cpad), jnp.float32),
        grid_spec=pltpu.PrefetchScalarGridSpec(
            num_scalar_prefetch=0,
            grid=(N, nh),
            in_specs=[
                pl.BlockSpec((1, 1, TH + halo, Wp, Cin),
                             lambda n, h: (n, h, 0, 0, 0)),
                pl.BlockSpec((KH * KW, Cin, Cpad), lambda n, h: (0, 0, 0)),
            ],
            out_specs=pl.BlockSpec((1, 1, 2, Cpad),
                                   lambda n, h: (n, h, 0, 0)),
        ),
        compiler_params=pltpu.CompilerParams(
            dimension_semantics=("parallel", "parallel"),
            vmem_limit_bytes=_VMEM_LIMIT),
    )(x_tiles, w_p)

    # ---- tiny global reduction of per-tile stats (training-mode BN) ----
    # The conv bias cancels exactly under train-mode BN (y - mean(y) removes a
    # per-channel constant), so it is folded out of both kernels and the
    # statistics; this also keeps channel means small, which conditions the
    # single-pass E[z^2]-E[z]^2 variance better.  (Welford-style merging would
    # be the next step if tighter tolerance were needed.)
    del bias
    tot = jnp.sum(stats, axis=(0, 1))                       # (2, Cpad)
    cnt = jnp.float32(N * H * W)
    mean = tot[0] / cnt
    var = jnp.maximum(tot[1] / cnt - mean * mean, 0.0)      # biased batch var
    inv_std = jax.lax.rsqrt(var + eps)
    g_p = jnp.zeros((Cpad,), jnp.float32).at[:Cout].set(gamma.astype(jnp.float32))
    be_p = jnp.zeros((Cpad,), jnp.float32).at[:Cout].set(beta.astype(jnp.float32))
    scale = (g_p * inv_std).reshape(1, Cpad)
    shift = (be_p - mean * g_p * inv_std).reshape(1, Cpad)

    # ---- pass 2: recompute conv + normalize + ReLU, write unpadded NHWC ----
    kern2 = functools.partial(_conv_bn_relu_kernel,
                              KH=KH, KW=KW, TH=TH, W=W, Cin=Cin, Cout=Cout)
    out_nhwc = pl.pallas_call(
        kern2,
        out_shape=jax.ShapeDtypeStruct((N, H, W, Cout), jnp.float32),
        grid_spec=pltpu.PrefetchScalarGridSpec(
            num_scalar_prefetch=0,
            grid=(N, nh),
            in_specs=[
                pl.BlockSpec((1, 1, TH + halo, Wp, Cin),
                             lambda n, h: (n, h, 0, 0, 0)),
                pl.BlockSpec((KH * KW, Cin, Cpad), lambda n, h: (0, 0, 0)),
                pl.BlockSpec((1, Cpad), lambda n, h: (0, 0)),
                pl.BlockSpec((1, Cpad), lambda n, h: (0, 0)),
            ],
            out_specs=pl.BlockSpec((1, TH, W, Cout),
                                   lambda n, h: (n, h, 0, 0)),
        ),
        compiler_params=pltpu.CompilerParams(
            dimension_semantics=("parallel", "parallel"),
            vmem_limit_bytes=_VMEM_LIMIT),
    )(x_tiles, w_p, scale, shift)

    # Final NCHW for PyTorch parity.  The kernel already emitted the unpadded
    # Cout-channel tensor, so this XLA transpose touches ~16x fewer bytes than
    # the old Cpad=128 slice+transpose path.
    return jnp.transpose(out_nhwc, (0, 3, 1, 2))


def _reference(x_nchw, w_oihw, bias, gamma, beta, *, padding=1):
    """Pure-JAX reference matching the PyTorch forward (training-mode BN)."""
    y = jax.lax.conv_general_dilated(
        x_nchw, w_oihw, window_strides=(1, 1),
        padding=((padding, padding), (padding, padding)),
        dimension_numbers=("NCHW", "OIHW", "NCHW"))
    y = y + bias[None, :, None, None]
    mean = y.mean(axis=(0, 2, 3), keepdims=True)
    var = ((y - mean) ** 2).mean(axis=(0, 2, 3), keepdims=True)
    y = (y - mean) / jnp.sqrt(var + EPS)
    y = y * gamma[None, :, None, None] + beta[None, :, None, None]
    return jnp.maximum(y, 0.0)


if __name__ == "__main__":
    key = jax.random.PRNGKey(0)
    k_x, k_w, k_b = jax.random.split(key, 3)

    # Small shapes consistent with the module: ConvBnRelu2d(in=4, out=8)
    N, Cin, H, W = 2, 4, 16, 16
    Cout, KH, KW = 8, 3, 3

    x = jax.random.normal(k_x, (N, Cin, H, W), dtype=jnp.float32)
    fan_in = Cin * KH * KW
    w = jax.random.normal(k_w, (Cout, Cin, KH, KW), jnp.float32) / jnp.sqrt(fan_in)
    b = jax.random.normal(k_b, (Cout,), jnp.float32) * 0.1
    gamma = jnp.ones((Cout,), jnp.float32)   # BatchNorm2d weight init
    beta = jnp.zeros((Cout,), jnp.float32)   # BatchNorm2d bias init

    out = conv_bn_relu2d(x, w, b, gamma, beta)
    out = jax.block_until_ready(out)

    ref = _reference(x, w, b, gamma, beta)
    assert out.shape == (N, Cout, H, W)
    max_err = float(jnp.max(jnp.abs(out - ref)))
    assert jnp.allclose(out, ref, atol=1e-3, rtol=1e-3), max_err

    print("KERNEL_OK")
</pallas_src>

<mosaic_0001>
module attributes {stable_mosaic.version = 11 : i64} {
  func.func @_conv_stats_kernel(%arg0: i32, %arg1: i32, %arg2: memref<1x1x18x18x4xf32, #tpu.memory_space<vmem>>, %arg3: memref<9x4x128xf32, #tpu.memory_space<vmem>>, %arg4: memref<1x1x2x128xf32, #tpu.memory_space<vmem>>) attributes {dimension_semantics = [#tpu.dimension_semantics<parallel>, #tpu.dimension_semantics<parallel>], iteration_bounds = array<i64: 2, 1>, scalar_prefetch = 0 : i64, scratch_operands = 0 : i64, tpu.core_type = #tpu.core_type<tc>, window_params = [{transform_indices = @transform_0, window_bounds = array<i64: 1, 1, 18, 18, 4>}, {pipeline_mode = #tpu.pipeline_mode<synchronous>, transform_indices = @transform_1, window_bounds = array<i64: 9, 4, 128>}, {transform_indices = @transform_2, window_bounds = array<i64: 1, 1, 2, 128>}]} {
    %c0 = arith.constant 0 : index
    %c0_0 = arith.constant 0 : index
    %c0_1 = arith.constant 0 : index
    %c0_2 = arith.constant 0 : index
    %c0_3 = arith.constant 0 : index
    %0 = vector.load %arg2[%c0, %c0_0, %c0_1, %c0_2, %c0_3] : memref<1x1x18x18x4xf32, #tpu.memory_space<vmem>>, vector<1x1x16x16x4xf32>
    %1 = vector.shape_cast %0 : vector<1x1x16x16x4xf32> to vector<16x16x4xf32>
    %2 = vector.shape_cast %1 : vector<16x16x4xf32> to vector<256x4xf32>
    %c0_4 = arith.constant 0 : index
    %c0_5 = arith.constant 0 : index
    %c0_6 = arith.constant 0 : index
    %3 = vector.load %arg3[%c0_4, %c0_5, %c0_6] : memref<9x4x128xf32, #tpu.memory_space<vmem>>, vector<1x4x128xf32>
    %4 = vector.shape_cast %3 : vector<1x4x128xf32> to vector<4x128xf32>
    %cst = arith.constant dense<0.000000e+00> : vector<256x128xf32>
    %5 = tpu.matmul %2, %4, %cst {dimension_numbers = #tpu.dot_dimension_numbers<[1], [0], [0], [1], [0, 0, 1, 1], [], []>} : vector<256x4xf32>, vector<4x128xf32>, vector<256x128xf32> -> vector<256x128xf32>
    %c0_7 = arith.constant 0 : index
    %c0_8 = arith.constant 0 : index
    %c0_9 = arith.constant 0 : index
    %c1 = arith.constant 1 : index
    %c0_10 = arith.constant 0 : index
    %6 = vector.load %arg2[%c0_7, %c0_8, %c0_9, %c1, %c0_10] : memref<1x1x18x18x4xf32, #tpu.memory_space<vmem>>, vector<1x1x16x16x4xf32>
    %7 = vector.shape_cast %6 : vector<1x1x16x16x4xf32> to vector<16x16x4xf32>
    %8 = vector.shape_cast %7 : vector<16x16x4xf32> to vector<256x4xf32>
    %c1_11 = arith.constant 1 : index
    %c0_12 = arith.constant 0 : index
    %c0_13 = arith.constant 0 : index
    %9 = vector.load %arg3[%c1_11, %c0_12, %c0_13] : memref<9x4x128xf32, #tpu.memory_space<vmem>>, vector<1x4x128xf32>
    %10 = vector.shape_cast %9 : vector<1x4x128xf32> to vector<4x128xf32>
    %cst_14 = arith.constant dense<0.000000e+00> : vector<256x128xf32>
    %11 = tpu.matmul %8, %10, %cst_14 {dimension_numbers = #tpu.dot_dimension_numbers<[1], [0], [0], [1], [0, 0, 1, 1], [], []>} : vector<256x4xf32>, vector<4x128xf32>, vector<256x128xf32> -> vector<256x128xf32>
    %12 = arith.addf %5, %11 : vector<256x128xf32>
    %c0_15 = arith.constant 0 : index
    %c0_16 = arith.constant 0 : index
    %c0_17 = arith.constant 0 : index
    %c2 = arith.constant 2 : index
    %c0_18 = arith.constant 0 : index
    %13 = vector.load %arg2[%c0_15, %c0_16, %c0_17, %c2, %c0_18] : memref<1x1x18x18x4xf32, #tpu.memory_space<vmem>>, vector<1x1x16x16x4xf32>
    %14 = vector.shape_cast %13 : vector<1x1x16x16x4xf32> to vector<16x16x4xf32>
    %15 = vector.shape_cast %14 : vector<16x16x4xf32> to vector<256x4xf32>
    %c2_19 = arith.constant 2 : index
    %c0_20 = arith.constant 0 : index
    %c0_21 = arith.constant 0 : index
    %16 = vector.load %arg3[%c2_19, %c0_20, %c0_21] : memref<9x4x128xf32, #tpu.memory_space<vmem>>, vector<1x4x128xf32>
    %17 = vector.shape_cast %16 : vector<1x4x128xf32> to vector<4x128xf32>
    %cst_22 = arith.constant dense<0.000000e+00> : vector<256x128xf32>
    %18 = tpu.matmul %15, %17, %cst_22 {dimension_numbers = #tpu.dot_dimension_numbers<[1], [0], [0], [1], [0, 0, 1, 1], [], []>} : vector<256x4xf32>, vector<4x128xf32>, vector<256x128xf32> -> vector<256x128xf32>
    %19 = arith.addf %12, %18 : vector<256x128xf32>
    %c0_23 = arith.constant 0 : index
    %c0_24 = arith.constant 0 : index
    %c1_25 = arith.constant 1 : index
    %c0_26 = arith.constant 0 : index
    %c0_27 = arith.constant 0 : index
    %20 = vector.load %arg2[%c0_23, %c0_24, %c1_25, %c0_26, %c0_27] : memref<1x1x18x18x4xf32, #tpu.memory_space<vmem>>, vector<1x1x16x16x4xf32>
    %21 = vector.shape_cast %20 : vector<1x1x16x16x4xf32> to vector<16x16x4xf32>
    %22 = vector.shape_cast %21 : vector<16x16x4xf32> to vector<256x4xf32>
    %c3 = arith.constant 3 : index
    %c0_28 = arith.constant 0 : index
    %c0_29 = arith.constant 0 : index
    %23 = vector.load %arg3[%c3, %c0_28, %c0_29] : memref<9x4x128xf32, #tpu.memory_space<vmem>>, vector<1x4x128xf32>
    %24 = vector.shape_cast %23 : vector<1x4x128xf32> to vector<4x128xf32>
    %cst_30 = arith.constant dense<0.000000e+00> : vector<256x128xf32>
    %25 = tpu.matmul %22, %24, %cst_30 {dimension_numbers = #tpu.dot_dimension_numbers<[1], [0], [0], [1], [0, 0, 1, 1], [], []>} : vector<256x4xf32>, vector<4x128xf32>, vector<256x128xf32> -> vector<256x128xf32>
    %26 = arith.addf %19, %25 : vector<256x128xf32>
    %c0_31 = arith.constant 0 : index
    %c0_32 = arith.constant 0 : index
    %c1_33 = arith.constant 1 : index
    %c1_34 = arith.constant 1 : index
    %c0_35 = arith.constant 0 : index
    %27 = vector.load %arg2[%c0_31, %c0_32, %c1_33, %c1_34, %c0_35] : memref<1x1x18x18x4xf32, #tpu.memory_space<vmem>>, vector<1x1x16x16x4xf32>
    %28 = vector.shape_cast %27 : vector<1x1x16x16x4xf32> to vector<16x16x4xf32>
    %29 = vector.shape_cast %28 : vector<16x16x4xf32> to vector<256x4xf32>
    %c4 = arith.constant 4 : index
    %c0_36 = arith.constant 0 : index
    %c0_37 = arith.constant 0 : index
    %30 = vector.load %arg3[%c4, %c0_36, %c0_37] : memref<9x4x128xf32, #tpu.memory_space<vmem>>, vector<1x4x128xf32>
    %31 = vector.shape_cast %30 : vector<1x4x128xf32> to vector<4x128xf32>
    %cst_38 = arith.constant dense<0.000000e+00> : vector<256x128xf32>
    %32 = tpu.matmul %29, %31, %cst_38 {dimension_numbers = #tpu.dot_dimension_numbers<[1], [0], [0], [1], [0, 0, 1, 1], [], []>} : vector<256x4xf32>, vector<4x128xf32>, vector<256x128xf32> -> vector<256x128xf32>
    %33 = arith.addf %26, %32 : vector<256x128xf32>
    %c0_39 = arith.constant 0 : index
    %c0_40 = arith.constant 0 : index
    %c1_41 = arith.constant 1 : index
    %c2_42 = arith.constant 2 : index
    %c0_43 = arith.constant 0 : index
    %34 = vector.load %arg2[%c0_39, %c0_40, %c1_41, %c2_42, %c0_43] : memref<1x1x18x18x4xf32, #tpu.memory_space<vmem>>, vector<1x1x16x16x4xf32>
    %35 = vector.shape_cast %34 : vector<1x1x16x16x4xf32> to vector<16x16x4xf32>
    %36 = vector.shape_cast %35 : vector<16x16x4xf32> to vector<256x4xf32>
    %c5 = arith.constant 5 : index
    %c0_44 = arith.constant 0 : index
    %c0_45 = arith.constant 0 : index
    %37 = vector.load %arg3[%c5, %c0_44, %c0_45] : memref<9x4x128xf32, #tpu.memory_space<vmem>>, vector<1x4x128xf32>
    %38 = vector.shape_cast %37 : vector<1x4x128xf32> to vector<4x128xf32>
    %cst_46 = arith.constant dense<0.000000e+00> : vector<256x128xf32>
    %39 = tpu.matmul %36, %38, %cst_46 {dimension_numbers = #tpu.dot_dimension_numbers<[1], [0], [0], [1], [0, 0, 1, 1], [], []>} : vector<256x4xf32>, vector<4x128xf32>, vector<256x128xf32> -> vector<256x128xf32>
    %40 = arith.addf %33, %39 : vector<256x128xf32>
    %c0_47 = arith.constant 0 : index
    %c0_48 = arith.constant 0 : index
    %c2_49 = arith.constant 2 : index
    %c0_50 = arith.constant 0 : index
    %c0_51 = arith.constant 0 : index
    %41 = vector.load %arg2[%c0_47, %c0_48, %c2_49, %c0_50, %c0_51] : memref<1x1x18x18x4xf32, #tpu.memory_space<vmem>>, vector<1x1x16x16x4xf32>
    %42 = vector.shape_cast %41 : vector<1x1x16x16x4xf32> to vector<16x16x4xf32>
    %43 = vector.shape_cast %42 : vector<16x16x4xf32> to vector<256x4xf32>
    %c6 = arith.constant 6 : index
    %c0_52 = arith.constant 0 : index
    %c0_53 = arith.constant 0 : index
    %44 = vector.load %arg3[%c6, %c0_52, %c0_53] : memref<9x4x128xf32, #tpu.memory_space<vmem>>, vector<1x4x128xf32>
    %45 = vector.shape_cast %44 : vector<1x4x128xf32> to vector<4x128xf32>
    %cst_54 = arith.constant dense<0.000000e+00> : vector<256x128xf32>
    %46 = tpu.matmul %43, %45, %cst_54 {dimension_numbers = #tpu.dot_dimension_numbers<[1], [0], [0], [1], [0, 0, 1, 1], [], []>} : vector<256x4xf32>, vector<4x128xf32>, vector<256x128xf32> -> vector<256x128xf32>
    %47 = arith.addf %40, %46 : vector<256x128xf32>
    %c0_55 = arith.constant 0 : index
    %c0_56 = arith.constant 0 : index
    %c2_57 = arith.constant 2 : index
    %c1_58 = arith.constant 1 : index
    %c0_59 = arith.constant 0 : index
    %48 = vector.load %arg2[%c0_55, %c0_56, %c2_57, %c1_58, %c0_59] : memref<1x1x18x18x4xf32, #tpu.memory_space<vmem>>, vector<1x1x16x16x4xf32>
    %49 = vector.shape_cast %48 : vector<1x1x16x16x4xf32> to vector<16x16x4xf32>
    %50 = vector.shape_cast %49 : vector<16x16x4xf32> to vector<256x4xf32>
    %c7 = arith.constant 7 : index
    %c0_60 = arith.constant 0 : index
    %c0_61 = arith.constant 0 : index
    %51 = vector.load %arg3[%c7, %c0_60, %c0_61] : memref<9x4x128xf32, #tpu.memory_space<vmem>>, vector<1x4x128xf32>
    %52 = vector.shape_cast %51 : vector<1x4x128xf32> to vector<4x128xf32>
    %cst_62 = arith.constant dense<0.000000e+00> : vector<256x128xf32>
    %53 = tpu.matmul %50, %52, %cst_62 {dimension_numbers = #tpu.dot_dimension_numbers<[1], [0], [0], [1], [0, 0, 1, 1], [], []>} : vector<256x4xf32>, vector<4x128xf32>, vector<256x128xf32> -> vector<256x128xf32>
    %54 = arith.addf %47, %53 : vector<256x128xf32>
    %c0_63 = arith.constant 0 : index
    %c0_64 = arith.constant 0 : index
    %c2_65 = arith.constant 2 : index
    %c2_66 = arith.constant 2 : index
    %c0_67 = arith.constant 0 : index
    %55 = vector.load %arg2[%c0_63, %c0_64, %c2_65, %c2_66, %c0_67] : memref<1x1x18x18x4xf32, #tpu.memory_space<vmem>>, vector<1x1x16x16x4xf32>
    %56 = vector.shape_cast %55 : vector<1x1x16x16x4xf32> to vector<16x16x4xf32>
    %57 = vector.shape_cast %56 : vector<16x16x4xf32> to vector<256x4xf32>
    %c8 = arith.constant 8 : index
    %c0_68 = arith.constant 0 : index
    %c0_69 = arith.constant 0 : index
    %58 = vector.load %arg3[%c8, %c0_68, %c0_69] : memref<9x4x128xf32, #tpu.memory_space<vmem>>, vector<1x4x128xf32>
    %59 = vector.shape_cast %58 : vector<1x4x128xf32> to vector<4x128xf32>
    %cst_70 = arith.constant dense<0.000000e+00> : vector<256x128xf32>
    %60 = tpu.matmul %57, %59, %cst_70 {dimension_numbers = #tpu.dot_dimension_numbers<[1], [0], [0], [1], [0, 0, 1, 1], [], []>} : vector<256x4xf32>, vector<4x128xf32>, vector<256x128xf32> -> vector<256x128xf32>
    %61 = arith.addf %54, %60 : vector<256x128xf32>
    %cst_71 = arith.constant dense<0.000000e+00> : vector<128xf32>
    %62 = vector.multi_reduction <add>, %61, %cst_71 [0] : vector<256x128xf32> to vector<128xf32>
    %63 = vector.shape_cast %62 : vector<128xf32> to vector<1x128xf32>
    %64 = arith.mulf %61, %61 : vector<256x128xf32>
    %cst_72 = arith.constant dense<0.000000e+00> : vector<128xf32>
    %65 = vector.multi_reduction <add>, %64, %cst_72 [0] : vector<256x128xf32> to vector<128xf32>
    %66 = vector.shape_cast %65 : vector<128xf32> to vector<1x128xf32>
    %67 = tpu.concatenate %63, %66 in 0 : vector<1x128xf32>, vector<1x128xf32> -> vector<2x128xf32>
    %c0_73 = arith.constant 0 : index
    %c0_74 = arith.constant 0 : index
    %c0_75 = arith.constant 0 : index
    %c0_76 = arith.constant 0 : index
    %68 = vector.load %arg4[%c0_73, %c0_74, %c0_75, %c0_76] : memref<1x1x2x128xf32, #tpu.memory_space<vmem>>, vector<1x1x2x128xf32>
    %69 = vector.shape_cast %68 : vector<1x1x2x128xf32> to vector<2x128xf32>
    %70 = vector.shape_cast %67 : vector<2x128xf32> to vector<1x1x2x128xf32>
    tpu.vector_store %arg4[%c0_73, %c0_74, %c0_75, %c0_76], %70 {strides = array<i32>} : memref<1x1x2x128xf32, #tpu.memory_space<vmem>>, vector<1x1x2x128xf32>,
    return
  }
  func.func @transform_0(%arg0: i32, %arg1: i32) -> (i32, i32, i32, i32, i32) {
    %c0_i32 = arith.constant 0 : i32
    %c0_i32_0 = arith.constant 0 : i32
    %c0_i32_1 = arith.constant 0 : i32
    %c0_i32_2 = arith.constant 0 : i32
    return %arg0, %arg1, %c0_i32, %c0_i32_0, %c0_i32_1 : i32, i32, i32, i32, i32
  }
  func.func @transform_1(%arg0: i32, %arg1: i32) -> (i32, i32, i32) {
    %c0_i32 = arith.constant 0 : i32
    %c0_i32_0 = arith.constant 0 : i32
    %c0_i32_1 = arith.constant 0 : i32
    %c0_i32_2 = arith.constant 0 : i32
    return %c0_i32, %c0_i32_0, %c0_i32_1 : i32, i32, i32
  }
  func.func @transform_2(%arg0: i32, %arg1: i32) -> (i32, i32, i32, i32) {
    %c0_i32 = arith.constant 0 : i32
    %c0_i32_0 = arith.constant 0 : i32
    %c0_i32_1 = arith.constant 0 : i32
    return %arg0, %arg1, %c0_i32, %c0_i32_0 : i32, i32, i32, i32
  }
}

</mosaic_0001>

<llo_original>
// kernel: tpu_custom_call.1
$region0: #{tpu_custom_call.1}
  #allocation0 [shape = 'u32[]', space=smem, size = 0x4, offset = 0x4, fixed_abs, tag = 'smem constant byte address 0x4 - core index']
  #allocation1 [shape = 'u32[144,128]{1,0:T(1,128)}', space=vmem, size = 0x12000, scoped, tag = 'internal scratch']
  %s0 = inlined_call_operand.vmem [shape: f32[2,1,18,18,4], index: 0, kind: input, shape index: {}]
  %s1 = inlined_call_operand.vmem [shape: f32[9,4,128], index: 1, kind: input, shape index: {}]
  %s2 = inlined_call_operand.hbm [shape: f32[2,1,2,128], index: 2, kind: output, shape index: {}]
  %s3 = sld [smem:[#allocation0]]
  $region41: #{tpu_custom_call.1} parent=0
    _
  %s5 = ssub.s32 1, %s3
  %s6 = scalar_select 0, %s5, %s3
  $region1: #{tpu_custom_call.1} parent=0
    #allocation2 [shape = 'u8[2048]{0}', space=vmem, size = 0x800, scoped, tag = 'output window, operand 0']
    #allocation3 [shape = 's32[2]{0}', space=sflag, size = 0x8, scoped, tag = 'scoped memory for tpu_custom_call.1']
    %7 = vsyncpa [#allocation3], 0
    %s8 = scalar_lea.sflag [#allocation3], 1
    %9 = vsyncpa %s8, 0
    loop: start=0, step=1, limit=4
    $region2: #{tpu_custom_call.1} parent=1 // loop_pre_header
      _
    $region3: #{tpu_custom_call.1} parent=1 // loop_header
      %s11 = sphi 0, %s15
      %p12 = scmp.ge.s32.totalorder %s11, 4
      %s18 = sphi 0, %s30
      %s19 = sphi 0, %s26
      %s20 = sphi 0, %s18
      %s21 = sphi 0, %s19
      %s22 = sphi 0, %s20
      %s23 = sphi 0, %s21
      %s35 = sphi 0, %s37
      %s38 = sphi 0, %s35
      %s39 = sphi 0, %s38
      %s55 = sphi 0, %s39
      %s59 = sphi 0, %s59
      %s61 = sphi 0, %s59
      %s62 = sphi 0, %s61
      %s76 = sphi 0, %s62
      %s84 = sphi 0, %s86
      %s87 = sphi 0, %s84
      %s88 = sphi 0, %s87
      %s104 = sphi 0, %s88
    $region4: #{tpu_custom_call.1} parent=1 // loop_header_branch
      %14 = sbr.rel (%p12) target = $region8
    $region5: #{tpu_custom_call.1} parent=1 // loop_body
      %s16 = ssub.s32 %s11, 1
      %s17 = ssub.s32 %s11, 2
      %s24 = sadd.s32 1, %s19
      %p25 = scmp.ge.s32.totalorder %s24, 1
      %s26 = scalar_select %p25, 0, %s24
      %s27 = sadd.s32 1, %s18
      %s28 = scalar_select %p25, %s27, %s18
      %p29 = scmp.ge.s32.totalorder %s28, 2
      %s30 = scalar_select %p29, 0, %s28
      %s31 = ssub.s32 %s18, %s30
      %s32 = ssub.s32 %s19, %s26
      %s33 = sor.u32 %s31, %s32
      %p34 = scmp.eq.s32.totalorder %s33, 0
      %s36 = sadd.s32 %s35, 1
      %s37 = scalar_select %p34, %s35, %s36
      %p40 = pneg %p34
      %p41 = scmp.eq.s32.totalorder %s11, 1
      %p42 = por %p40, %p41
      %p43 = scmp.ne.s32.totalorder %s35, %s38
      %p44 = scmp.eq.s32.totalorder %s11, 0
      %p45 = por %p43, %p44
      %p46 = scmp.ne.s32.totalorder %s35, %s38
      %p47 = scmp.eq.s32.totalorder %s16, 1
      %p48 = por %p46, %p47
      %p49 = scmp.ne.s32.totalorder %s38, %s39
      %p50 = scmp.eq.s32.totalorder %s16, 0
      %p51 = por %p49, %p50
      %p52 = scmp.ne.s32.totalorder %s38, %s39
      %p53 = scmp.eq.s32.totalorder %s17, 1
      %p54 = por %p52, %p53
      %p56 = scmp.ne.s32.totalorder %s39, %s55
      %p57 = scmp.eq.s32.totalorder %s17, 0
      %p58 = por %p56, %p57
      %s60 = sadd.s32 %s59, 1
      %p63 = scmp.eq.s32.totalorder %s11, 1
      %p64 = scmp.ne.s32.totalorder %s59, %s61
      %p65 = scmp.eq.s32.totalorder %s11, 0
      %p66 = por %p64, %p65
      %p67 = scmp.ne.s32.totalorder %s59, %s61
      %p68 = scmp.eq.s32.totalorder %s16, 1
      %p69 = por %p67, %p68
      %p70 = scmp.ne.s32.totalorder %s61, %s62
      %p71 = scmp.eq.s32.totalorder %s16, 0
      %p72 = por %p70, %p71
      %p73 = scmp.ne.s32.totalorder %s61, %s62
      %p74 = scmp.eq.s32.totalorder %s17, 1
      %p75 = por %p73, %p74
      %p77 = scmp.ne.s32.totalorder %s62, %s76
      %p78 = scmp.eq.s32.totalorder %s17, 0
      %p79 = por %p77, %p78
      %s80 = ssub.s32 %s18, %s30
      %s81 = ssub.s32 %s19, %s26
      %s82 = sor.u32 %s80, %s81
      %p83 = scmp.eq.s32.totalorder %s82, 0
      %s85 = sadd.s32 %s84, 1
      %s86 = scalar_select %p83, %s84, %s85
      %p89 = pneg %p83
      %p90 = scmp.eq.s32.totalorder %s11, 1
      %p91 = por %p89, %p90
      %p92 = scmp.ne.s32.totalorder %s84, %s87
      %p93 = scmp.eq.s32.totalorder %s11, 0
      %p94 = por %p92, %p93
      %p95 = scmp.ne.s32.totalorder %s84, %s87
      %p96 = scmp.eq.s32.totalorder %s16, 1
      %p97 = por %p95, %p96
      %p98 = scmp.ne.s32.totalorder %s87, %s88
      %p99 = scmp.eq.s32.totalorder %s16, 0
      %p100 = por %p98, %p99
      %p101 = scmp.ne.s32.totalorder %s87, %s88
      %p102 = scmp.eq.s32.totalorder %s17, 1
      %p103 = por %p101, %p102
      %p105 = scmp.ne.s32.totalorder %s88, %s104
      %p106 = scmp.eq.s32.totalorder %s17, 0
      %p107 = por %p105, %p106
      %p108 = scmp.le.s32.totalorder 1, %s11
      %p109 = scmp.lt.s32.totalorder %s11, 3
      %p110 = pnand %p108, %p109
      %p111 = pneg %p110
      // Predicated region
      $region9: #{tpu_custom_call.1} parent=5 // pred_check
        _
      $region10: #{tpu_custom_call.1} parent=5 // pred_check_branch
        %113 = sbr.rel (%p110) target = $region12
      $region11: #{tpu_custom_call.1} parent=5 // pred_region
        %s114 = ssub.s32 %s11, 1
        // Predicated region
        $region13: #{tpu_custom_call.1} parent=11 // pred_check
          %p115 = pneg %p72
        $region14: #{tpu_custom_call.1} parent=11 // pred_check_branch
          %117 = sbr.rel (%p115) target = $region16
        $region15: #{tpu_custom_call.1} parent=11 // pred_region
          _
        $region16: #{tpu_custom_call.1} parent=11 // pred_fallthru
          _
      $region12: #{tpu_custom_call.1} parent=5 // pred_fallthru
        _
      %p118 = scmp.lt.s32.totalorder %s11, 2
      // Predicated region
      $region17: #{tpu_custom_call.1} parent=5 // pred_check
        %p119 = pneg %p118
      $region18: #{tpu_custom_call.1} parent=5 // pred_check_branch
        %121 = sbr.rel (%p119) target = $region20
      $region19: #{tpu_custom_call.1} parent=5 // pred_region
        // Predicated region
        $region21: #{tpu_custom_call.1} parent=19 // pred_check
          %p122 = pneg %p45
        $region22: #{tpu_custom_call.1} parent=19 // pred_check_branch
          %124 = sbr.rel (%p122) target = $region24
        $region23: #{tpu_custom_call.1} parent=19 // pred_region
          %p125 = scmp.lt.s32.totalorder %s18, 1
          %s126 = scalar_select %p125, %s18, 1
          %p127 = scmp.lt.s32.totalorder %s19, 0
          %s128 = scalar_select %p127, %s19, 0
          %s129 = smul.addr %s128, 54
          %s130 = smul.addr %s126, 54
          %s131 = sadd.s32 %s129, %s130
          %s132 = smul.addr %s131, 8
          %s133 = scalar_lea.vmem %s0, %s132
        $region24: #{tpu_custom_call.1} parent=19 // pred_fallthru
          _
      $region20: #{tpu_custom_call.1} parent=5 // pred_fallthru
        _
      %p134 = scmp.le.s32.totalorder 1, %s11
      %p135 = scmp.lt.s32.totalorder %s11, 3
      %p136 = pnand %p134, %p135
      %p137 = pneg %p136
      // Predicated region
      $region25: #{tpu_custom_call.1} parent=5 // pred_check
        _
      $region26: #{tpu_custom_call.1} parent=5 // pred_check_branch
        %139 = sbr.rel (%p136) target = $region28
      $region27: #{tpu_custom_call.1} parent=5 // pred_region
        %s140 = ssub.s32 %s11, 1
        %p141 = scmp.lt.s32.totalorder %s20, 1
        %s142 = scalar_select %p141, %s20, 1
        %p143 = scmp.lt.s32.totalorder %s21, 0
        %s144 = scalar_select %p143, %s21, 0
        %s145 = smul.addr %s144, 54
        %s146 = smul.addr %s142, 54
        %s147 = sadd.s32 %s145, %s146
        %s148 = smul.addr %s147, 8
        %s149 = scalar_lea.vmem %s0, %s148
        %p150 = pneg %p51
        %p151 = pneg %p48
        %p152 = pneg %p72
        %p153 = pneg %p69
        %p154 = pneg %p100
        %p155 = pneg %p97
        %s156 = sand.u32 %s87, 1
        %s157 = scalar_lea.sflag [#allocation3], %s156
        %s158 = sand.u32 %s87, 1
        %s159 = smul.addr %s158, 2
        %s160 = scalar_lea.vmem [#allocation2], %s159
        %p161 = scmp.lt.s32.totalorder %s20, 1
        %s162 = scalar_select %p161, %s20, 1
        %p163 = scmp.lt.s32.totalorder %s21, 0
        %s164 = scalar_select %p163, %s21, 0
        %s165 = smul.addr %s164, 54
        %s166 = smul.addr %s162, 54
        %s167 = sadd.s32 %s165, %s166
        %s168 = smul.addr %s167, 8
        %s169 = scalar_lea.vmem %s0, %s168
        %v170 = vld [vmem:[%s169] sm:$0xff]
        %v171 = vld [vmem:[%s169 + $0x8] sm:$0xff]
        %v172 = vld [vmem:[%s169 + $0x18] sm:$0xff]
        %v173 = vld [vmem:[%s169 + $0x20] sm:$0xff]
        %v174 = vld [vmem:[%s169 + $0x30] sm:$0xff]
        %v175 = vld [vmem:[%s169 + $0x38] sm:$0xff]
        %v176 = vld [vmem:[%s169 + $0x48] sm:$0xff]
        %v177 = vld [vmem:[%s169 + $0x50] sm:$0xff]
        %v178 = vld [vmem:[%s169 + $0x60] sm:$0xff]
        %v179 = vld [vmem:[%s169 + $0x68] sm:$0xff]
        %v180 = vld [vmem:[%s169 + $0x78] sm:$0xff]
        %v181 = vld [vmem:[%s169 + $0x80] sm:$0xff]
        %v182 = vld [vmem:[%s169 + $0x90] sm:$0xff]
        %v183 = vld [vmem:[%s169 + $0x98] sm:$0xff]
        %v184 = vld [vmem:[%s169 + $0xa8] sm:$0xff]
        %v185 = vld [vmem:[%s169 + $0xb0] sm:$0xff]
        %v186 = vld [vmem:[%s169 + $0xc0] sm:$0xff]
        %v187 = vld [vmem:[%s169 + $0xc8] sm:$0xff]
        %v188 = vld [vmem:[%s169 + $0xd8] sm:$0xff]
        %v189 = vld [vmem:[%s169 + $0xe0] sm:$0xff]
        %v190 = vld [vmem:[%s169 + $0xf0] sm:$0xff]
        %v191 = vld [vmem:[%s169 + $0xf8] sm:$0xff]
        %v192 = vld [vmem:[%s169 + $0x108] sm:$0xff]
        %v193 = vld [vmem:[%s169 + $0x110] sm:$0xff]
        %v194 = vld [vmem:[%s169 + $0x120] sm:$0xff]
        %v195 = vld [vmem:[%s169 + $0x128] sm:$0xff]
        %v196 = vld [vmem:[%s169 + $0x138] sm:$0xff]
        %v197 = vld [vmem:[%s169 + $0x140] sm:$0xff]
        %v198 = vld [vmem:[%s169 + $0x150] sm:$0xff]
        %v199 = vld [vmem:[%s169 + $0x158] sm:$0xff]
        %v200 = vld [vmem:[%s169 + $0x168] sm:$0xff]
        %v201 = vld [vmem:[%s169 + $0x170] sm:$0xff]
        %v202 = vld [vmem:[%s1] sm:$0xf]
        %v203 = vld [vmem:[%s169 + $0x1] sm:$0xff]
        %v204 = vld [vmem:[%s169 + $0x9] sm:$0xff]
        %v205 = vld [vmem:[%s169 + $0x19] sm:$0xff]
        %v206 = vld [vmem:[%s169 + $0x21] sm:$0xff]
        %v207 = vld [vmem:[%s169 + $0x31] sm:$0xff]
        %v208 = vld [vmem:[%s169 + $0x39] sm:$0xff]
        %v209 = vld [vmem:[%s169 + $0x49] sm:$0xff]
        %v210 = vld [vmem:[%s169 + $0x51] sm:$0xff]
        %v211 = vld [vmem:[%s169 + $0x61] sm:$0xff]
        %v212 = vld [vmem:[%s169 + $0x69] sm:$0xff]
        %v213 = vld [vmem:[%s169 + $0x79] sm:$0xff]
        %v214 = vld [vmem:[%s169 + $0x81] sm:$0xff]
        %v215 = vld [vmem:[%s169 + $0x91] sm:$0xff]
        %v216 = vld [vmem:[%s169 + $0x99] sm:$0xff]
        %v217 = vld [vmem:[%s169 + $0xa9] sm:$0xff]
        %v218 = vld [vmem:[%s169 + $0xb1] sm:$0xff]
        %v219 = vld [vmem:[%s169 + $0xc1] sm:$0xff]
        %v220 = vld [vmem:[%s169 + $0xc9] sm:$0xff]
        %v221 = vld [vmem:[%s169 + $0xd9] sm:$0xff]
        %v222 = vld [vmem:[%s169 + $0xe1] sm:$0xff]
        %v223 = vld [vmem:[%s169 + $0xf1] sm:$0xff]
        %v224 = vld [vmem:[%s169 + $0xf9] sm:$0xff]
        %v225 = vld [vmem:[%s169 + $0x109] sm:$0xff]
        %v226 = vld [vmem:[%s169 + $0x111] sm:$0xff]
        %v227 = vld [vmem:[%s169 + $0x121] sm:$0xff]
        %v228 = vld [vmem:[%s169 + $0x129] sm:$0xff]
        %v229 = vld [vmem:[%s169 + $0x139] sm:$0xff]
        %v230 = vld [vmem:[%s169 + $0x141] sm:$0xff]
        %v231 = vld [vmem:[%s169 + $0x151] sm:$0xff]
        %v232 = vld [vmem:[%s169 + $0x159] sm:$0xff]
        %v233 = vld [vmem:[%s169 + $0x169] sm:$0xff]
        %v234 = vld [vmem:[%s169 + $0x171] sm:$0xff]
        %s235 = scalar_lea.vmem %s1, 4
        %v236 = vld [vmem:[%s235] sm:$0xf]
        %vm237 = vcmask 31744
        %v239 = vsel %vm237, %v203, 0
        %v242 = vsel %vm237, %v204, 0
        %v245 = vsel %vm237, %v205, 0
        %v248 = vsel %vm237, %v206, 0
        %v251 = vsel %vm237, %v207, 0
        %v254 = vsel %vm237, %v208, 0
        %v257 = vsel %vm237, %v209, 0
        %v260 = vsel %vm237, %v210, 0
        %v263 = vsel %vm237, %v211, 0
        %v266 = vsel %vm237, %v212, 0
        %v269 = vsel %vm237, %v213, 0
        %v272 = vsel %vm237, %v214, 0
        %v275 = vsel %vm237, %v215, 0
        %v278 = vsel %vm237, %v216, 0
        %v281 = vsel %vm237, %v217, 0
        %v284 = vsel %vm237, %v218, 0
        %v287 = vsel %vm237, %v219, 0
        %v290 = vsel %vm237, %v220, 0
        %v293 = vsel %vm237, %v221, 0
        %v296 = vsel %vm237, %v222, 0
        %v299 = vsel %vm237, %v223, 0
        %v302 = vsel %vm237, %v224, 0
        %v305 = vsel %vm237, %v225, 0
        %v308 = vsel %vm237, %v226, 0
        %v311 = vsel %vm237, %v227, 0
        %v314 = vsel %vm237, %v228, 0
        %v317 = vsel %vm237, %v229, 0
        %v320 = vsel %vm237, %v230, 0
        %v323 = vsel %vm237, %v231, 0
        %v326 = vsel %vm237, %v232, 0
        %v329 = vsel %vm237, %v233, 0
        %v332 = vsel %vm237, %v234, 0
        %vm334 = vcmask 1043456
        %v336 = vsel %vm334, %v236, 0
        %338 = vmatprep.subr.mxu0 0.0
        %339 = vmatpush1.msra.mxu0 0.0
        %340 = vmatprep.subr.mxu0 0.0
        %341 = vmatpush1.msra.mxu0 0.0
        %342 = vmatprep.subr.mxu0 0.0
        %343 = vmatpush1.msra.mxu0 0.0
        %344 = vmatprep.subr.mxu0 0.0
        %345 = vmatpush1.msra.mxu0 0.0
        %346 = vmatprep.subr.mxu0 0.0
        %347 = vmatpush1.msra.mxu0 0.0
        %348 = vmatprep.subr.mxu0 0.0
        %349 = vmatpush1.msra.mxu0 0.0
        %350 = vmatprep.subr.mxu0 0.0
        %351 = vmatpush1.msra.mxu0 0.0
        %352 = vmatprep.subr.mxu0 0.0
        %353 = vmatpush1.msra.mxu0 0.0
        %354 = vmatprep.subr.mxu0 0.0
        %355 = vmatpush1.msra.mxu0 0.0
        %356 = vmatprep.subr.mxu0 0.0
        %357 = vmatpush1.msra.mxu0 0.0
        %358 = vmatprep.subr.mxu0 0.0
        %359 = vmatpush1.msra.mxu0 0.0
        %360 = vmatprep.subr.mxu0 0.0
        %361 = vmatpush1.msra.mxu0 0.0
        %362 = vmatprep.subr.mxu0 0.0
        %363 = vmatpush1.msra.mxu0 0.0
        %364 = vmatprep.subr.mxu0 0.0
        %365 = vmatpush1.msra.mxu0 0.0
        %366 = vmatprep.subr.mxu0 0.0
        %367 = vmatpush1.msra.mxu0 0.0
        %368 = vmatprep.subr.mxu0 0.0
        %369 = vmatpush1.msra.mxu0 %v336
        %370 = vmatprep.subr.mxu0 0.0
        %371 = vmatpush2.msra.mxu0 0.0
        %372 = vmatprep.subr.mxu0 0.0
        %373 = vmatpush2.msra.mxu0 0.0
        %374 = vmatprep.subr.mxu0 0.0
        %375 = vmatpush2.msra.mxu0 0.0
        %376 = vmatprep.subr.mxu0 0.0
        %377 = vmatpush2.msra.mxu0 0.0
        %378 = vmatprep.subr.mxu0 0.0
        %379 = vmatpush2.msra.mxu0 0.0
        %380 = vmatprep.subr.mxu0 0.0
        %381 = vmatpush2.msra.mxu0 0.0
        %382 = vmatprep.subr.mxu0 0.0
        %383 = vmatpush2.msra.mxu0 0.0
        %384 = vmatprep.subr.mxu0 0.0
        %385 = vmatpush2.msra.mxu0 0.0
        %386 = vmatprep.subr.mxu0 0.0
        %387 = vmatpush2.msra.mxu0 0.0
        %388 = vmatprep.subr.mxu0 0.0
        %389 = vmatpush2.msra.mxu0 0.0
        %390 = vmatprep.subr.mxu0 0.0
        %391 = vmatpush2.msra.mxu0 0.0
        %392 = vmatprep.subr.mxu0 0.0
        %393 = vmatpush2.msra.mxu0 0.0
        %394 = vmatprep.subr.mxu0 0.0
        %395 = vmatpush2.msra.mxu0 0.0
        %396 = vmatprep.subr.mxu0 0.0
        %397 = vmatpush2.msra.mxu0 0.0
        %398 = vmatprep.subr.mxu0 0.0
        %399 = vmatpush2.msra.mxu0 0.0
        %400 = vmatprep.subr.mxu0 0.0
        %401 = vmatpush2.msra.mxu0 0.0
        %402 = vmatprep.mubr.f32.mxu0 0.0
        %403 = vmatmul.mubr.f32.gmra.mxu0 %v239
        %v404 = vpop.f32.mrf.mxu0
        %v405 = vadd.f32 0.0, %v404
        %v406 = vpop.f32.mrf.mxu0
        %407 = vmatprep.mubr.f32.mxu0 0.0
        %408 = vmatmul.mubr.f32.gmra.mxu0 %v242
        %v409 = vpop.f32.mrf.mxu0
        %v410 = vadd.f32 0.0, %v409
        %v411 = vpop.f32.mrf.mxu0
        %412 = vmatprep.mubr.f32.mxu0 0.0
        %413 = vmatmul.mubr.f32.gmra.mxu0 %v245
        %v414 = vpop.f32.mrf.mxu0
        %v415 = vadd.f32 0.0, %v414
        %v416 = vpop.f32.mrf.mxu0
        %417 = vmatprep.mubr.f32.mxu0 0.0
        %418 = vmatmul.mubr.f32.gmra.mxu0 %v248
        %v419 = vpop.f32.mrf.mxu0
        %v420 = vadd.f32 0.0, %v419
        %v421 = vpop.f32.mrf.mxu0
        %422 = vmatprep.mubr.f32.mxu0 0.0
        %423 = vmatmul.mubr.f32.gmra.mxu0 %v251
        %v424 = vpop.f32.mrf.mxu0
        %v425 = vadd.f32 0.0, %v424
        %v426 = vpop.f32.mrf.mxu0
        %427 = vmatprep.mubr.f32.mxu0 0.0
        %428 = vmatmul.mubr.f32.gmra.mxu0 %v254
        %v429 = vpop.f32.mrf.mxu0
        %v430 = vadd.f32 0.0, %v429
        %v431 = vpop.f32.mrf.mxu0
        %432 = vmatprep.mubr.f32.mxu0 0.0
        %433 = vmatmul.mubr.f32.gmra.mxu0 %v257
        %v434 = vpop.f32.mrf.mxu0
        %v435 = vadd.f32 0.0, %v434
        %v436 = vpop.f32.mrf.mxu0
        %437 = vmatprep.mubr.f32.mxu0 0.0
        %438 = vmatmul.mubr.f32.gmra.mxu0 %v260
        %v439 = vpop.f32.mrf.mxu0
        %v440 = vadd.f32 0.0, %v439
        %v441 = vpop.f32.mrf.mxu0
        %442 = vmatprep.mubr.f32.mxu0 0.0
        %443 = vmatmul.mubr.f32.gmra.mxu0 %v263
        %v444 = vpop.f32.mrf.mxu0
        %v445 = vadd.f32 0.0, %v444
        %v446 = vpop.f32.mrf.mxu0
        %447 = vmatprep.mubr.f32.mxu0 0.0
        %448 = vmatmul.mubr.f32.gmra.mxu0 %v266
        %v449 = vpop.f32.mrf.mxu0
        %v450 = vadd.f32 0.0, %v449
        %v451 = vpop.f32.mrf.mxu0
        %452 = vmatprep.mubr.f32.mxu0 0.0
        %453 = vmatmul.mubr.f32.gmra.mxu0 %v269
        %v454 = vpop.f32.mrf.mxu0
        %v455 = vadd.f32 0.0, %v454
        %v456 = vpop.f32.mrf.mxu0
        %457 = vmatprep.mubr.f32.mxu0 0.0
        %458 = vmatmul.mubr.f32.gmra.mxu0 %v272
        %v459 = vpop.f32.mrf.mxu0
        %v460 = vadd.f32 0.0, %v459
        %v461 = vpop.f32.mrf.mxu0
        %462 = vmatprep.mubr.f32.mxu0 0.0
        %463 = vmatmul.mubr.f32.gmra.mxu0 %v275
        %v464 = vpop.f32.mrf.mxu0
        %v465 = vadd.f32 0.0, %v464
        %v466 = vpop.f32.mrf.mxu0
        %467 = vmatprep.mubr.f32.mxu0 0.0
        %468 = vmatmul.mubr.f32.gmra.mxu0 %v278
        %v469 = vpop.f32.mrf.mxu0
        %v470 = vadd.f32 0.0, %v469
        %v471 = vpop.f32.mrf.mxu0
        %472 = vmatprep.mubr.f32.mxu0 0.0
        %473 = vmatmul.mubr.f32.gmra.mxu0 %v281
        %v474 = vpop.f32.mrf.mxu0
        %v475 = vadd.f32 0.0, %v474
        %v476 = vpop.f32.mrf.mxu0
        %477 = vmatprep.mubr.f32.mxu0 0.0
        %478 = vmatmul.mubr.f32.gmra.mxu0 %v284
        %v479 = vpop.f32.mrf.mxu0
        %v480 = vadd.f32 0.0, %v479
        %v481 = vpop.f32.mrf.mxu0
        %482 = vmatprep.mubr.f32.mxu0 0.0
        %483 = vmatmul.mubr.f32.gmra.mxu0 %v287
        %v484 = vpop.f32.mrf.mxu0
        %v485 = vadd.f32 0.0, %v484
        %v486 = vpop.f32.mrf.mxu0
        %487 = vmatprep.mubr.f32.mxu0 0.0
        %488 = vmatmul.mubr.f32.gmra.mxu0 %v290
        %v489 = vpop.f32.mrf.mxu0
        %v490 = vadd.f32 0.0, %v489
        %v491 = vpop.f32.mrf.mxu0
        %492 = vmatprep.mubr.f32.mxu0 0.0
        %493 = vmatmul.mubr.f32.gmra.mxu0 %v293
        %v494 = vpop.f32.mrf.mxu0
        %v495 = vadd.f32 0.0, %v494
        %v496 = vpop.f32.mrf.mxu0
        %497 = vmatprep.mubr.f32.mxu0 0.0
        %498 = vmatmul.mubr.f32.gmra.mxu0 %v296
        %v499 = vpop.f32.mrf.mxu0
        %v500 = vadd.f32 0.0, %v499
        %v501 = vpop.f32.mrf.mxu0
        %502 = vmatprep.mubr.f32.mxu0 0.0
        %503 = vmatmul.mubr.f32.gmra.mxu0 %v299
        %v504 = vpop.f32.mrf.mxu0
        %v505 = vadd.f32 0.0, %v504
        %v506 = vpop.f32.mrf.mxu0
        %507 = vmatprep.mubr.f32.mxu0 0.0
        %508 = vmatmul.mubr.f32.gmra.mxu0 %v302
        %v509 = vpop.f32.mrf.mxu0
        %v510 = vadd.f32 0.0, %v509
        %v511 = vpop.f32.mrf.mxu0
        %512 = vmatprep.mubr.f32.mxu0 0.0
        %513 = vmatmul.mubr.f32.gmra.mxu0 %v305
        %v514 = vpop.f32.mrf.mxu0
        %v515 = vadd.f32 0.0, %v514
        %v516 = vpop.f32.mrf.mxu0
        %517 = vmatprep.mubr.f32.mxu0 0.0
        %518 = vmatmul.mubr.f32.gmra.mxu0 %v308
        %v519 = vpop.f32.mrf.mxu0
        %v520 = vadd.f32 0.0, %v519
        %v521 = vpop.f32.mrf.mxu0
        %522 = vmatprep.mubr.f32.mxu0 0.0
        %523 = vmatmul.mubr.f32.gmra.mxu0 %v311
        %v524 = vpop.f32.mrf.mxu0
        %v525 = vadd.f32 0.0, %v524
        %v526 = vpop.f32.mrf.mxu0
        %527 = vmatprep.mubr.f32.mxu0 0.0
        %528 = vmatmul.mubr.f32.gmra.mxu0 %v314
        %v529 = vpop.f32.mrf.mxu0
        %v530 = vadd.f32 0.0, %v529
        %v531 = vpop.f32.mrf.mxu0
        %532 = vmatprep.mubr.f32.mxu0 0.0
        %533 = vmatmul.mubr.f32.gmra.mxu0 %v317
        %v534 = vpop.f32.mrf.mxu0
        %v535 = vadd.f32 0.0, %v534
        %v536 = vpop.f32.mrf.mxu0
        %537 = vmatprep.mubr.f32.mxu0 0.0
        %538 = vmatmul.mubr.f32.gmra.mxu0 %v320
        %v539 = vpop.f32.mrf.mxu0
        %v540 = vadd.f32 0.0, %v539
        %v541 = vpop.f32.mrf.mxu0
        %542 = vmatprep.mubr.f32.mxu0 0.0
        %543 = vmatmul.mubr.f32.gmra.mxu0 %v323
        %v544 = vpop.f32.mrf.mxu0
        %v545 = vadd.f32 0.0, %v544
        %v546 = vpop.f32.mrf.mxu0
        %547 = vmatprep.mubr.f32.mxu0 0.0
        %548 = vmatmul.mubr.f32.gmra.mxu0 %v326
        %v549 = vpop.f32.mrf.mxu0
        %v550 = vadd.f32 0.0, %v549
        %v551 = vpop.f32.mrf.mxu0
        %552 = vmatprep.mubr.f32.mxu0 0.0
        %553 = vmatmul.mubr.f32.gmra.mxu0 %v329
        %v554 = vpop.f32.mrf.mxu0
        %v555 = vadd.f32 0.0, %v554
        %v556 = vpop.f32.mrf.mxu0
        %557 = vmatprep.mubr.f32.mxu0 0.0
        %558 = vmatmul.mubr.f32.gmra.mxu0 %v332
        %v559 = vpop.f32.mrf.mxu0
        %v560 = vadd.f32 0.0, %v559
        %v561 = vpop.f32.mrf.mxu0
        %562 = vdwg.mxu0
        %v564 = vsel %vm237, %v170, 0
        %v567 = vsel %vm237, %v171, 0
        %v570 = vsel %vm237, %v172, 0
        %v573 = vsel %vm237, %v173, 0
        %v576 = vsel %vm237, %v174, 0
        %v579 = vsel %vm237, %v175, 0
        %v582 = vsel %vm237, %v176, 0
        %v585 = vsel %vm237, %v177, 0
        %v588 = vsel %vm237, %v178, 0
        %v591 = vsel %vm237, %v179, 0
        %v594 = vsel %vm237, %v180, 0
        %v597 = vsel %vm237, %v181, 0
        %v600 = vsel %vm237, %v182, 0
        %v603 = vsel %vm237, %v183, 0
        %v606 = vsel %vm237, %v184, 0
        %v609 = vsel %vm237, %v185, 0
        %v612 = vsel %vm237, %v186, 0
        %v615 = vsel %vm237, %v187, 0
        %v618 = vsel %vm237, %v188, 0
        %v621 = vsel %vm237, %v189, 0
        %v624 = vsel %vm237, %v190, 0
        %v627 = vsel %vm237, %v191, 0
        %v630 = vsel %vm237, %v192, 0
        %v633 = vsel %vm237, %v193, 0
        %v636 = vsel %vm237, %v194, 0
        %v639 = vsel %vm237, %v195, 0
        %v642 = vsel %vm237, %v196, 0
        %v645 = vsel %vm237, %v197, 0
        %v648 = vsel %vm237, %v198, 0
        %v651 = vsel %vm237, %v199, 0
        %v654 = vsel %vm237, %v200, 0
        %v657 = vsel %vm237, %v201, 0
        %v660 = vsel %vm334, %v202, 0
        %662 = vmatprep.subr.mxu0 0.0
        %663 = vmatpush1.msra.mxu0 0.0
        %664 = vmatprep.subr.mxu0 0.0
        %665 = vmatpush1.msra.mxu0 0.0
        %666 = vmatprep.subr.mxu0 0.0
        %667 = vmatpush1.msra.mxu0 0.0
        %668 = vmatprep.subr.mxu0 0.0
        %669 = vmatpush1.msra.mxu0 0.0
        %670 = vmatprep.subr.mxu0 0.0
        %671 = vmatpush1.msra.mxu0 0.0
        %672 = vmatprep.subr.mxu0 0.0
        %673 = vmatpush1.msra.mxu0 0.0
        %674 = vmatprep.subr.mxu0 0.0
        %675 = vmatpush1.msra.mxu0 0.0
        %676 = vmatprep.subr.mxu0 0.0
        %677 = vmatpush1.msra.mxu0 0.0
        %678 = vmatprep.subr.mxu0 0.0
        %679 = vmatpush1.msra.mxu0 0.0
        %680 = vmatprep.subr.mxu0 0.0
        %681 = vmatpush1.msra.mxu0 0.0
        %682 = vmatprep.subr.mxu0 0.0
        %683 = vmatpush1.msra.mxu0 0.0
        %684 = vmatprep.subr.mxu0 0.0
        %685 = vmatpush1.msra.mxu0 0.0
        %686 = vmatprep.subr.mxu0 0.0
        %687 = vmatpush1.msra.mxu0 0.0
        %688 = vmatprep.subr.mxu0 0.0
        %689 = vmatpush1.msra.mxu0 0.0
        %690 = vmatprep.subr.mxu0 0.0
        %691 = vmatpush1.msra.mxu0 0.0
        %692 = vmatprep.subr.mxu0 0.0
        %693 = vmatpush1.msra.mxu0 %v660
        %694 = vmatprep.subr.mxu0 0.0
        %695 = vmatpush2.msra.mxu0 0.0
        %696 = vmatprep.subr.mxu0 0.0
        %697 = vmatpush2.msra.mxu0 0.0
        %698 = vmatprep.subr.mxu0 0.0
        %699 = vmatpush2.msra.mxu0 0.0
        %700 = vmatprep.subr.mxu0 0.0
        %701 = vmatpush2.msra.mxu0 0.0
        %702 = vmatprep.subr.mxu0 0.0
        %703 = vmatpush2.msra.mxu0 0.0
        %704 = vmatprep.subr.mxu0 0.0
        %705 = vmatpush2.msra.mxu0 0.0
        %706 = vmatprep.subr.mxu0 0.0
        %707 = vmatpush2.msra.mxu0 0.0
        %708 = vmatprep.subr.mxu0 0.0
        %709 = vmatpush2.msra.mxu0 0.0
        %710 = vmatprep.subr.mxu0 0.0
        %711 = vmatpush2.msra.mxu0 0.0
        %712 = vmatprep.subr.mxu0 0.0
        %713 = vmatpush2.msra.mxu0 0.0
        %714 = vmatprep.subr.mxu0 0.0
        %715 = vmatpush2.msra.mxu0 0.0
        %716 = vmatprep.subr.mxu0 0.0
        %717 = vmatpush2.msra.mxu0 0.0
        %718 = vmatprep.subr.mxu0 0.0
        %719 = vmatpush2.msra.mxu0 0.0
        %720 = vmatprep.subr.mxu0 0.0
        %721 = vmatpush2.msra.mxu0 0.0
        %722 = vmatprep.subr.mxu0 0.0
        %723 = vmatpush2.msra.mxu0 0.0
        %724 = vmatprep.subr.mxu0 0.0
        %725 = vmatpush2.msra.mxu0 0.0
        %726 = vmatprep.mubr.f32.mxu0 0.0
        %727 = vmatmul.mubr.f32.gmra.mxu0 %v564
        %v728 = vpop.f32.mrf.mxu0
        %v729 = vadd.f32 %v405, %v728
        %v730 = vpop.f32.mrf.mxu0
        %731 = vmatprep.mubr.f32.mxu0 0.0
        %732 = vmatmul.mubr.f32.gmra.mxu0 %v567
        %v733 = vpop.f32.mrf.mxu0
        %v734 = vadd.f32 %v410, %v733
        %v735 = vpop.f32.mrf.mxu0
        %736 = vmatprep.mubr.f32.mxu0 0.0
        %737 = vmatmul.mubr.f32.gmra.mxu0 %v570
        %v738 = vpop.f32.mrf.mxu0
        %v739 = vadd.f32 %v415, %v738
        %v740 = vpop.f32.mrf.mxu0
        %741 = vmatprep.mubr.f32.mxu0 0.0
        %742 = vmatmul.mubr.f32.gmra.mxu0 %v573
        %v743 = vpop.f32.mrf.mxu0
        %v744 = vadd.f32 %v420, %v743
        %v745 = vpop.f32.mrf.mxu0
        %746 = vmatprep.mubr.f32.mxu0 0.0
        %747 = vmatmul.mubr.f32.gmra.mxu0 %v576
        %v748 = vpop.f32.mrf.mxu0
        %v749 = vadd.f32 %v425, %v748
        %v750 = vpop.f32.mrf.mxu0
        %751 = vmatprep.mubr.f32.mxu0 0.0
        %752 = vmatmul.mubr.f32.gmra.mxu0 %v579
        %v753 = vpop.f32.mrf.mxu0
        %v754 = vadd.f32 %v430, %v753
        %v755 = vpop.f32.mrf.mxu0
        %756 = vmatprep.mubr.f32.mxu0 0.0
        %757 = vmatmul.mubr.f32.gmra.mxu0 %v582
        %v758 = vpop.f32.mrf.mxu0
        %v759 = vadd.f32 %v435, %v758
        %v760 = vpop.f32.mrf.mxu0
        %761 = vmatprep.mubr.f32.mxu0 0.0
        %762 = vmatmul.mubr.f32.gmra.mxu0 %v585
        %v763 = vpop.f32.mrf.mxu0
        %v764 = vadd.f32 %v440, %v763
        %v765 = vpop.f32.mrf.mxu0
        %766 = vmatprep.mubr.f32.mxu0 0.0
        %767 = vmatmul.mubr.f32.gmra.mxu0 %v588
        %v768 = vpop.f32.mrf.mxu0
        %v769 = vadd.f32 %v445, %v768
        %v770 = vpop.f32.mrf.mxu0
        %771 = vmatprep.mubr.f32.mxu0 0.0
        %772 = vmatmul.mubr.f32.gmra.mxu0 %v591
        %v773 = vpop.f32.mrf.mxu0
        %v774 = vadd.f32 %v450, %v773
        %v775 = vpop.f32.mrf.mxu0
        %776 = vmatprep.mubr.f32.mxu0 0.0
        %777 = vmatmul.mubr.f32.gmra.mxu0 %v594
        %v778 = vpop.f32.mrf.mxu0
        %v779 = vadd.f32 %v455, %v778
        %v780 = vpop.f32.mrf.mxu0
        %781 = vmatprep.mubr.f32.mxu0 0.0
        %782 = vmatmul.mubr.f32.gmra.mxu0 %v597
        %v783 = vpop.f32.mrf.mxu0
        %v784 = vadd.f32 %v460, %v783
        %v785 = vpop.f32.mrf.mxu0
        %786 = vmatprep.mubr.f32.mxu0 0.0
        %787 = vmatmul.mubr.f32.gmra.mxu0 %v600
        %v788 = vpop.f32.mrf.mxu0
        %v789 = vadd.f32 %v465, %v788
        %v790 = vpop.f32.mrf.mxu0
        %791 = vmatprep.mubr.f32.mxu0 0.0
        %792 = vmatmul.mubr.f32.gmra.mxu0 %v603
        %v793 = vpop.f32.mrf.mxu0
        %v794 = vadd.f32 %v470, %v793
        %v795 = vpop.f32.mrf.mxu0
        %796 = vmatprep.mubr.f32.mxu0 0.0
        %797 = vmatmul.mubr.f32.gmra.mxu0 %v606
        %v798 = vpop.f32.mrf.mxu0
        %v799 = vadd.f32 %v475, %v798
        %v800 = vpop.f32.mrf.mxu0
        %801 = vmatprep.mubr.f32.mxu0 0.0
        %802 = vmatmul.mubr.f32.gmra.mxu0 %v609
        %v803 = vpop.f32.mrf.mxu0
        %v804 = vadd.f32 %v480, %v803
        %v805 = vpop.f32.mrf.mxu0
        %806 = vmatprep.mubr.f32.mxu0 0.0
        %807 = vmatmul.mubr.f32.gmra.mxu0 %v612
        %v808 = vpop.f32.mrf.mxu0
        %v809 = vadd.f32 %v485, %v808
        %v810 = vpop.f32.mrf.mxu0
        %811 = vmatprep.mubr.f32.mxu0 0.0
        %812 = vmatmul.mubr.f32.gmra.mxu0 %v615
        %v813 = vpop.f32.mrf.mxu0
        %v814 = vadd.f32 %v490, %v813
        %v815 = vpop.f32.mrf.mxu0
        %816 = vmatprep.mubr.f32.mxu0 0.0
        %817 = vmatmul.mubr.f32.gmra.mxu0 %v618
        %v818 = vpop.f32.mrf.mxu0
        %v819 = vadd.f32 %v495, %v818
        %v820 = vpop.f32.mrf.mxu0
        %821 = vmatprep.mubr.f32.mxu0 0.0
        %822 = vmatmul.mubr.f32.gmra.mxu0 %v621
        %v823 = vpop.f32.mrf.mxu0
        %v824 = vadd.f32 %v500, %v823
        %v825 = vpop.f32.mrf.mxu0
        %826 = vmatprep.mubr.f32.mxu0 0.0
        %827 = vmatmul.mubr.f32.gmra.mxu0 %v624
        %v828 = vpop.f32.mrf.mxu0
        %v829 = vadd.f32 %v505, %v828
        %v830 = vpop.f32.mrf.mxu0
        %831 = vmatprep.mubr.f32.mxu0 0.0
        %832 = vmatmul.mubr.f32.gmra.mxu0 %v627
        %v833 = vpop.f32.mrf.mxu0
        %v834 = vadd.f32 %v510, %v833
        %v835 = vpop.f32.mrf.mxu0
        %836 = vmatprep.mubr.f32.mxu0 0.0
        %837 = vmatmul.mubr.f32.gmra.mxu0 %v630
        %v838 = vpop.f32.mrf.mxu0
        %v839 = vadd.f32 %v515, %v838
        %v840 = vpop.f32.mrf.mxu0
        %841 = vmatprep.mubr.f32.mxu0 0.0
        %842 = vmatmul.mubr.f32.gmra.mxu0 %v633
        %v843 = vpop.f32.mrf.mxu0
        %v844 = vadd.f32 %v520, %v843
        %v845 = vpop.f32.mrf.mxu0
        %846 = vmatprep.mubr.f32.mxu0 0.0
        %847 = vmatmul.mubr.f32.gmra.mxu0 %v636
        %v848 = vpop.f32.mrf.mxu0
        %v849 = vadd.f32 %v525, %v848
        %v850 = vpop.f32.mrf.mxu0
        %851 = vmatprep.mubr.f32.mxu0 0.0
        %852 = vmatmul.mubr.f32.gmra.mxu0 %v639
        %v853 = vpop.f32.mrf.mxu0
        %v854 = vadd.f32 %v530, %v853
        %v855 = vpop.f32.mrf.mxu0
        %856 = vmatprep.mubr.f32.mxu0 0.0
        %857 = vmatmul.mubr.f32.gmra.mxu0 %v642
        %v858 = vpop.f32.mrf.mxu0
        %v859 = vadd.f32 %v535, %v858
        %v860 = vpop.f32.mrf.mxu0
        %861 = vmatprep.mubr.f32.mxu0 0.0
        %862 = vmatmul.mubr.f32.gmra.mxu0 %v645
        %v863 = vpop.f32.mrf.mxu0
        %v864 = vadd.f32 %v540, %v863
        %v865 = vpop.f32.mrf.mxu0
        %866 = vmatprep.mubr.f32.mxu0 0.0
        %867 = vmatmul.mubr.f32.gmra.mxu0 %v648
        %v868 = vpop.f32.mrf.mxu0
        %v869 = vadd.f32 %v545, %v868
        %v870 = vpop.f32.mrf.mxu0
        %871 = vmatprep.mubr.f32.mxu0 0.0
        %872 = vmatmul.mubr.f32.gmra.mxu0 %v651
        %v873 = vpop.f32.mrf.mxu0
        %v874 = vadd.f32 %v550, %v873
        %v875 = vpop.f32.mrf.mxu0
        %876 = vmatprep.mubr.f32.mxu0 0.0
        %877 = vmatmul.mubr.f32.gmra.mxu0 %v654
        %v878 = vpop.f32.mrf.mxu0
        %v879 = vadd.f32 %v555, %v878
        %v880 = vpop.f32.mrf.mxu0
        %881 = vmatprep.mubr.f32.mxu0 0.0
        %882 = vmatmul.mubr.f32.gmra.mxu0 %v657
        %v883 = vpop.f32.mrf.mxu0
        %v884 = vadd.f32 %v560, %v883
        %v885 = vpop.f32.mrf.mxu0
        %886 = vdwg.mxu0
        %v887 = vld [vmem:[%s169 + $0x2] sm:$0xff]
        %v888 = vld [vmem:[%s169 + $0xa] sm:$0xff]
        %v889 = vld [vmem:[%s169 + $0x1a] sm:$0xff]
        %v890 = vld [vmem:[%s169 + $0x22] sm:$0xff]
        %v891 = vld [vmem:[%s169 + $0x32] sm:$0xff]
        %v892 = vld [vmem:[%s169 + $0x3a] sm:$0xff]
        %v893 = vld [vmem:[%s169 + $0x4a] sm:$0xff]
        %v894 = vld [vmem:[%s169 + $0x52] sm:$0xff]
        %v895 = vld [vmem:[%s169 + $0x62] sm:$0xff]
        %v896 = vld [vmem:[%s169 + $0x6a] sm:$0xff]
        %v897 = vld [vmem:[%s169 + $0x7a] sm:$0xff]
        %v898 = vld [vmem:[%s169 + $0x82] sm:$0xff]
        %v899 = vld [vmem:[%s169 + $0x92] sm:$0xff]
        %v900 = vld [vmem:[%s169 + $0x9a] sm:$0xff]
        %v901 = vld [vmem:[%s169 + $0xaa] sm:$0xff]
        %v902 = vld [vmem:[%s169 + $0xb2] sm:$0xff]
        %v903 = vld [vmem:[%s169 + $0xc2] sm:$0xff]
        %v904 = vld [vmem:[%s169 + $0xca] sm:$0xff]
        %v905 = vld [vmem:[%s169 + $0xda] sm:$0xff]
        %v906 = vld [vmem:[%s169 + $0xe2] sm:$0xff]
        %v907 = vld [vmem:[%s169 + $0xf2] sm:$0xff]
        %v908 = vld [vmem:[%s169 + $0xfa] sm:$0xff]
        %v909 = vld [vmem:[%s169 + $0x10a] sm:$0xff]
        %v910 = vld [vmem:[%s169 + $0x112] sm:$0xff]
        %v911 = vld [vmem:[%s169 + $0x122] sm:$0xff]
        %v912 = vld [vmem:[%s169 + $0x12a] sm:$0xff]
        %v913 = vld [vmem:[%s169 + $0x13a] sm:$0xff]
        %v914 = vld [vmem:[%s169 + $0x142] sm:$0xff]
        %v915 = vld [vmem:[%s169 + $0x152] sm:$0xff]
        %v916 = vld [vmem:[%s169 + $0x15a] sm:$0xff]
        %v917 = vld [vmem:[%s169 + $0x16a] sm:$0xff]
        %v918 = vld [vmem:[%s169 + $0x172] sm:$0xff]
        %s919 = scalar_lea.vmem %s1, 8
        %v920 = vld [vmem:[%s919] sm:$0xf]
        %v922 = vsel %vm237, %v887, 0
        %v925 = vsel %vm237, %v888, 0
        %v928 = vsel %vm237, %v889, 0
        %v931 = vsel %vm237, %v890, 0
        %v934 = vsel %vm237, %v891, 0
        %v937 = vsel %vm237, %v892, 0
        %v940 = vsel %vm237, %v893, 0
        %v943 = vsel %vm237, %v894, 0
        %v946 = vsel %vm237, %v895, 0
        %v949 = vsel %vm237, %v896, 0
        %v952 = vsel %vm237, %v897, 0
        %v955 = vsel %vm237, %v898, 0
        %v958 = vsel %vm237, %v899, 0
        %v961 = vsel %vm237, %v900, 0
        %v964 = vsel %vm237, %v901, 0
        %v967 = vsel %vm237, %v902, 0
        %v970 = vsel %vm237, %v903, 0
        %v973 = vsel %vm237, %v904, 0
        %v976 = vsel %vm237, %v905, 0
        %v979 = vsel %vm237, %v906, 0
        %v982 = vsel %vm237, %v907, 0
        %v985 = vsel %vm237, %v908, 0
        %v988 = vsel %vm237, %v909, 0
        %v991 = vsel %vm237, %v910, 0
        %v994 = vsel %vm237, %v911, 0
        %v997 = vsel %vm237, %v912, 0
        %v1000 = vsel %vm237, %v913, 0
        %v1003 = vsel %vm237, %v914, 0
        %v1006 = vsel %vm237, %v915, 0
        %v1009 = vsel %vm237, %v916, 0
        %v1012 = vsel %vm237, %v917, 0
        %v1015 = vsel %vm237, %v918, 0
        %v1018 = vsel %vm334, %v920, 0
        %1020 = vmatprep.subr.mxu0 0.0
        %1021 = vmatpush1.msra.mxu0 0.0
        %1022 = vmatprep.subr.mxu0 0.0
        %1023 = vmatpush1.msra.mxu0 0.0
        %1024 = vmatprep.subr.mxu0 0.0
        %1025 = vmatpush1.msra.mxu0 0.0
        %1026 = vmatprep.subr.mxu0 0.0
        %1027 = vmatpush1.msra.mxu0 0.0
        %1028 = vmatprep.subr.mxu0 0.0
        %1029 = vmatpush1.msra.mxu0 0.0
        %1030 = vmatprep.subr.mxu0 0.0
        %1031 = vmatpush1.msra.mxu0 0.0
        %1032 = vmatprep.subr.mxu0 0.0
        %1033 = vmatpush1.msra.mxu0 0.0
        %1034 = vmatprep.subr.mxu0 0.0
        %1035 = vmatpush1.msra.mxu0 0.0
        %1036 = vmatprep.subr.mxu0 0.0
        %1037 = vmatpush1.msra.mxu0 0.0
        %1038 = vmatprep.subr.mxu0 0.0
        %1039 = vmatpush1.msra.mxu0 0.0
        %1040 = vmatprep.subr.mxu0 0.0
        %1041 = vmatpush1.msra.mxu0 0.0
        %1042 = vmatprep.subr.mxu0 0.0
        %1043 = vmatpush1.msra.mxu0 0.0
        %1044 = vmatprep.subr.mxu0 0.0
        %1045 = vmatpush1.msra.mxu0 0.0
        %1046 = vmatprep.subr.mxu0 0.0
        %1047 = vmatpush1.msra.mxu0 0.0
        %1048 = vmatprep.subr.mxu0 0.0
        %1049 = vmatpush1.msra.mxu0 0.0
        %1050 = vmatprep.subr.mxu0 0.0
        %1051 = vmatpush1.msra.mxu0 %v1018
        %1052 = vmatprep.subr.mxu0 0.0
        %1053 = vmatpush2.msra.mxu0 0.0
        %1054 = vmatprep.subr.mxu0 0.0
        %1055 = vmatpush2.msra.mxu0 0.0
        %1056 = vmatprep.subr.mxu0 0.0
        %1057 = vmatpush2.msra.mxu0 0.0
        %1058 = vmatprep.subr.mxu0 0.0
        %1059 = vmatpush2.msra.mxu0 0.0
        %1060 = vmatprep.subr.mxu0 0.0
        %1061 = vmatpush2.msra.mxu0 0.0
        %1062 = vmatprep.subr.mxu0 0.0
        %1063 = vmatpush2.msra.mxu0 0.0
        %1064 = vmatprep.subr.mxu0 0.0
        %1065 = vmatpush2.msra.mxu0 0.0
        %1066 = vmatprep.subr.mxu0 0.0
        %1067 = vmatpush2.msra.mxu0 0.0
        %1068 = vmatprep.subr.mxu0 0.0
        %1069 = vmatpush2.msra.mxu0 0.0
        %1070 = vmatprep.subr.mxu0 0.0
        %1071 = vmatpush2.msra.mxu0 0.0
        %1072 = vmatprep.subr.mxu0 0.0
        %1073 = vmatpush2.msra.mxu0 0.0
        %1074 = vmatprep.subr.mxu0 0.0
        %1075 = vmatpush2.msra.mxu0 0.0
        %1076 = vmatprep.subr.mxu0 0.0
        %1077 = vmatpush2.msra.mxu0 0.0
        %1078 = vmatprep.subr.mxu0 0.0
        %1079 = vmatpush2.msra.mxu0 0.0
        %1080 = vmatprep.subr.mxu0 0.0
        %1081 = vmatpush2.msra.mxu0 0.0
        %1082 = vmatprep.subr.mxu0 0.0
        %1083 = vmatpush2.msra.mxu0 0.0
        %1084 = vmatprep.mubr.f32.mxu0 0.0
        %1085 = vmatmul.mubr.f32.gmra.mxu0 %v922
        %v1086 = vpop.f32.mrf.mxu0
        %v1087 = vadd.f32 0.0, %v1086
        %v1088 = vpop.f32.mrf.mxu0
        %1089 = vmatprep.mubr.f32.mxu0 0.0
        %1090 = vmatmul.mubr.f32.gmra.mxu0 %v925
        %v1091 = vpop.f32.mrf.mxu0
        %v1092 = vadd.f32 0.0, %v1091
        %v1093 = vpop.f32.mrf.mxu0
        %1094 = vmatprep.mubr.f32.mxu0 0.0
        %1095 = vmatmul.mubr.f32.gmra.mxu0 %v928
        %v1096 = vpop.f32.mrf.mxu0
        %v1097 = vadd.f32 0.0, %v1096
        %v1098 = vpop.f32.mrf.mxu0
        %1099 = vmatprep.mubr.f32.mxu0 0.0
        %1100 = vmatmul.mubr.f32.gmra.mxu0 %v931
        %v1101 = vpop.f32.mrf.mxu0
        %v1102 = vadd.f32 0.0, %v1101
        %v1103 = vpop.f32.mrf.mxu0
        %1104 = vmatprep.mubr.f32.mxu0 0.0
        %1105 = vmatmul.mubr.f32.gmra.mxu0 %v934
        %v1106 = vpop.f32.mrf.mxu0
        %v1107 = vadd.f32 0.0, %v1106
        %v1108 = vpop.f32.mrf.mxu0
        %1109 = vmatprep.mubr.f32.mxu0 0.0
        %1110 = vmatmul.mubr.f32.gmra.mxu0 %v937
        %v1111 = vpop.f32.mrf.mxu0
        %v1112 = vadd.f32 0.0, %v1111
        %v1113 = vpop.f32.mrf.mxu0
        %1114 = vmatprep.mubr.f32.mxu0 0.0
        %1115 = vmatmul.mubr.f32.gmra.mxu0 %v940
        %v1116 = vpop.f32.mrf.mxu0
        %v1117 = vadd.f32 0.0, %v1116
        %v1118 = vpop.f32.mrf.mxu0
        %1119 = vmatprep.mubr.f32.mxu0 0.0
        %1120 = vmatmul.mubr.f32.gmra.mxu0 %v943
        %v1121 = vpop.f32.mrf.mxu0
        %v1122 = vadd.f32 0.0, %v1121
        %v1123 = vpop.f32.mrf.mxu0
        %1124 = vmatprep.mubr.f32.mxu0 0.0
        %1125 = vmatmul.mubr.f32.gmra.mxu0 %v946
        %v1126 = vpop.f32.mrf.mxu0
        %v1127 = vadd.f32 0.0, %v1126
        %v1128 = vpop.f32.mrf.mxu0
        %1129 = vmatprep.mubr.f32.mxu0 0.0
        %1130 = vmatmul.mubr.f32.gmra.mxu0 %v949
        %v1131 = vpop.f32.mrf.mxu0
        %v1132 = vadd.f32 0.0, %v1131
        %v1133 = vpop.f32.mrf.mxu0
        %1134 = vmatprep.mubr.f32.mxu0 0.0
        %1135 = vmatmul.mubr.f32.gmra.mxu0 %v952
        %v1136 = vpop.f32.mrf.mxu0
        %v1137 = vadd.f32 0.0, %v1136
        %v1138 = vpop.f32.mrf.mxu0
        %1139 = vmatprep.mubr.f32.mxu0 0.0
        %1140 = vmatmul.mubr.f32.gmra.mxu0 %v955
        %v1141 = vpop.f32.mrf.mxu0
        %v1142 = vadd.f32 0.0, %v1141
        %v1143 = vpop.f32.mrf.mxu0
        %1144 = vmatprep.mubr.f32.mxu0 0.0
        %1145 = vmatmul.mubr.f32.gmra.mxu0 %v958
        %v1146 = vpop.f32.mrf.mxu0
        %v1147 = vadd.f32 0.0, %v1146
        %v1148 = vpop.f32.mrf.mxu0
        %1149 = vmatprep.mubr.f32.mxu0 0.0
        %1150 = vmatmul.mubr.f32.gmra.mxu0 %v961
        %v1151 = vpop.f32.mrf.mxu0
        %v1152 = vadd.f32 0.0, %v1151
        %v1153 = vpop.f32.mrf.mxu0
        %1154 = vmatprep.mubr.f32.mxu0 0.0
        %1155 = vmatmul.mubr.f32.gmra.mxu0 %v964
        %v1156 = vpop.f32.mrf.mxu0
        %v1157 = vadd.f32 0.0, %v1156
        %v1158 = vpop.f32.mrf.mxu0
        %1159 = vmatprep.mubr.f32.mxu0 0.0
        %1160 = vmatmul.mubr.f32.gmra.mxu0 %v967
        %v1161 = vpop.f32.mrf.mxu0
        %v1162 = vadd.f32 0.0, %v1161
        %v1163 = vpop.f32.mrf.mxu0
        %1164 = vmatprep.mubr.f32.mxu0 0.0
        %1165 = vmatmul.mubr.f32.gmra.mxu0 %v970
        %v1166 = vpop.f32.mrf.mxu0
        %v1167 = vadd.f32 0.0, %v1166
        %v1168 = vpop.f32.mrf.mxu0
        %1169 = vmatprep.mubr.f32.mxu0 0.0
        %1170 = vmatmul.mubr.f32.gmra.mxu0 %v973
        %v1171 = vpop.f32.mrf.mxu0
        %v1172 = vadd.f32 0.0, %v1171
        %v1173 = vpop.f32.mrf.mxu0
        %1174 = vmatprep.mubr.f32.mxu0 0.0
        %1175 = vmatmul.mubr.f32.gmra.mxu0 %v976
        %v1176 = vpop.f32.mrf.mxu0
        %v1177 = vadd.f32 0.0, %v1176
        %v1178 = vpop.f32.mrf.mxu0
        %1179 = vmatprep.mubr.f32.mxu0 0.0
        %1180 = vmatmul.mubr.f32.gmra.mxu0 %v979
        %v1181 = vpop.f32.mrf.mxu0
        %v1182 = vadd.f32 0.0, %v1181
        %v1183 = vpop.f32.mrf.mxu0
        %1184 = vmatprep.mubr.f32.mxu0 0.0
        %1185 = vmatmul.mubr.f32.gmra.mxu0 %v982
        %v1186 = vpop.f32.mrf.mxu0
        %v1187 = vadd.f32 0.0, %v1186
        %v1188 = vpop.f32.mrf.mxu0
        %1189 = vmatprep.mubr.f32.mxu0 0.0
        %1190 = vmatmul.mubr.f32.gmra.mxu0 %v985
        %v1191 = vpop.f32.mrf.mxu0
        %v1192 = vadd.f32 0.0, %v1191
        %v1193 = vpop.f32.mrf.mxu0
        %1194 = vmatprep.mubr.f32.mxu0 0.0
        %1195 = vmatmul.mubr.f32.gmra.mxu0 %v988
        %v1196 = vpop.f32.mrf.mxu0
        %v1197 = vadd.f32 0.0, %v1196
        %v1198 = vpop.f32.mrf.mxu0
        %1199 = vmatprep.mubr.f32.mxu0 0.0
        %1200 = vmatmul.mubr.f32.gmra.mxu0 %v991
        %v1201 = vpop.f32.mrf.mxu0
        %v1202 = vadd.f32 0.0, %v1201
        %v1203 = vpop.f32.mrf.mxu0
        %1204 = vmatprep.mubr.f32.mxu0 0.0
        %1205 = vmatmul.mubr.f32.gmra.mxu0 %v994
        %v1206 = vpop.f32.mrf.mxu0
        %v1207 = vadd.f32 0.0, %v1206
        %v1208 = vpop.f32.mrf.mxu0
        %1209 = vmatprep.mubr.f32.mxu0 0.0
        %1210 = vmatmul.mubr.f32.gmra.mxu0 %v997
        %v1211 = vpop.f32.mrf.mxu0
        %v1212 = vadd.f32 0.0, %v1211
        %v1213 = vpop.f32.mrf.mxu0
        %1214 = vmatprep.mubr.f32.mxu0 0.0
        %1215 = vmatmul.mubr.f32.gmra.mxu0 %v1000
        %v1216 = vpop.f32.mrf.mxu0
        %v1217 = vadd.f32 0.0, %v1216
        %v1218 = vpop.f32.mrf.mxu0
        %1219 = vmatprep.mubr.f32.mxu0 0.0
        %1220 = vmatmul.mubr.f32.gmra.mxu0 %v1003
        %v1221 = vpop.f32.mrf.mxu0
        %v1222 = vadd.f32 0.0, %v1221
        %v1223 = vpop.f32.mrf.mxu0
        %1224 = vmatprep.mubr.f32.mxu0 0.0
        %1225 = vmatmul.mubr.f32.gmra.mxu0 %v1006
        %v1226 = vpop.f32.mrf.mxu0
        %v1227 = vadd.f32 0.0, %v1226
        %v1228 = vpop.f32.mrf.mxu0
        %1229 = vmatprep.mubr.f32.mxu0 0.0
        %1230 = vmatmul.mubr.f32.gmra.mxu0 %v1009
        %v1231 = vpop.f32.mrf.mxu0
        %v1232 = vadd.f32 0.0, %v1231
        %v1233 = vpop.f32.mrf.mxu0
        %1234 = vmatprep.mubr.f32.mxu0 0.0
        %1235 = vmatmul.mubr.f32.gmra.mxu0 %v1012
        %v1236 = vpop.f32.mrf.mxu0
        %v1237 = vadd.f32 0.0, %v1236
        %v1238 = vpop.f32.mrf.mxu0
        %1239 = vmatprep.mubr.f32.mxu0 0.0
        %1240 = vmatmul.mubr.f32.gmra.mxu0 %v1015
        %v1241 = vpop.f32.mrf.mxu0
        %v1242 = vadd.f32 0.0, %v1241
        %v1243 = vpop.f32.mrf.mxu0
        %1244 = vdwg.mxu0
        %v1245 = vadd.f32 %v729, %v1087
        %v1246 = vadd.f32 %v734, %v1092
        %v1247 = vadd.f32 %v739, %v1097
        %v1248 = vadd.f32 %v744, %v1102
        %v1249 = vadd.f32 %v749, %v1107
        %v1250 = vadd.f32 %v754, %v1112
        %v1251 = vadd.f32 %v759, %v1117
        %v1252 = vadd.f32 %v764, %v1122
        %v1253 = vadd.f32 %v769, %v1127
        %v1254 = vadd.f32 %v774, %v1132
        %v1255 = vadd.f32 %v779, %v1137
        %v1256 = vadd.f32 %v784, %v1142
        %v1257 = vadd.f32 %v789, %v1147
        %v1258 = vadd.f32 %v794, %v1152
        %v1259 = vadd.f32 %v799, %v1157
        %v1260 = vadd.f32 %v804, %v1162
        %v1261 = vadd.f32 %v809, %v1167
        %v1262 = vadd.f32 %v814, %v1172
        %v1263 = vadd.f32 %v819, %v1177
        %v1264 = vadd.f32 %v824, %v1182
        %v1265 = vadd.f32 %v829, %v1187
        %v1266 = vadd.f32 %v834, %v1192
        %v1267 = vadd.f32 %v839, %v1197
        %v1268 = vadd.f32 %v844, %v1202
        %v1269 = vadd.f32 %v849, %v1207
        %v1270 = vadd.f32 %v854, %v1212
        %v1271 = vadd.f32 %v859, %v1217
        %v1272 = vadd.f32 %v864, %v1222
        %v1273 = vadd.f32 %v869, %v1227
        %v1274 = vadd.f32 %v874, %v1232
        %v1275 = vadd.f32 %v879, %v1237
        %v1276 = vadd.f32 %v884, %v1242
        %s1277 = scalar_lea.vmem %s169, 24
        %v1278 = vld [vmem:[%s1277] sm:$0xff]
        %v1279 = vld [vmem:[%s1277 + $0x8] sm:$0xff]
        %v1280 = vld [vmem:[%s1277 + $0x18] sm:$0xff]
        %v1281 = vld [vmem:[%s1277 + $0x20] sm:$0xff]
        %v1282 = vld [vmem:[%s1277 + $0x30] sm:$0xff]
        %v1283 = vld [vmem:[%s1277 + $0x38] sm:$0xff]
        %v1284 = vld [vmem:[%s1277 + $0x48] sm:$0xff]
        %v1285 = vld [vmem:[%s1277 + $0x50] sm:$0xff]
        %v1286 = vld [vmem:[%s1277 + $0x60] sm:$0xff]
        %v1287 = vld [vmem:[%s1277 + $0x68] sm:$0xff]
        %v1288 = vld [vmem:[%s1277 + $0x78] sm:$0xff]
        %v1289 = vld [vmem:[%s1277 + $0x80] sm:$0xff]
        %v1290 = vld [vmem:[%s1277 + $0x90] sm:$0xff]
        %v1291 = vld [vmem:[%s1277 + $0x98] sm:$0xff]
        %v1292 = vld [vmem:[%s1277 + $0xa8] sm:$0xff]
        %v1293 = vld [vmem:[%s1277 + $0xb0] sm:$0xff]
        %v1294 = vld [vmem:[%s1277 + $0xc0] sm:$0xff]
        %v1295 = vld [vmem:[%s1277 + $0xc8] sm:$0xff]
        %v1296 = vld [vmem:[%s1277 + $0xd8] sm:$0xff]
        %v1297 = vld [vmem:[%s1277 + $0xe0] sm:$0xff]
        %v1298 = vld [vmem:[%s1277 + $0xf0] sm:$0xff]
        %v1299 = vld [vmem:[%s1277 + $0xf8] sm:$0xff]
        %v1300 = vld [vmem:[%s1277 + $0x108] sm:$0xff]
        %v1301 = vld [vmem:[%s1277 + $0x110] sm:$0xff]
        %v1302 = vld [vmem:[%s1277 + $0x120] sm:$0xff]
        %v1303 = vld [vmem:[%s1277 + $0x128] sm:$0xff]
        %v1304 = vld [vmem:[%s1277 + $0x138] sm:$0xff]
        %v1305 = vld [vmem:[%s1277 + $0x140] sm:$0xff]
        %v1306 = vld [vmem:[%s1277 + $0x150] sm:$0xff]
        %v1307 = vld [vmem:[%s1277 + $0x158] sm:$0xff]
        %v1308 = vld [vmem:[%s1277 + $0x168] sm:$0xff]
        %v1309 = vld [vmem:[%s1277 + $0x170] sm:$0xff]
        %s1310 = scalar_lea.vmem %s1, 12
        %v1311 = vld [vmem:[%s1310] sm:$0xf]
        %v1313 = vsel %vm237, %v1278, 0
        %v1316 = vsel %vm237, %v1279, 0
        %v1319 = vsel %vm237, %v1280, 0
        %v1322 = vsel %vm237, %v1281, 0
        %v1325 = vsel %vm237, %v1282, 0
        %v1328 = vsel %vm237, %v1283, 0
        %v1331 = vsel %vm237, %v1284, 0
        %v1334 = vsel %vm237, %v1285, 0
        %v1337 = vsel %vm237, %v1286, 0
        %v1340 = vsel %vm237, %v1287, 0
        %v1343 = vsel %vm237, %v1288, 0
        %v1346 = vsel %vm237, %v1289, 0
        %v1349 = vsel %vm237, %v1290, 0
        %v1352 = vsel %vm237, %v1291, 0
        %v1355 = vsel %vm237, %v1292, 0
        %v1358 = vsel %vm237, %v1293, 0
        %v1361 = vsel %vm237, %v1294, 0
        %v1364 = vsel %vm237, %v1295, 0
        %v1367 = vsel %vm237, %v1296, 0
        %v1370 = vsel %vm237, %v1297, 0
        %v1373 = vsel %vm237, %v1298, 0
        %v1376 = vsel %vm237, %v1299, 0
        %v1379 = vsel %vm237, %v1300, 0
        %v1382 = vsel %vm237, %v1301, 0
        %v1385 = vsel %vm237, %v1302, 0
        %v1388 = vsel %vm237, %v1303, 0
        %v1391 = vsel %vm237, %v1304, 0
        %v1394 = vsel %vm237, %v1305, 0
        %v1397 = vsel %vm237, %v1306, 0
        %v1400 = vsel %vm237, %v1307, 0
        %v1403 = vsel %vm237, %v1308, 0
        %v1406 = vsel %vm237, %v1309, 0
        %v1409 = vsel %vm334, %v1311, 0
        %1411 = vmatprep.subr.mxu0 0.0
        %1412 = vmatpush1.msra.mxu0 0.0
        %1413 = vmatprep.subr.mxu0 0.0
        %1414 = vmatpush1.msra.mxu0 0.0
        %1415 = vmatprep.subr.mxu0 0.0
        %1416 = vmatpush1.msra.mxu0 0.0
        %1417 = vmatprep.subr.mxu0 0.0
        %1418 = vmatpush1.msra.mxu0 0.0
        %1419 = vmatprep.subr.mxu0 0.0
        %1420 = vmatpush1.msra.mxu0 0.0
        %1421 = vmatprep.subr.mxu0 0.0
        %1422 = vmatpush1.msra.mxu0 0.0
        %1423 = vmatprep.subr.mxu0 0.0
        %1424 = vmatpush1.msra.mxu0 0.0
        %1425 = vmatprep.subr.mxu0 0.0
        %1426 = vmatpush1.msra.mxu0 0.0
        %1427 = vmatprep.subr.mxu0 0.0
        %1428 = vmatpush1.msra.mxu0 0.0
        %1429 = vmatprep.subr.mxu0 0.0
        %1430 = vmatpush1.msra.mxu0 0.0
        %1431 = vmatprep.subr.mxu0 0.0
        %1432 = vmatpush1.msra.mxu0 0.0
        %1433 = vmatprep.subr.mxu0 0.0
        %1434 = vmatpush1.msra.mxu0 0.0
        %1435 = vmatprep.subr.mxu0 0.0
        %1436 = vmatpush1.msra.mxu0 0.0
        %1437 = vmatprep.subr.mxu0 0.0
        %1438 = vmatpush1.msra.mxu0 0.0
        %1439 = vmatprep.subr.mxu0 0.0
        %1440 = vmatpush1.msra.mxu0 0.0
        %1441 = vmatprep.subr.mxu0 0.0
        %1442 = vmatpush1.msra.mxu0 %v1409
        %1443 = vmatprep.subr.mxu0 0.0
        %1444 = vmatpush2.msra.mxu0 0.0
        %1445 = vmatprep.subr.mxu0 0.0
        %1446 = vmatpush2.msra.mxu0 0.0
        %1447 = vmatprep.subr.mxu0 0.0
        %1448 = vmatpush2.msra.mxu0 0.0
        %1449 = vmatprep.subr.mxu0 0.0
        %1450 = vmatpush2.msra.mxu0 0.0
        %1451 = vmatprep.subr.mxu0 0.0
        %1452 = vmatpush2.msra.mxu0 0.0
        %1453 = vmatprep.subr.mxu0 0.0
        %1454 = vmatpush2.msra.mxu0 0.0
        %1455 = vmatprep.subr.mxu0 0.0
        %1456 = vmatpush2.msra.mxu0 0.0
        %1457 = vmatprep.subr.mxu0 0.0
        %1458 = vmatpush2.msra.mxu0 0.0
        %1459 = vmatprep.subr.mxu0 0.0
        %1460 = vmatpush2.msra.mxu0 0.0
        %1461 = vmatprep.subr.mxu0 0.0
        %1462 = vmatpush2.msra.mxu0 0.0
        %1463 = vmatprep.subr.mxu0 0.0
        %1464 = vmatpush2.msra.mxu0 0.0
        %1465 = vmatprep.subr.mxu0 0.0
        %1466 = vmatpush2.msra.mxu0 0.0
        %1467 = vmatprep.subr.mxu0 0.0
        %1468 = vmatpush2.msra.mxu0 0.0
        %1469 = vmatprep.subr.mxu0 0.0
        %1470 = vmatpush2.msra.mxu0 0.0
        %1471 = vmatprep.subr.mxu0 0.0
        %1472 = vmatpush2.msra.mxu0 0.0
        %1473 = vmatprep.subr.mxu0 0.0
        %1474 = vmatpush2.msra.mxu0 0.0
        %1475 = vmatprep.mubr.f32.mxu0 0.0
        %1476 = vmatmul.mubr.f32.gmra.mxu0 %v1313
        %v1477 = vpop.f32.mrf.mxu0
        %v1478 = vadd.f32 0.0, %v1477
        %v1479 = vpop.f32.mrf.mxu0
        %1480 = vmatprep.mubr.f32.mxu0 0.0
        %1481 = vmatmul.mubr.f32.gmra.mxu0 %v1316
        %v1482 = vpop.f32.mrf.mxu0
        %v1483 = vadd.f32 0.0, %v1482
        %v1484 = vpop.f32.mrf.mxu0
        %1485 = vmatprep.mubr.f32.mxu0 0.0
        %1486 = vmatmul.mubr.f32.gmra.mxu0 %v1319
        %v1487 = vpop.f32.mrf.mxu0
        %v1488 = vadd.f32 0.0, %v1487
        %v1489 = vpop.f32.mrf.mxu0
        %1490 = vmatprep.mubr.f32.mxu0 0.0
        %1491 = vmatmul.mubr.f32.gmra.mxu0 %v1322
        %v1492 = vpop.f32.mrf.mxu0
        %v1493 = vadd.f32 0.0, %v1492
        %v1494 = vpop.f32.mrf.mxu0
        %1495 = vmatprep.mubr.f32.mxu0 0.0
        %1496 = vmatmul.mubr.f32.gmra.mxu0 %v1325
        %v1497 = vpop.f32.mrf.mxu0
        %v1498 = vadd.f32 0.0, %v1497
        %v1499 = vpop.f32.mrf.mxu0
        %1500 = vmatprep.mubr.f32.mxu0 0.0
        %1501 = vmatmul.mubr.f32.gmra.mxu0 %v1328
        %v1502 = vpop.f32.mrf.mxu0
        %v1503 = vadd.f32 0.0, %v1502
        %v1504 = vpop.f32.mrf.mxu0
        %1505 = vmatprep.mubr.f32.mxu0 0.0
        %1506 = vmatmul.mubr.f32.gmra.mxu0 %v1331
        %v1507 = vpop.f32.mrf.mxu0
        %v1508 = vadd.f32 0.0, %v1507
        %v1509 = vpop.f32.mrf.mxu0
        %1510 = vmatprep.mubr.f32.mxu0 0.0
        %1511 = vmatmul.mubr.f32.gmra.mxu0 %v1334
        %v1512 = vpop.f32.mrf.mxu0
        %v1513 = vadd.f32 0.0, %v1512
        %v1514 = vpop.f32.mrf.mxu0
        %1515 = vmatprep.mubr.f32.mxu0 0.0
        %1516 = vmatmul.mubr.f32.gmra.mxu0 %v1337
        %v1517 = vpop.f32.mrf.mxu0
        %v1518 = vadd.f32 0.0, %v1517
        %v1519 = vpop.f32.mrf.mxu0
        %1520 = vmatprep.mubr.f32.mxu0 0.0
        %1521 = vmatmul.mubr.f32.gmra.mxu0 %v1340
        %v1522 = vpop.f32.mrf.mxu0
        %v1523 = vadd.f32 0.0, %v1522
        %v1524 = vpop.f32.mrf.mxu0
        %1525 = vmatprep.mubr.f32.mxu0 0.0
        %1526 = vmatmul.mubr.f32.gmra.mxu0 %v1343
        %v1527 = vpop.f32.mrf.mxu0
        %v1528 = vadd.f32 0.0, %v1527
        %v1529 = vpop.f32.mrf.mxu0
        %1530 = vmatprep.mubr.f32.mxu0 0.0
        %1531 = vmatmul.mubr.f32.gmra.mxu0 %v1346
        %v1532 = vpop.f32.mrf.mxu0
        %v1533 = vadd.f32 0.0, %v1532
        %v1534 = vpop.f32.mrf.mxu0
        %1535 = vmatprep.mubr.f32.mxu0 0.0
        %1536 = vmatmul.mubr.f32.gmra.mxu0 %v1349
        %v1537 = vpop.f32.mrf.mxu0
        %v1538 = vadd.f32 0.0, %v1537
        %v1539 = vpop.f32.mrf.mxu0
        %1540 = vmatprep.mubr.f32.mxu0 0.0
        %1541 = vmatmul.mubr.f32.gmra.mxu0 %v1352
        %v1542 = vpop.f32.mrf.mxu0
        %v1543 = vadd.f32 0.0, %v1542
        %v1544 = vpop.f32.mrf.mxu0
        %1545 = vmatprep.mubr.f32.mxu0 0.0
        %1546 = vmatmul.mubr.f32.gmra.mxu0 %v1355
        %v1547 = vpop.f32.mrf.mxu0
        %v1548 = vadd.f32 0.0, %v1547
        %v1549 = vpop.f32.mrf.mxu0
        %1550 = vmatprep.mubr.f32.mxu0 0.0
        %1551 = vmatmul.mubr.f32.gmra.mxu0 %v1358
        %v1552 = vpop.f32.mrf.mxu0
        %v1553 = vadd.f32 0.0, %v1552
        %v1554 = vpop.f32.mrf.mxu0
        %1555 = vmatprep.mubr.f32.mxu0 0.0
        %1556 = vmatmul.mubr.f32.gmra.mxu0 %v1361
        %v1557 = vpop.f32.mrf.mxu0
        %v1558 = vadd.f32 0.0, %v1557
        %v1559 = vpop.f32.mrf.mxu0
        %1560 = vmatprep.mubr.f32.mxu0 0.0
        %1561 = vmatmul.mubr.f32.gmra.mxu0 %v1364
        %v1562 = vpop.f32.mrf.mxu0
        %v1563 = vadd.f32 0.0, %v1562
        %v1564 = vpop.f32.mrf.mxu0
        %1565 = vmatprep.mubr.f32.mxu0 0.0
        %1566 = vmatmul.mubr.f32.gmra.mxu0 %v1367
        %v1567 = vpop.f32.mrf.mxu0
        %v1568 = vadd.f32 0.0, %v1567
        %v1569 = vpop.f32.mrf.mxu0
        %1570 = vmatprep.mubr.f32.mxu0 0.0
        %1571 = vmatmul.mubr.f32.gmra.mxu0 %v1370
        %v1572 = vpop.f32.mrf.mxu0
        %v1573 = vadd.f32 0.0, %v1572
        %v1574 = vpop.f32.mrf.mxu0
        %1575 = vmatprep.mubr.f32.mxu0 0.0
        %1576 = vmatmul.mubr.f32.gmra.mxu0 %v1373
        %v1577 = vpop.f32.mrf.mxu0
        %v1578 = vadd.f32 0.0, %v1577
        %v1579 = vpop.f32.mrf.mxu0
        %1580 = vmatprep.mubr.f32.mxu0 0.0
        %1581 = vmatmul.mubr.f32.gmra.mxu0 %v1376
        %v1582 = vpop.f32.mrf.mxu0
        %v1583 = vadd.f32 0.0, %v1582
        %v1584 = vpop.f32.mrf.mxu0
        %1585 = vmatprep.mubr.f32.mxu0 0.0
        %1586 = vmatmul.mubr.f32.gmra.mxu0 %v1379
        %v1587 = vpop.f32.mrf.mxu0
        %v1588 = vadd.f32 0.0, %v1587
        %v1589 = vpop.f32.mrf.mxu0
        %1590 = vmatprep.mubr.f32.mxu0 0.0
        %1591 = vmatmul.mubr.f32.gmra.mxu0 %v1382
        %v1592 = vpop.f32.mrf.mxu0
        %v1593 = vadd.f32 0.0, %v1592
        %v1594 = vpop.f32.mrf.mxu0
        %1595 = vmatprep.mubr.f32.mxu0 0.0
        %1596 = vmatmul.mubr.f32.gmra.mxu0 %v1385
        %v1597 = vpop.f32.mrf.mxu0
        %v1598 = vadd.f32 0.0, %v1597
        %v1599 = vpop.f32.mrf.mxu0
        %1600 = vmatprep.mubr.f32.mxu0 0.0
        %1601 = vmatmul.mubr.f32.gmra.mxu0 %v1388
        %v1602 = vpop.f32.mrf.mxu0
        %v1603 = vadd.f32 0.0, %v1602
        %v1604 = vpop.f32.mrf.mxu0
        %1605 = vmatprep.mubr.f32.mxu0 0.0
        %1606 = vmatmul.mubr.f32.gmra.mxu0 %v1391
        %v1607 = vpop.f32.mrf.mxu0
        %v1608 = vadd.f32 0.0, %v1607
        %v1609 = vpop.f32.mrf.mxu0
        %1610 = vmatprep.mubr.f32.mxu0 0.0
        %1611 = vmatmul.mubr.f32.gmra.mxu0 %v1394
        %v1612 = vpop.f32.mrf.mxu0
        %v1613 = vadd.f32 0.0, %v1612
        %v1614 = vpop.f32.mrf.mxu0
        %1615 = vmatprep.mubr.f32.mxu0 0.0
        %1616 = vmatmul.mubr.f32.gmra.mxu0 %v1397
        %v1617 = vpop.f32.mrf.mxu0
        %v1618 = vadd.f32 0.0, %v1617
        %v1619 = vpop.f32.mrf.mxu0
        %1620 = vmatprep.mubr.f32.mxu0 0.0
        %1621 = vmatmul.mubr.f32.gmra.mxu0 %v1400
        %v1622 = vpop.f32.mrf.mxu0
        %v1623 = vadd.f32 0.0, %v1622
        %v1624 = vpop.f32.mrf.mxu0
        %1625 = vmatprep.mubr.f32.mxu0 0.0
        %1626 = vmatmul.mubr.f32.gmra.mxu0 %v1403
        %v1627 = vpop.f32.mrf.mxu0
        %v1628 = vadd.f32 0.0, %v1627
        %v1629 = vpop.f32.mrf.mxu0
        %1630 = vmatprep.mubr.f32.mxu0 0.0
        %1631 = vmatmul.mubr.f32.gmra.mxu0 %v1406
        %v1632 = vpop.f32.mrf.mxu0
        %v1633 = vadd.f32 0.0, %v1632
        %v1634 = vpop.f32.mrf.mxu0
        %1635 = vdwg.mxu0
        %v1636 = vadd.f32 %v1245, %v1478
        %v1637 = vadd.f32 %v1246, %v1483
        %v1638 = vadd.f32 %v1247, %v1488
        %v1639 = vadd.f32 %v1248, %v1493
        %v1640 = vadd.f32 %v1249, %v1498
        %v1641 = vadd.f32 %v1250, %v1503
        %v1642 = vadd.f32 %v1251, %v1508
        %v1643 = vadd.f32 %v1252, %v1513
        %v1644 = vadd.f32 %v1253, %v1518
        %v1645 = vadd.f32 %v1254, %v1523
        %v1646 = vadd.f32 %v1255, %v1528
        %v1647 = vadd.f32 %v1256, %v1533
        %v1648 = vadd.f32 %v1257, %v1538
        %v1649 = vadd.f32 %v1258, %v1543
        %v1650 = vadd.f32 %v1259, %v1548
        %v1651 = vadd.f32 %v1260, %v1553
        %v1652 = vadd.f32 %v1261, %v1558
        %v1653 = vadd.f32 %v1262, %v1563
        %v1654 = vadd.f32 %v1263, %v1568
        %v1655 = vadd.f32 %v1264, %v1573
        %v1656 = vadd.f32 %v1265, %v1578
        %v1657 = vadd.f32 %v1266, %v1583
        %v1658 = vadd.f32 %v1267, %v1588
        %v1659 = vadd.f32 %v1268, %v1593
        %v1660 = vadd.f32 %v1269, %v1598
        %v1661 = vadd.f32 %v1270, %v1603
        %v1662 = vadd.f32 %v1271, %v1608
        %v1663 = vadd.f32 %v1272, %v1613
        %v1664 = vadd.f32 %v1273, %v1618
        %v1665 = vadd.f32 %v1274, %v1623
        %v1666 = vadd.f32 %v1275, %v1628
        %v1667 = vadd.f32 %v1276, %v1633
        %v1668 = vld [vmem:[%s1277 + $0x1] sm:$0xff]
        %v1669 = vld [vmem:[%s1277 + $0x9] sm:$0xff]
        %v1670 = vld [vmem:[%s1277 + $0x19] sm:$0xff]
        %v1671 = vld [vmem:[%s1277 + $0x21] sm:$0xff]
        %v1672 = vld [vmem:[%s1277 + $0x31] sm:$0xff]
        %v1673 = vld [vmem:[%s1277 + $0x39] sm:$0xff]
        %v1674 = vld [vmem:[%s1277 + $0x49] sm:$0xff]
        %v1675 = vld [vmem:[%s1277 + $0x51] sm:$0xff]
        %v1676 = vld [vmem:[%s1277 + $0x61] sm:$0xff]
        %v1677 = vld [vmem:[%s1277 + $0x69] sm:$0xff]
        %v1678 = vld [vmem:[%s1277 + $0x79] sm:$0xff]
        %v1679 = vld [vmem:[%s1277 + $0x81] sm:$0xff]
        %v1680 = vld [vmem:[%s1277 + $0x91] sm:$0xff]
        %v1681 = vld [vmem:[%s1277 + $0x99] sm:$0xff]
        %v1682 = vld [vmem:[%s1277 + $0xa9] sm:$0xff]
        %v1683 = vld [vmem:[%s1277 + $0xb1] sm:$0xff]
        %v1684 = vld [vmem:[%s1277 + $0xc1] sm:$0xff]
        %v1685 = vld [vmem:[%s1277 + $0xc9] sm:$0xff]
        %v1686 = vld [vmem:[%s1277 + $0xd9] sm:$0xff]
        %v1687 = vld [vmem:[%s1277 + $0xe1] sm:$0xff]
        %v1688 = vld [vmem:[%s1277 + $0xf1] sm:$0xff]
        %v1689 = vld [vmem:[%s1277 + $0xf9] sm:$0xff]
        %v1690 = vld [vmem:[%s1277 + $0x109] sm:$0xff]
        %v1691 = vld [vmem:[%s1277 + $0x111] sm:$0xff]
        %v1692 = vld [vmem:[%s1277 + $0x121] sm:$0xff]
        %v1693 = vld [vmem:[%s1277 + $0x129] sm:$0xff]
        %v1694 = vld [vmem:[%s1277 + $0x139] sm:$0xff]
        %v1695 = vld [vmem:[%s1277 + $0x141] sm:$0xff]
        %v1696 = vld [vmem:[%s1277 + $0x151] sm:$0xff]
        %v1697 = vld [vmem:[%s1277 + $0x159] sm:$0xff]
        %v1698 = vld [vmem:[%s1277 + $0x169] sm:$0xff]
        %v1699 = vld [vmem:[%s1277 + $0x171] sm:$0xff]
        %s1700 = scalar_lea.vmem %s1, 16
        %v1701 = vld [vmem:[%s1700] sm:$0xf]
        %v1703 = vsel %vm237, %v1668, 0
        %v1706 = vsel %vm237, %v1669, 0
        %v1709 = vsel %vm237, %v1670, 0
        %v1712 = vsel %vm237, %v1671, 0
        %v1715 = vsel %vm237, %v1672, 0
        %v1718 = vsel %vm237, %v1673, 0
        %v1721 = vsel %vm237, %v1674, 0
        %v1724 = vsel %vm237, %v1675, 0
        %v1727 = vsel %vm237, %v1676, 0
        %v1730 = vsel %vm237, %v1677, 0
        %v1733 = vsel %vm237, %v1678, 0
        %v1736 = vsel %vm237, %v1679, 0
        %v1739 = vsel %vm237, %v1680, 0
        %v1742 = vsel %vm237, %v1681, 0
        %v1745 = vsel %vm237, %v1682, 0
        %v1748 = vsel %vm237, %v1683, 0
        %v1751 = vsel %vm237, %v1684, 0
        %v1754 = vsel %vm237, %v1685, 0
        %v1757 = vsel %vm237, %v1686, 0
        %v1760 = vsel %vm237, %v1687, 0
        %v1763 = vsel %vm237, %v1688, 0
        %v1766 = vsel %vm237, %v1689, 0
        %v1769 = vsel %vm237, %v1690, 0
        %v1772 = vsel %vm237, %v1691, 0
        %v1775 = vsel %vm237, %v1692, 0
        %v1778 = vsel %vm237, %v1693, 0
        %v1781 = vsel %vm237, %v1694, 0
        %v1784 = vsel %vm237, %v1695, 0
        %v1787 = vsel %vm237, %v1696, 0
        %v1790 = vsel %vm237, %v1697, 0
        %v1793 = vsel %vm237, %v1698, 0
        %v1796 = vsel %vm237, %v1699, 0
        %v1799 = vsel %vm334, %v1701, 0
        %1801 = vmatprep.subr.mxu0 0.0
        %1802 = vmatpush1.msra.mxu0 0.0
        %1803 = vmatprep.subr.mxu0 0.0
        %1804 = vmatpush1.msra.mxu0 0.0
        %1805 = vmatprep.subr.mxu0 0.0
        %1806 = vmatpush1.msra.mxu0 0.0
        %1807 = vmatprep.subr.mxu0 0.0
        %1808 = vmatpush1.msra.mxu0 0.0
        %1809 = vmatprep.subr.mxu0 0.0
        %1810 = vmatpush1.msra.mxu0 0.0
        %1811 = vmatprep.subr.mxu0 0.0
        %1812 = vmatpush1.msra.mxu0 0.0
        %1813 = vmatprep.subr.mxu0 0.0
        %1814 = vmatpush1.msra.mxu0 0.0
        %1815 = vmatprep.subr.mxu0 0.0
        %1816 = vmatpush1.msra.mxu0 0.0
        %1817 = vmatprep.subr.mxu0 0.0
        %1818 = vmatpush1.msra.mxu0 0.0
        %1819 = vmatprep.subr.mxu0 0.0
        %1820 = vmatpush1.msra.mxu0 0.0
        %1821 = vmatprep.subr.mxu0 0.0
        %1822 = vmatpush1.msra.mxu0 0.0
        %1823 = vmatprep.subr.mxu0 0.0
        %1824 = vmatpush1.msra.mxu0 0.0
        %1825 = vmatprep.subr.mxu0 0.0
        %1826 = vmatpush1.msra.mxu0 0.0
        %1827 = vmatprep.subr.mxu0 0.0
        %1828 = vmatpush1.msra.mxu0 0.0
        %1829 = vmatprep.subr.mxu0 0.0
        %1830 = vmatpush1.msra.mxu0 0.0
        %1831 = vmatprep.subr.mxu0 0.0
        %1832 = vmatpush1.msra.mxu0 %v1799
        %1833 = vmatprep.subr.mxu0 0.0
        %1834 = vmatpush2.msra.mxu0 0.0
        %1835 = vmatprep.subr.mxu0 0.0
        %1836 = vmatpush2.msra.mxu0 0.0
        %1837 = vmatprep.subr.mxu0 0.0
        %1838 = vmatpush2.msra.mxu0 0.0
        %1839 = vmatprep.subr.mxu0 0.0
        %1840 = vmatpush2.msra.mxu0 0.0
        %1841 = vmatprep.subr.mxu0 0.0
        %1842 = vmatpush2.msra.mxu0 0.0
        %1843 = vmatprep.subr.mxu0 0.0
        %1844 = vmatpush2.msra.mxu0 0.0
        %1845 = vmatprep.subr.mxu0 0.0
        %1846 = vmatpush2.msra.mxu0 0.0
        %1847 = vmatprep.subr.mxu0 0.0
        %1848 = vmatpush2.msra.mxu0 0.0
        %1849 = vmatprep.subr.mxu0 0.0
        %1850 = vmatpush2.msra.mxu0 0.0
        %1851 = vmatprep.subr.mxu0 0.0
        %1852 = vmatpush2.msra.mxu0 0.0
        %1853 = vmatprep.subr.mxu0 0.0
        %1854 = vmatpush2.msra.mxu0 0.0
        %1855 = vmatprep.subr.mxu0 0.0
        %1856 = vmatpush2.msra.mxu0 0.0
        %1857 = vmatprep.subr.mxu0 0.0
        %1858 = vmatpush2.msra.mxu0 0.0
        %1859 = vmatprep.subr.mxu0 0.0
        %1860 = vmatpush2.msra.mxu0 0.0
        %1861 = vmatprep.subr.mxu0 0.0
        %1862 = vmatpush2.msra.mxu0 0.0
        %1863 = vmatprep.subr.mxu0 0.0
        %1864 = vmatpush2.msra.mxu0 0.0
        %1865 = vmatprep.mubr.f32.mxu0 0.0
        %1866 = vmatmul.mubr.f32.gmra.mxu0 %v1703
        %v1867 = vpop.f32.mrf.mxu0
        %v1868 = vadd.f32 0.0, %v1867
        %v1869 = vpop.f32.mrf.mxu0
        %1870 = vmatprep.mubr.f32.mxu0 0.0
        %1871 = vmatmul.mubr.f32.gmra.mxu0 %v1706
        %v1872 = vpop.f32.mrf.mxu0
        %v1873 = vadd.f32 0.0, %v1872
        %v1874 = vpop.f32.mrf.mxu0
        %1875 = vmatprep.mubr.f32.mxu0 0.0
        %1876 = vmatmul.mubr.f32.gmra.mxu0 %v1709
        %v1877 = vpop.f32.mrf.mxu0
        %v1878 = vadd.f32 0.0, %v1877
        %v1879 = vpop.f32.mrf.mxu0
        %1880 = vmatprep.mubr.f32.mxu0 0.0
        %1881 = vmatmul.mubr.f32.gmra.mxu0 %v1712
        %v1882 = vpop.f32.mrf.mxu0
        %v1883 = vadd.f32 0.0, %v1882
        %v1884 = vpop.f32.mrf.mxu0
        %1885 = vmatprep.mubr.f32.mxu0 0.0
        %1886 = vmatmul.mubr.f32.gmra.mxu0 %v1715
        %v1887 = vpop.f32.mrf.mxu0
        %v1888 = vadd.f32 0.0, %v1887
        %v1889 = vpop.f32.mrf.mxu0
        %1890 = vmatprep.mubr.f32.mxu0 0.0
        %1891 = vmatmul.mubr.f32.gmra.mxu0 %v1718
        %v1892 = vpop.f32.mrf.mxu0
        %v1893 = vadd.f32 0.0, %v1892
        %v1894 = vpop.f32.mrf.mxu0
        %1895 = vmatprep.mubr.f32.mxu0 0.0
        %1896 = vmatmul.mubr.f32.gmra.mxu0 %v1721
        %v1897 = vpop.f32.mrf.mxu0
        %v1898 = vadd.f32 0.0, %v1897
        %v1899 = vpop.f32.mrf.mxu0
        %1900 = vmatprep.mubr.f32.mxu0 0.0
        %1901 = vmatmul.mubr.f32.gmra.mxu0 %v1724
        %v1902 = vpop.f32.mrf.mxu0
        %v1903 = vadd.f32 0.0, %v1902
        %v1904 = vpop.f32.mrf.mxu0
        %1905 = vmatprep.mubr.f32.mxu0 0.0
        %1906 = vmatmul.mubr.f32.gmra.mxu0 %v1727
        %v1907 = vpop.f32.mrf.mxu0
        %v1908 = vadd.f32 0.0, %v1907
        %v1909 = vpop.f32.mrf.mxu0
        %1910 = vmatprep.mubr.f32.mxu0 0.0
        %1911 = vmatmul.mubr.f32.gmra.mxu0 %v1730
        %v1912 = vpop.f32.mrf.mxu0
        %v1913 = vadd.f32 0.0, %v1912
        %v1914 = vpop.f32.mrf.mxu0
        %1915 = vmatprep.mubr.f32.mxu0 0.0
        %1916 = vmatmul.mubr.f32.gmra.mxu0 %v1733
        %v1917 = vpop.f32.mrf.mxu0
        %v1918 = vadd.f32 0.0, %v1917
        %v1919 = vpop.f32.mrf.mxu0
        %1920 = vmatprep.mubr.f32.mxu0 0.0
        %1921 = vmatmul.mubr.f32.gmra.mxu0 %v1736
        %v1922 = vpop.f32.mrf.mxu0
        %v1923 = vadd.f32 0.0, %v1922
        %v1924 = vpop.f32.mrf.mxu0
        %1925 = vmatprep.mubr.f32.mxu0 0.0
        %1926 = vmatmul.mubr.f32.gmra.mxu0 %v1739
        %v1927 = vpop.f32.mrf.mxu0
        %v1928 = vadd.f32 0.0, %v1927
        %v1929 = vpop.f32.mrf.mxu0
        %1930 = vmatprep.mubr.f32.mxu0 0.0
        %1931 = vmatmul.mubr.f32.gmra.mxu0 %v1742
        %v1932 = vpop.f32.mrf.mxu0
        %v1933 = vadd.f32 0.0, %v1932
        %v1934 = vpop.f32.mrf.mxu0
        %1935 = vmatprep.mubr.f32.mxu0 0.0
        %1936 = vmatmul.mubr.f32.gmra.mxu0 %v1745
        %v1937 = vpop.f32.mrf.mxu0
        %v1938 = vadd.f32 0.0, %v1937
        %v1939 = vpop.f32.mrf.mxu0
        %1940 = vmatprep.mubr.f32.mxu0 0.0
        %1941 = vmatmul.mubr.f32.gmra.mxu0 %v1748
        %v1942 = vpop.f32.mrf.mxu0
        %v1943 = vadd.f32 0.0, %v1942
        %v1944 = vpop.f32.mrf.mxu0
        %1945 = vmatprep.mubr.f32.mxu0 0.0
        %1946 = vmatmul.mubr.f32.gmra.mxu0 %v1751
        %v1947 = vpop.f32.mrf.mxu0
        %v1948 = vadd.f32 0.0, %v1947
        %v1949 = vpop.f32.mrf.mxu0
        %1950 = vmatprep.mubr.f32.mxu0 0.0
        %1951 = vmatmul.mubr.f32.gmra.mxu0 %v1754
        %v1952 = vpop.f32.mrf.mxu0
        %v1953 = vadd.f32 0.0, %v1952
        %v1954 = vpop.f32.mrf.mxu0
        %1955 = vmatprep.mubr.f32.mxu0 0.0
        %1956 = vmatmul.mubr.f32.gmra.mxu0 %v1757
        %v1957 = vpop.f32.mrf.mxu0
        %v1958 = vadd.f32 0.0, %v1957
        %v1959 = vpop.f32.mrf.mxu0
        %1960 = vmatprep.mubr.f32.mxu0 0.0
        %1961 = vmatmul.mubr.f32.gmra.mxu0 %v1760
        %v1962 = vpop.f32.mrf.mxu0
        %v1963 = vadd.f32 0.0, %v1962
        %v1964 = vpop.f32.mrf.mxu0
        %1965 = vmatprep.mubr.f32.mxu0 0.0
        %1966 = vmatmul.mubr.f32.gmra.mxu0 %v1763
        %v1967 = vpop.f32.mrf.mxu0
        %v1968 = vadd.f32 0.0, %v1967
        %v1969 = vpop.f32.mrf.mxu0
        %1970 = vmatprep.mubr.f32.mxu0 0.0
        %1971 = vmatmul.mubr.f32.gmra.mxu0 %v1766
        %v1972 = vpop.f32.mrf.mxu0
        %v1973 = vadd.f32 0.0, %v1972
        %v1974 = vpop.f32.mrf.mxu0
        %1975 = vmatprep.mubr.f32.mxu0 0.0
        %1976 = vmatmul.mubr.f32.gmra.mxu0 %v1769
        %v1977 = vpop.f32.mrf.mxu0
        %v1978 = vadd.f32 0.0, %v1977
        %v1979 = vpop.f32.mrf.mxu0
        %1980 = vmatprep.mubr.f32.mxu0 0.0
        %1981 = vmatmul.mubr.f32.gmra.mxu0 %v1772
        %v1982 = vpop.f32.mrf.mxu0
        %v1983 = vadd.f32 0.0, %v1982
        %v1984 = vpop.f32.mrf.mxu0
        %1985 = vmatprep.mubr.f32.mxu0 0.0
        %1986 = vmatmul.mubr.f32.gmra.mxu0 %v1775
        %v1987 = vpop.f32.mrf.mxu0
        %v1988 = vadd.f32 0.0, %v1987
        %v1989 = vpop.f32.mrf.mxu0
        %1990 = vmatprep.mubr.f32.mxu0 0.0
        %1991 = vmatmul.mubr.f32.gmra.mxu0 %v1778
        %v1992 = vpop.f32.mrf.mxu0
        %v1993 = vadd.f32 0.0, %v1992
        %v1994 = vpop.f32.mrf.mxu0
        %1995 = vmatprep.mubr.f32.mxu0 0.0
        %1996 = vmatmul.mubr.f32.gmra.mxu0 %v1781
        %v1997 = vpop.f32.mrf.mxu0
        %v1998 = vadd.f32 0.0, %v1997
        %v1999 = vpop.f32.mrf.mxu0
        %2000 = vmatprep.mubr.f32.mxu0 0.0
        %2001 = vmatmul.mubr.f32.gmra.mxu0 %v1784
        %v2002 = vpop.f32.mrf.mxu0
        %v2003 = vadd.f32 0.0, %v2002
        %v2004 = vpop.f32.mrf.mxu0
        %2005 = vmatprep.mubr.f32.mxu0 0.0
        %2006 = vmatmul.mubr.f32.gmra.mxu0 %v1787
        %v2007 = vpop.f32.mrf.mxu0
        %v2008 = vadd.f32 0.0, %v2007
        %v2009 = vpop.f32.mrf.mxu0
        %2010 = vmatprep.mubr.f32.mxu0 0.0
        %2011 = vmatmul.mubr.f32.gmra.mxu0 %v1790
        %v2012 = vpop.f32.mrf.mxu0
        %v2013 = vadd.f32 0.0, %v2012
        %v2014 = vpop.f32.mrf.mxu0
        %2015 = vmatprep.mubr.f32.mxu0 0.0
        %2016 = vmatmul.mubr.f32.gmra.mxu0 %v1793
        %v2017 = vpop.f32.mrf.mxu0
        %v2018 = vadd.f32 0.0, %v2017
        %v2019 = vpop.f32.mrf.mxu0
        %2020 = vmatprep.mubr.f32.mxu0 0.0
        %2021 = vmatmul.mubr.f32.gmra.mxu0 %v1796
        %v2022 = vpop.f32.mrf.mxu0
        %v2023 = vadd.f32 0.0, %v2022
        %v2024 = vpop.f32.mrf.mxu0
        %2025 = vdwg.mxu0
        %v2026 = vadd.f32 %v1636, %v1868
        %v2027 = vadd.f32 %v1637, %v1873
        %v2028 = vadd.f32 %v1638, %v1878
        %v2029 = vadd.f32 %v1639, %v1883
        %v2030 = vadd.f32 %v1640, %v1888
        %v2031 = vadd.f32 %v1641, %v1893
        %v2032 = vadd.f32 %v1642, %v1898
        %v2033 = vadd.f32 %v1643, %v1903
        %v2034 = vadd.f32 %v1644, %v1908
        %v2035 = vadd.f32 %v1645, %v1913
        %v2036 = vadd.f32 %v1646, %v1918
        %v2037 = vadd.f32 %v1647, %v1923
        %v2038 = vadd.f32 %v1648, %v1928
        %v2039 = vadd.f32 %v1649, %v1933
        %v2040 = vadd.f32 %v1650, %v1938
        %v2041 = vadd.f32 %v1651, %v1943
        %v2042 = vadd.f32 %v1652, %v1948
        %v2043 = vadd.f32 %v1653, %v1953
        %v2044 = vadd.f32 %v1654, %v1958
        %v2045 = vadd.f32 %v1655, %v1963
        %v2046 = vadd.f32 %v1656, %v1968
        %v2047 = vadd.f32 %v1657, %v1973
        %v2048 = vadd.f32 %v1658, %v1978
        %v2049 = vadd.f32 %v1659, %v1983
        %v2050 = vadd.f32 %v1660, %v1988
        %v2051 = vadd.f32 %v1661, %v1993
        %v2052 = vadd.f32 %v1662, %v1998
        %v2053 = vadd.f32 %v1663, %v2003
        %v2054 = vadd.f32 %v1664, %v2008
        %v2055 = vadd.f32 %v1665, %v2013
        %v2056 = vadd.f32 %v1666, %v2018
        %v2057 = vadd.f32 %v1667, %v2023
        %v2058 = vld [vmem:[%s1277 + $0x2] sm:$0xff]
        %v2059 = vld [vmem:[%s1277 + $0xa] sm:$0xff]
        %v2060 = vld [vmem:[%s1277 + $0x1a] sm:$0xff]
        %v2061 = vld [vmem:[%s1277 + $0x22] sm:$0xff]
        %v2062 = vld [vmem:[%s1277 + $0x32] sm:$0xff]
        %v2063 = vld [vmem:[%s1277 + $0x3a] sm:$0xff]
        %v2064 = vld [vmem:[%s1277 + $0x4a] sm:$0xff]
        %v2065 = vld [vmem:[%s1277 + $0x52] sm:$0xff]
        %v2066 = vld [vmem:[%s1277 + $0x62] sm:$0xff]
        %v2067 = vld [vmem:[%s1277 + $0x6a] sm:$0xff]
        %v2068 = vld [vmem:[%s1277 + $0x7a] sm:$0xff]
        %v2069 = vld [vmem:[%s1277 + $0x82] sm:$0xff]
        %v2070 = vld [vmem:[%s1277 + $0x92] sm:$0xff]
        %v2071 = vld [vmem:[%s1277 + $0x9a] sm:$0xff]
        %v2072 = vld [vmem:[%s1277 + $0xaa] sm:$0xff]
        %v2073 = vld [vmem:[%s1277 + $0xb2] sm:$0xff]
        %v2074 = vld [vmem:[%s1277 + $0xc2] sm:$0xff]
        %v2075 = vld [vmem:[%s1277 + $0xca] sm:$0xff]
        %v2076 = vld [vmem:[%s1277 + $0xda] sm:$0xff]
        %v2077 = vld [vmem:[%s1277 + $0xe2] sm:$0xff]
        %v2078 = vld [vmem:[%s1277 + $0xf2] sm:$0xff]
        %v2079 = vld [vmem:[%s1277 + $0xfa] sm:$0xff]
        %v2080 = vld [vmem:[%s1277 + $0x10a] sm:$0xff]
        %v2081 = vld [vmem:[%s1277 + $0x112] sm:$0xff]
        %v2082 = vld [vmem:[%s1277 + $0x122] sm:$0xff]
        %v2083 = vld [vmem:[%s1277 + $0x12a] sm:$0xff]
        %v2084 = vld [vmem:[%s1277 + $0x13a] sm:$0xff]
        %v2085 = vld [vmem:[%s1277 + $0x142] sm:$0xff]
        %v2086 = vld [vmem:[%s1277 + $0x152] sm:$0xff]
        %v2087 = vld [vmem:[%s1277 + $0x15a] sm:$0xff]
        %v2088 = vld [vmem:[%s1277 + $0x16a] sm:$0xff]
        %v2089 = vld [vmem:[%s1277 + $0x172] sm:$0xff]
        %s2090 = scalar_lea.vmem %s1, 20
        %v2091 = vld [vmem:[%s2090] sm:$0xf]
        %v2093 = vsel %vm237, %v2058, 0
        %v2096 = vsel %vm237, %v2059, 0
        %v2099 = vsel %vm237, %v2060, 0
        %v2102 = vsel %vm237, %v2061, 0
        %v2105 = vsel %vm237, %v2062, 0
        %v2108 = vsel %vm237, %v2063, 0
        %v2111 = vsel %vm237, %v2064, 0
        %v2114 = vsel %vm237, %v2065, 0
        %v2117 = vsel %vm237, %v2066, 0
        %v2120 = vsel %vm237, %v2067, 0
        %v2123 = vsel %vm237, %v2068, 0
        %v2126 = vsel %vm237, %v2069, 0
        %v2129 = vsel %vm237, %v2070, 0
        %v2132 = vsel %vm237, %v2071, 0
        %v2135 = vsel %vm237, %v2072, 0
        %v2138 = vsel %vm237, %v2073, 0
        %v2141 = vsel %vm237, %v2074, 0
        %v2144 = vsel %vm237, %v2075, 0
        %v2147 = vsel %vm237, %v2076, 0
        %v2150 = vsel %vm237, %v2077, 0
        %v2153 = vsel %vm237, %v2078, 0
        %v2156 = vsel %vm237, %v2079, 0
        %v2159 = vsel %vm237, %v2080, 0
        %v2162 = vsel %vm237, %v2081, 0
        %v2165 = vsel %vm237, %v2082, 0
        %v2168 = vsel %vm237, %v2083, 0
        %v2171 = vsel %vm237, %v2084, 0
        %v2174 = vsel %vm237, %v2085, 0
        %v2177 = vsel %vm237, %v2086, 0
        %v2180 = vsel %vm237, %v2087, 0
        %v2183 = vsel %vm237, %v2088, 0
        %v2186 = vsel %vm237, %v2089, 0
        %v2189 = vsel %vm334, %v2091, 0
        %2191 = vmatprep.subr.mxu0 0.0
        %2192 = vmatpush1.msra.mxu0 0.0
        %2193 = vmatprep.subr.mxu0 0.0
        %2194 = vmatpush1.msra.mxu0 0.0
        %2195 = vmatprep.subr.mxu0 0.0
        %2196 = vmatpush1.msra.mxu0 0.0
        %2197 = vmatprep.subr.mxu0 0.0
        %2198 = vmatpush1.msra.mxu0 0.0
        %2199 = vmatprep.subr.mxu0 0.0
        %2200 = vmatpush1.msra.mxu0 0.0
        %2201 = vmatprep.subr.mxu0 0.0
        %2202 = vmatpush1.msra.mxu0 0.0
        %2203 = vmatprep.subr.mxu0 0.0
        %2204 = vmatpush1.msra.mxu0 0.0
        %2205 = vmatprep.subr.mxu0 0.0
        %2206 = vmatpush1.msra.mxu0 0.0
        %2207 = vmatprep.subr.mxu0 0.0
        %2208 = vmatpush1.msra.mxu0 0.0
        %2209 = vmatprep.subr.mxu0 0.0
        %2210 = vmatpush1.msra.mxu0 0.0
        %2211 = vmatprep.subr.mxu0 0.0
        %2212 = vmatpush1.msra.mxu0 0.0
        %2213 = vmatprep.subr.mxu0 0.0
        %2214 = vmatpush1.msra.mxu0 0.0
        %2215 = vmatprep.subr.mxu0 0.0
        %2216 = vmatpush1.msra.mxu0 0.0
        %2217 = vmatprep.subr.mxu0 0.0
        %2218 = vmatpush1.msra.mxu0 0.0
        %2219 = vmatprep.subr.mxu0 0.0
        %2220 = vmatpush1.msra.mxu0 0.0
        %2221 = vmatprep.subr.mxu0 0.0
        %2222 = vmatpush1.msra.mxu0 %v2189
        %2223 = vmatprep.subr.mxu0 0.0
        %2224 = vmatpush2.msra.mxu0 0.0
        %2225 = vmatprep.subr.mxu0 0.0
        %2226 = vmatpush2.msra.mxu0 0.0
        %2227 = vmatprep.subr.mxu0 0.0
        %2228 = vmatpush2.msra.mxu0 0.0
        %2229 = vmatprep.subr.mxu0 0.0
        %2230 = vmatpush2.msra.mxu0 0.0
        %2231 = vmatprep.subr.mxu0 0.0
        %2232 = vmatpush2.msra.mxu0 0.0
        %2233 = vmatprep.subr.mxu0 0.0
        %2234 = vmatpush2.msra.mxu0 0.0
        %2235 = vmatprep.subr.mxu0 0.0
        %2236 = vmatpush2.msra.mxu0 0.0
        %2237 = vmatprep.subr.mxu0 0.0
        %2238 = vmatpush2.msra.mxu0 0.0
        %2239 = vmatprep.subr.mxu0 0.0
        %2240 = vmatpush2.msra.mxu0 0.0
        %2241 = vmatprep.subr.mxu0 0.0
        %2242 = vmatpush2.msra.mxu0 0.0
        %2243 = vmatprep.subr.mxu0 0.0
        %2244 = vmatpush2.msra.mxu0 0.0
        %2245 = vmatprep.subr.mxu0 0.0
        %2246 = vmatpush2.msra.mxu0 0.0
        %2247 = vmatprep.subr.mxu0 0.0
        %2248 = vmatpush2.msra.mxu0 0.0
        %2249 = vmatprep.subr.mxu0 0.0
        %2250 = vmatpush2.msra.mxu0 0.0
        %2251 = vmatprep.subr.mxu0 0.0
        %2252 = vmatpush2.msra.mxu0 0.0
        %2253 = vmatprep.subr.mxu0 0.0
        %2254 = vmatpush2.msra.mxu0 0.0
        %2255 = vmatprep.mubr.f32.mxu0 0.0
        %2256 = vmatmul.mubr.f32.gmra.mxu0 %v2093
        %v2257 = vpop.f32.mrf.mxu0
        %v2258 = vadd.f32 0.0, %v2257
        %v2259 = vpop.f32.mrf.mxu0
        %2260 = vmatprep.mubr.f32.mxu0 0.0
        %2261 = vmatmul.mubr.f32.gmra.mxu0 %v2096
        %v2262 = vpop.f32.mrf.mxu0
        %v2263 = vadd.f32 0.0, %v2262
        %v2264 = vpop.f32.mrf.mxu0
        %2265 = vmatprep.mubr.f32.mxu0 0.0
        %2266 = vmatmul.mubr.f32.gmra.mxu0 %v2099
        %v2267 = vpop.f32.mrf.mxu0
        %v2268 = vadd.f32 0.0, %v2267
        %v2269 = vpop.f32.mrf.mxu0
        %2270 = vmatprep.mubr.f32.mxu0 0.0
        %2271 = vmatmul.mubr.f32.gmra.mxu0 %v2102
        %v2272 = vpop.f32.mrf.mxu0
        %v2273 = vadd.f32 0.0, %v2272
        %v2274 = vpop.f32.mrf.mxu0
        %2275 = vmatprep.mubr.f32.mxu0 0.0
        %2276 = vmatmul.mubr.f32.gmra.mxu0 %v2105
        %v2277 = vpop.f32.mrf.mxu0
        %v2278 = vadd.f32 0.0, %v2277
        %v2279 = vpop.f32.mrf.mxu0
        %2280 = vmatprep.mubr.f32.mxu0 0.0
        %2281 = vmatmul.mubr.f32.gmra.mxu0 %v2108
        %v2282 = vpop.f32.mrf.mxu0
        %v2283 = vadd.f32 0.0, %v2282
        %v2284 = vpop.f32.mrf.mxu0
        %2285 = vmatprep.mubr.f32.mxu0 0.0
        %2286 = vmatmul.mubr.f32.gmra.mxu0 %v2111
        %v2287 = vpop.f32.mrf.mxu0
        %v2288 = vadd.f32 0.0, %v2287
        %v2289 = vpop.f32.mrf.mxu0
        %2290 = vmatprep.mubr.f32.mxu0 0.0
        %2291 = vmatmul.mubr.f32.gmra.mxu0 %v2114
        %v2292 = vpop.f32.mrf.mxu0
        %v2293 = vadd.f32 0.0, %v2292
        %v2294 = vpop.f32.mrf.mxu0
        %2295 = vmatprep.mubr.f32.mxu0 0.0
        %2296 = vmatmul.mubr.f32.gmra.mxu0 %v2117
        %v2297 = vpop.f32.mrf.mxu0
        %v2298 = vadd.f32 0.0, %v2297
        %v2299 = vpop.f32.mrf.mxu0
        %2300 = vmatprep.mubr.f32.mxu0 0.0
        %2301 = vmatmul.mubr.f32.gmra.mxu0 %v2120
        %v2302 = vpop.f32.mrf.mxu0
        %v2303 = vadd.f32 0.0, %v2302
        %v2304 = vpop.f32.mrf.mxu0
        %2305 = vmatprep.mubr.f32.mxu0 0.0
        %2306 = vmatmul.mubr.f32.gmra.mxu0 %v2123
        %v2307 = vpop.f32.mrf.mxu0
        %v2308 = vadd.f32 0.0, %v2307
        %v2309 = vpop.f32.mrf.mxu0
        %2310 = vmatprep.mubr.f32.mxu0 0.0
        %2311 = vmatmul.mubr.f32.gmra.mxu0 %v2126
        %v2312 = vpop.f32.mrf.mxu0
        %v2313 = vadd.f32 0.0, %v2312
        %v2314 = vpop.f32.mrf.mxu0
        %2315 = vmatprep.mubr.f32.mxu0 0.0
        %2316 = vmatmul.mubr.f32.gmra.mxu0 %v2129
        %v2317 = vpop.f32.mrf.mxu0
        %v2318 = vadd.f32 0.0, %v2317
        %v2319 = vpop.f32.mrf.mxu0
        %2320 = vmatprep.mubr.f32.mxu0 0.0
        %2321 = vmatmul.mubr.f32.gmra.mxu0 %v2132
        %v2322 = vpop.f32.mrf.mxu0
        %v2323 = vadd.f32 0.0, %v2322
        %v2324 = vpop.f32.mrf.mxu0
        %2325 = vmatprep.mubr.f32.mxu0 0.0
        %2326 = vmatmul.mubr.f32.gmra.mxu0 %v2135
        %v2327 = vpop.f32.mrf.mxu0
        %v2328 = vadd.f32 0.0, %v2327
        %v2329 = vpop.f32.mrf.mxu0
        %2330 = vmatprep.mubr.f32.mxu0 0.0
        %2331 = vmatmul.mubr.f32.gmra.mxu0 %v2138
        %v2332 = vpop.f32.mrf.mxu0
        %v2333 = vadd.f32 0.0, %v2332
        %v2334 = vpop.f32.mrf.mxu0
        %2335 = vmatprep.mubr.f32.mxu0 0.0
        %2336 = vmatmul.mubr.f32.gmra.mxu0 %v2141
        %v2337 = vpop.f32.mrf.mxu0
        %v2338 = vadd.f32 0.0, %v2337
        %v2339 = vpop.f32.mrf.mxu0
        %2340 = vmatprep.mubr.f32.mxu0 0.0
        %2341 = vmatmul.mubr.f32.gmra.mxu0 %v2144
        %v2342 = vpop.f32.mrf.mxu0
        %v2343 = vadd.f32 0.0, %v2342
        %v2344 = vpop.f32.mrf.mxu0
        %2345 = vmatprep.mubr.f32.mxu0 0.0
        %2346 = vmatmul.mubr.f32.gmra.mxu0 %v2147
        %v2347 = vpop.f32.mrf.mxu0
        %v2348 = vadd.f32 0.0, %v2347
        %v2349 = vpop.f32.mrf.mxu0
        %2350 = vmatprep.mubr.f32.mxu0 0.0
        %2351 = vmatmul.mubr.f32.gmra.mxu0 %v2150
        %v2352 = vpop.f32.mrf.mxu0
        %v2353 = vadd.f32 0.0, %v2352
        %v2354 = vpop.f32.mrf.mxu0
        %2355 = vmatprep.mubr.f32.mxu0 0.0
        %2356 = vmatmul.mubr.f32.gmra.mxu0 %v2153
        %v2357 = vpop.f32.mrf.mxu0
        %v2358 = vadd.f32 0.0, %v2357
        %v2359 = vpop.f32.mrf.mxu0
        %2360 = vmatprep.mubr.f32.mxu0 0.0
        %2361 = vmatmul.mubr.f32.gmra.mxu0 %v2156
        %v2362 = vpop.f32.mrf.mxu0
        %v2363 = vadd.f32 0.0, %v2362
        %v2364 = vpop.f32.mrf.mxu0
        %2365 = vmatprep.mubr.f32.mxu0 0.0
        %2366 = vmatmul.mubr.f32.gmra.mxu0 %v2159
        %v2367 = vpop.f32.mrf.mxu0
        %v2368 = vadd.f32 0.0, %v2367
        %v2369 = vpop.f32.mrf.mxu0
        %2370 = vmatprep.mubr.f32.mxu0 0.0
        %2371 = vmatmul.mubr.f32.gmra.mxu0 %v2162
        %v2372 = vpop.f32.mrf.mxu0
        %v2373 = vadd.f32 0.0, %v2372
        %v2374 = vpop.f32.mrf.mxu0
        %2375 = vmatprep.mubr.f32.mxu0 0.0
        %2376 = vmatmul.mubr.f32.gmra.mxu0 %v2165
        %v2377 = vpop.f32.mrf.mxu0
        %v2378 = vadd.f32 0.0, %v2377
        %v2379 = vpop.f32.mrf.mxu0
        %2380 = vmatprep.mubr.f32.mxu0 0.0
        %2381 = vmatmul.mubr.f32.gmra.mxu0 %v2168
        %v2382 = vpop.f32.mrf.mxu0
        %v2383 = vadd.f32 0.0, %v2382
        %v2384 = vpop.f32.mrf.mxu0
        %2385 = vmatprep.mubr.f32.mxu0 0.0
        %2386 = vmatmul.mubr.f32.gmra.mxu0 %v2171
        %v2387 = vpop.f32.mrf.mxu0
        %v2388 = vadd.f32 0.0, %v2387
        %v2389 = vpop.f32.mrf.mxu0
        %2390 = vmatprep.mubr.f32.mxu0 0.0
        %2391 = vmatmul.mubr.f32.gmra.mxu0 %v2174
        %v2392 = vpop.f32.mrf.mxu0
        %v2393 = vadd.f32 0.0, %v2392
        %v2394 = vpop.f32.mrf.mxu0
        %2395 = vmatprep.mubr.f32.mxu0 0.0
        %2396 = vmatmul.mubr.f32.gmra.mxu0 %v2177
        %v2397 = vpop.f32.mrf.mxu0
        %v2398 = vadd.f32 0.0, %v2397
        %v2399 = vpop.f32.mrf.mxu0
        %2400 = vmatprep.mubr.f32.mxu0 0.0
        %2401 = vmatmul.mubr.f32.gmra.mxu0 %v2180
        %v2402 = vpop.f32.mrf.mxu0
        %v2403 = vadd.f32 0.0, %v2402
        %v2404 = vpop.f32.mrf.mxu0
        %2405 = vmatprep.mubr.f32.mxu0 0.0
        %2406 = vmatmul.mubr.f32.gmra.mxu0 %v2183
        %v2407 = vpop.f32.mrf.mxu0
        %v2408 = vadd.f32 0.0, %v2407
        %v2409 = vpop.f32.mrf.mxu0
        %2410 = vmatprep.mubr.f32.mxu0 0.0
        %2411 = vmatmul.mubr.f32.gmra.mxu0 %v2186
        %v2412 = vpop.f32.mrf.mxu0
        %v2413 = vadd.f32 0.0, %v2412
        %v2414 = vpop.f32.mrf.mxu0
        %2415 = vdwg.mxu0
        %v2416 = vadd.f32 %v2026, %v2258
        %v2417 = vadd.f32 %v2027, %v2263
        %v2418 = vadd.f32 %v2028, %v2268
        %v2419 = vadd.f32 %v2029, %v2273
        %v2420 = vadd.f32 %v2030, %v2278
        %v2421 = vadd.f32 %v2031, %v2283
        %v2422 = vadd.f32 %v2032, %v2288
        %v2423 = vadd.f32 %v2033, %v2293
        %v2424 = vadd.f32 %v2034, %v2298
        %v2425 = vadd.f32 %v2035, %v2303
        %v2426 = vadd.f32 %v2036, %v2308
        %v2427 = vadd.f32 %v2037, %v2313
        %v2428 = vadd.f32 %v2038, %v2318
        %v2429 = vadd.f32 %v2039, %v2323
        %v2430 = vadd.f32 %v2040, %v2328
        %v2431 = vadd.f32 %v2041, %v2333
        %v2432 = vadd.f32 %v2042, %v2338
        %v2433 = vadd.f32 %v2043, %v2343
        %v2434 = vadd.f32 %v2044, %v2348
        %v2435 = vadd.f32 %v2045, %v2353
        %v2436 = vadd.f32 %v2046, %v2358
        %v2437 = vadd.f32 %v2047, %v2363
        %v2438 = vadd.f32 %v2048, %v2368
        %v2439 = vadd.f32 %v2049, %v2373
        %v2440 = vadd.f32 %v2050, %v2378
        %v2441 = vadd.f32 %v2051, %v2383
        %v2442 = vadd.f32 %v2052, %v2388
        %v2443 = vadd.f32 %v2053, %v2393
        %v2444 = vadd.f32 %v2054, %v2398
        %v2445 = vadd.f32 %v2055, %v2403
        %v2446 = vadd.f32 %v2056, %v2408
        %v2447 = vadd.f32 %v2057, %v2413
        %s2448 = scalar_lea.vmem %s169, 48
        %v2449 = vld [vmem:[%s2448] sm:$0xff]
        %v2450 = vld [vmem:[%s2448 + $0x8] sm:$0xff]
        %v2451 = vld [vmem:[%s2448 + $0x18] sm:$0xff]
        %v2452 = vld [vmem:[%s2448 + $0x20] sm:$0xff]
        %v2453 = vld [vmem:[%s2448 + $0x30] sm:$0xff]
        %v2454 = vld [vmem:[%s2448 + $0x38] sm:$0xff]
        %v2455 = vld [vmem:[%s2448 + $0x48] sm:$0xff]
        %v2456 = vld [vmem:[%s2448 + $0x50] sm:$0xff]
        %v2457 = vld [vmem:[%s2448 + $0x60] sm:$0xff]
        %v2458 = vld [vmem:[%s2448 + $0x68] sm:$0xff]
        %v2459 = vld [vmem:[%s2448 + $0x78] sm:$0xff]
        %v2460 = vld [vmem:[%s2448 + $0x80] sm:$0xff]
        %v2461 = vld [vmem:[%s2448 + $0x90] sm:$0xff]
        %v2462 = vld [vmem:[%s2448 + $0x98] sm:$0xff]
        %v2463 = vld [vmem:[%s2448 + $0xa8] sm:$0xff]
        %v2464 = vld [vmem:[%s2448 + $0xb0] sm:$0xff]
        %v2465 = vld [vmem:[%s2448 + $0xc0] sm:$0xff]
        %v2466 = vld [vmem:[%s2448 + $0xc8] sm:$0xff]
        %v2467 = vld [vmem:[%s2448 + $0xd8] sm:$0xff]
        %v2468 = vld [vmem:[%s2448 + $0xe0] sm:$0xff]
        %v2469 = vld [vmem:[%s2448 + $0xf0] sm:$0xff]
        %v2470 = vld [vmem:[%s2448 + $0xf8] sm:$0xff]
        %v2471 = vld [vmem:[%s2448 + $0x108] sm:$0xff]
        %v2472 = vld [vmem:[%s2448 + $0x110] sm:$0xff]
        %v2473 = vld [vmem:[%s2448 + $0x120] sm:$0xff]
        %v2474 = vld [vmem:[%s2448 + $0x128] sm:$0xff]
        %v2475 = vld [vmem:[%s2448 + $0x138] sm:$0xff]
        %v2476 = vld [vmem:[%s2448 + $0x140] sm:$0xff]
        %v2477 = vld [vmem:[%s2448 + $0x150] sm:$0xff]
        %v2478 = vld [vmem:[%s2448 + $0x158] sm:$0xff]
        %v2479 = vld [vmem:[%s2448 + $0x168] sm:$0xff]
        %v2480 = vld [vmem:[%s2448 + $0x170] sm:$0xff]
        %s2481 = scalar_lea.vmem %s1, 24
        %v2482 = vld [vmem:[%s2481] sm:$0xf]
        %v2484 = vsel %vm237, %v2449, 0
        %v2487 = vsel %vm237, %v2450, 0
        %v2490 = vsel %vm237, %v2451, 0
        %v2493 = vsel %vm237, %v2452, 0
        %v2496 = vsel %vm237, %v2453, 0
        %v2499 = vsel %vm237, %v2454, 0
        %v2502 = vsel %vm237, %v2455, 0
        %v2505 = vsel %vm237, %v2456, 0
        %v2508 = vsel %vm237, %v2457, 0
        %v2511 = vsel %vm237, %v2458, 0
        %v2514 = vsel %vm237, %v2459, 0
        %v2517 = vsel %vm237, %v2460, 0
        %v2520 = vsel %vm237, %v2461, 0
        %v2523 = vsel %vm237, %v2462, 0
        %v2526 = vsel %vm237, %v2463, 0
        %v2529 = vsel %vm237, %v2464, 0
        %v2532 = vsel %vm237, %v2465, 0
        %v2535 = vsel %vm237, %v2466, 0
        %v2538 = vsel %vm237, %v2467, 0
        %v2541 = vsel %vm237, %v2468, 0
        %v2544 = vsel %vm237, %v2469, 0
        %v2547 = vsel %vm237, %v2470, 0
        %v2550 = vsel %vm237, %v2471, 0
        %v2553 = vsel %vm237, %v2472, 0
        %v2556 = vsel %vm237, %v2473, 0
        %v2559 = vsel %vm237, %v2474, 0
        %v2562 = vsel %vm237, %v2475, 0
        %v2565 = vsel %vm237, %v2476, 0
        %v2568 = vsel %vm237, %v2477, 0
        %v2571 = vsel %vm237, %v2478, 0
        %v2574 = vsel %vm237, %v2479, 0
        %v2577 = vsel %vm237, %v2480, 0
        %v2580 = vsel %vm334, %v2482, 0
        %2582 = vmatprep.subr.mxu0 0.0
        %2583 = vmatpush1.msra.mxu0 0.0
        %2584 = vmatprep.subr.mxu0 0.0
        %2585 = vmatpush1.msra.mxu0 0.0
        %2586 = vmatprep.subr.mxu0 0.0
        %2587 = vmatpush1.msra.mxu0 0.0
        %2588 = vmatprep.subr.mxu0 0.0
        %2589 = vmatpush1.msra.mxu0 0.0
        %2590 = vmatprep.subr.mxu0 0.0
        %2591 = vmatpush1.msra.mxu0 0.0
        %2592 = vmatprep.subr.mxu0 0.0
        %2593 = vmatpush1.msra.mxu0 0.0
        %2594 = vmatprep.subr.mxu0 0.0
        %2595 = vmatpush1.msra.mxu0 0.0
        %2596 = vmatprep.subr.mxu0 0.0
        %2597 = vmatpush1.msra.mxu0 0.0
        %2598 = vmatprep.subr.mxu0 0.0
        %2599 = vmatpush1.msra.mxu0 0.0
        %2600 = vmatprep.subr.mxu0 0.0
        %2601 = vmatpush1.msra.mxu0 0.0
        %2602 = vmatprep.subr.mxu0 0.0
        %2603 = vmatpush1.msra.mxu0 0.0
        %2604 = vmatprep.subr.mxu0 0.0
        %2605 = vmatpush1.msra.mxu0 0.0
        %2606 = vmatprep.subr.mxu0 0.0
        %2607 = vmatpush1.msra.mxu0 0.0
        %2608 = vmatprep.subr.mxu0 0.0
        %2609 = vmatpush1.msra.mxu0 0.0
        %2610 = vmatprep.subr.mxu0 0.0
        %2611 = vmatpush1.msra.mxu0 0.0
        %2612 = vmatprep.subr.mxu0 0.0
        %2613 = vmatpush1.msra.mxu0 %v2580
        %2614 = vmatprep.subr.mxu0 0.0
        %2615 = vmatpush2.msra.mxu0 0.0
        %2616 = vmatprep.subr.mxu0 0.0
        %2617 = vmatpush2.msra.mxu0 0.0
        %2618 = vmatprep.subr.mxu0 0.0
        %2619 = vmatpush2.msra.mxu0 0.0
        %2620 = vmatprep.subr.mxu0 0.0
        %2621 = vmatpush2.msra.mxu0 0.0
        %2622 = vmatprep.subr.mxu0 0.0
        %2623 = vmatpush2.msra.mxu0 0.0
        %2624 = vmatprep.subr.mxu0 0.0
        %2625 = vmatpush2.msra.mxu0 0.0
        %2626 = vmatprep.subr.mxu0 0.0
        %2627 = vmatpush2.msra.mxu0 0.0
        %2628 = vmatprep.subr.mxu0 0.0
        %2629 = vmatpush2.msra.mxu0 0.0
        %2630 = vmatprep.subr.mxu0 0.0
        %2631 = vmatpush2.msra.mxu0 0.0
        %2632 = vmatprep.subr.mxu0 0.0
        %2633 = vmatpush2.msra.mxu0 0.0
        %2634 = vmatprep.subr.mxu0 0.0
        %2635 = vmatpush2.msra.mxu0 0.0
        %2636 = vmatprep.subr.mxu0 0.0
        %2637 = vmatpush2.msra.mxu0 0.0
        %2638 = vmatprep.subr.mxu0 0.0
        %2639 = vmatpush2.msra.mxu0 0.0
        %2640 = vmatprep.subr.mxu0 0.0
        %2641 = vmatpush2.msra.mxu0 0.0
        %2642 = vmatprep.subr.mxu0 0.0
        %2643 = vmatpush2.msra.mxu0 0.0
        %2644 = vmatprep.subr.mxu0 0.0
        %2645 = vmatpush2.msra.mxu0 0.0
        %2646 = vmatprep.mubr.f32.mxu0 0.0
        %2647 = vmatmul.mubr.f32.gmra.mxu0 %v2484
        %v2648 = vpop.f32.mrf.mxu0
        %v2649 = vadd.f32 0.0, %v2648
        %v2650 = vpop.f32.mrf.mxu0
        %2651 = vmatprep.mubr.f32.mxu0 0.0
        %2652 = vmatmul.mubr.f32.gmra.mxu0 %v2487
        %v2653 = vpop.f32.mrf.mxu0
        %v2654 = vadd.f32 0.0, %v2653
        %v2655 = vpop.f32.mrf.mxu0
        %2656 = vmatprep.mubr.f32.mxu0 0.0
        %2657 = vmatmul.mubr.f32.gmra.mxu0 %v2490
        %v2658 = vpop.f32.mrf.mxu0
        %v2659 = vadd.f32 0.0, %v2658
        %v2660 = vpop.f32.mrf.mxu0
        %2661 = vmatprep.mubr.f32.mxu0 0.0
        %2662 = vmatmul.mubr.f32.gmra.mxu0 %v2493
        %v2663 = vpop.f32.mrf.mxu0
        %v2664 = vadd.f32 0.0, %v2663
        %v2665 = vpop.f32.mrf.mxu0
        %2666 = vmatprep.mubr.f32.mxu0 0.0
        %2667 = vmatmul.mubr.f32.gmra.mxu0 %v2496
        %v2668 = vpop.f32.mrf.mxu0
        %v2669 = vadd.f32 0.0, %v2668
        %v2670 = vpop.f32.mrf.mxu0
        %2671 = vmatprep.mubr.f32.mxu0 0.0
        %2672 = vmatmul.mubr.f32.gmra.mxu0 %v2499
        %v2673 = vpop.f32.mrf.mxu0
        %v2674 = vadd.f32 0.0, %v2673
        %v2675 = vpop.f32.mrf.mxu0
        %2676 = vmatprep.mubr.f32.mxu0 0.0
        %2677 = vmatmul.mubr.f32.gmra.mxu0 %v2502
        %v2678 = vpop.f32.mrf.mxu0
        %v2679 = vadd.f32 0.0, %v2678
        %v2680 = vpop.f32.mrf.mxu0
        %2681 = vmatprep.mubr.f32.mxu0 0.0
        %2682 = vmatmul.mubr.f32.gmra.mxu0 %v2505
        %v2683 = vpop.f32.mrf.mxu0
        %v2684 = vadd.f32 0.0, %v2683
        %v2685 = vpop.f32.mrf.mxu0
        %2686 = vmatprep.mubr.f32.mxu0 0.0
        %2687 = vmatmul.mubr.f32.gmra.mxu0 %v2508
        %v2688 = vpop.f32.mrf.mxu0
        %v2689 = vadd.f32 0.0, %v2688
        %v2690 = vpop.f32.mrf.mxu0
        %2691 = vmatprep.mubr.f32.mxu0 0.0
        %2692 = vmatmul.mubr.f32.gmra.mxu0 %v2511
        %v2693 = vpop.f32.mrf.mxu0
        %v2694 = vadd.f32 0.0, %v2693
        %v2695 = vpop.f32.mrf.mxu0
        %2696 = vmatprep.mubr.f32.mxu0 0.0
        %2697 = vmatmul.mubr.f32.gmra.mxu0 %v2514
        %v2698 = vpop.f32.mrf.mxu0
        %v2699 = vadd.f32 0.0, %v2698
        %v2700 = vpop.f32.mrf.mxu0
        %2701 = vmatprep.mubr.f32.mxu0 0.0
        %2702 = vmatmul.mubr.f32.gmra.mxu0 %v2517
        %v2703 = vpop.f32.mrf.mxu0
        %v2704 = vadd.f32 0.0, %v2703
        %v2705 = vpop.f32.mrf.mxu0
        %2706 = vmatprep.mubr.f32.mxu0 0.0
        %2707 = vmatmul.mubr.f32.gmra.mxu0 %v2520
        %v2708 = vpop.f32.mrf.mxu0
        %v2709 = vadd.f32 0.0, %v2708
        %v2710 = vpop.f32.mrf.mxu0
        %2711 = vmatprep.mubr.f32.mxu0 0.0
        %2712 = vmatmul.mubr.f32.gmra.mxu0 %v2523
        %v2713 = vpop.f32.mrf.mxu0
        %v2714 = vadd.f32 0.0, %v2713
        %v2715 = vpop.f32.mrf.mxu0
        %2716 = vmatprep.mubr.f32.mxu0 0.0
        %2717 = vmatmul.mubr.f32.gmra.mxu0 %v2526
        %v2718 = vpop.f32.mrf.mxu0
        %v2719 = vadd.f32 0.0, %v2718
        %v2720 = vpop.f32.mrf.mxu0
        %2721 = vmatprep.mubr.f32.mxu0 0.0
        %2722 = vmatmul.mubr.f32.gmra.mxu0 %v2529
        %v2723 = vpop.f32.mrf.mxu0
        %v2724 = vadd.f32 0.0, %v2723
        %v2725 = vpop.f32.mrf.mxu0
        %2726 = vmatprep.mubr.f32.mxu0 0.0
        %2727 = vmatmul.mubr.f32.gmra.mxu0 %v2532
        %v2728 = vpop.f32.mrf.mxu0
        %v2729 = vadd.f32 0.0, %v2728
        %v2730 = vpop.f32.mrf.mxu0
        %2731 = vmatprep.mubr.f32.mxu0 0.0
        %2732 = vmatmul.mubr.f32.gmra.mxu0 %v2535
        %v2733 = vpop.f32.mrf.mxu0
        %v2734 = vadd.f32 0.0, %v2733
        %v2735 = vpop.f32.mrf.mxu0
        %2736 = vmatprep.mubr.f32.mxu0 0.0
        %2737 = vmatmul.mubr.f32.gmra.mxu0 %v2538
        %v2738 = vpop.f32.mrf.mxu0
        %v2739 = vadd.f32 0.0, %v2738
        %v2740 = vpop.f32.mrf.mxu0
        %2741 = vmatprep.mubr.f32.mxu0 0.0
        %2742 = vmatmul.mubr.f32.gmra.mxu0 %v2541
        %v2743 = vpop.f32.mrf.mxu0
        %v2744 = vadd.f32 0.0, %v2743
        %v2745 = vpop.f32.mrf.mxu0
        %2746 = vmatprep.mubr.f32.mxu0 0.0
        %2747 = vmatmul.mubr.f32.gmra.mxu0 %v2544
        %v2748 = vpop.f32.mrf.mxu0
        %v2749 = vadd.f32 0.0, %v2748
        %v2750 = vpop.f32.mrf.mxu0
        %2751 = vmatprep.mubr.f32.mxu0 0.0
        %2752 = vmatmul.mubr.f32.gmra.mxu0 %v2547
        %v2753 = vpop.f32.mrf.mxu0
        %v2754 = vadd.f32 0.0, %v2753
        %v2755 = vpop.f32.mrf.mxu0
        %2756 = vmatprep.mubr.f32.mxu0 0.0
        %2757 = vmatmul.mubr.f32.gmra.mxu0 %v2550
        %v2758 = vpop.f32.mrf.mxu0
        %v2759 = vadd.f32 0.0, %v2758
        %v2760 = vpop.f32.mrf.mxu0
        %2761 = vmatprep.mubr.f32.mxu0 0.0
        %2762 = vmatmul.mubr.f32.gmra.mxu0 %v2553
        %v2763 = vpop.f32.mrf.mxu0
        %v2764 = vadd.f32 0.0, %v2763
        %v2765 = vpop.f32.mrf.mxu0
        %2766 = vmatprep.mubr.f32.mxu0 0.0
        %2767 = vmatmul.mubr.f32.gmra.mxu0 %v2556
        %v2768 = vpop.f32.mrf.mxu0
        %v2769 = vadd.f32 0.0, %v2768
        %v2770 = vpop.f32.mrf.mxu0
        %2771 = vmatprep.mubr.f32.mxu0 0.0
        %2772 = vmatmul.mubr.f32.gmra.mxu0 %v2559
        %v2773 = vpop.f32.mrf.mxu0
        %v2774 = vadd.f32 0.0, %v2773
        %v2775 = vpop.f32.mrf.mxu0
        %2776 = vmatprep.mubr.f32.mxu0 0.0
        %2777 = vmatmul.mubr.f32.gmra.mxu0 %v2562
        %v2778 = vpop.f32.mrf.mxu0
        %v2779 = vadd.f32 0.0, %v2778
        %v2780 = vpop.f32.mrf.mxu0
        %2781 = vmatprep.mubr.f32.mxu0 0.0
        %2782 = vmatmul.mubr.f32.gmra.mxu0 %v2565
        %v2783 = vpop.f32.mrf.mxu0
        %v2784 = vadd.f32 0.0, %v2783
        %v2785 = vpop.f32.mrf.mxu0
        %2786 = vmatprep.mubr.f32.mxu0 0.0
        %2787 = vmatmul.mubr.f32.gmra.mxu0 %v2568
        %v2788 = vpop.f32.mrf.mxu0
        %v2789 = vadd.f32 0.0, %v2788
        %v2790 = vpop.f32.mrf.mxu0
        %2791 = vmatprep.mubr.f32.mxu0 0.0
        %2792 = vmatmul.mubr.f32.gmra.mxu0 %v2571
        %v2793 = vpop.f32.mrf.mxu0
        %v2794 = vadd.f32 0.0, %v2793
        %v2795 = vpop.f32.mrf.mxu0
        %2796 = vmatprep.mubr.f32.mxu0 0.0
        %2797 = vmatmul.mubr.f32.gmra.mxu0 %v2574
        %v2798 = vpop.f32.mrf.mxu0
        %v2799 = vadd.f32 0.0, %v2798
        %v2800 = vpop.f32.mrf.mxu0
        %2801 = vmatprep.mubr.f32.mxu0 0.0
        %2802 = vmatmul.mubr.f32.gmra.mxu0 %v2577
        %v2803 = vpop.f32.mrf.mxu0
        %v2804 = vadd.f32 0.0, %v2803
        %v2805 = vpop.f32.mrf.mxu0
        %2806 = vdwg.mxu0
        %v2807 = vadd.f32 %v2416, %v2649
        %v2808 = vadd.f32 %v2417, %v2654
        %v2809 = vadd.f32 %v2418, %v2659
        %v2810 = vadd.f32 %v2419, %v2664
        %v2811 = vadd.f32 %v2420, %v2669
        %v2812 = vadd.f32 %v2421, %v2674
        %v2813 = vadd.f32 %v2422, %v2679
        %v2814 = vadd.f32 %v2423, %v2684
        %v2815 = vadd.f32 %v2424, %v2689
        %v2816 = vadd.f32 %v2425, %v2694
        %v2817 = vadd.f32 %v2426, %v2699
        %v2818 = vadd.f32 %v2427, %v2704
        %v2819 = vadd.f32 %v2428, %v2709
        %v2820 = vadd.f32 %v2429, %v2714
        %v2821 = vadd.f32 %v2430, %v2719
        %v2822 = vadd.f32 %v2431, %v2724
        %v2823 = vadd.f32 %v2432, %v2729
        %v2824 = vadd.f32 %v2433, %v2734
        %v2825 = vadd.f32 %v2434, %v2739
        %v2826 = vadd.f32 %v2435, %v2744
        %v2827 = vadd.f32 %v2436, %v2749
        %v2828 = vadd.f32 %v2437, %v2754
        %v2829 = vadd.f32 %v2438, %v2759
        %v2830 = vadd.f32 %v2439, %v2764
        %v2831 = vadd.f32 %v2440, %v2769
        %v2832 = vadd.f32 %v2441, %v2774
        %v2833 = vadd.f32 %v2442, %v2779
        %v2834 = vadd.f32 %v2443, %v2784
        %v2835 = vadd.f32 %v2444, %v2789
        %v2836 = vadd.f32 %v2445, %v2794
        %v2837 = vadd.f32 %v2446, %v2799
        %v2838 = vadd.f32 %v2447, %v2804
        %v2839 = vld [vmem:[%s2448 + $0x1] sm:$0xff]
        %v2840 = vld [vmem:[%s2448 + $0x9] sm:$0xff]
        %v2841 = vld [vmem:[%s2448 + $0x19] sm:$0xff]
        %v2842 = vld [vmem:[%s2448 + $0x21] sm:$0xff]
        %v2843 = vld [vmem:[%s2448 + $0x31] sm:$0xff]
        %v2844 = vld [vmem:[%s2448 + $0x39] sm:$0xff]
        %v2845 = vld [vmem:[%s2448 + $0x49] sm:$0xff]
        %v2846 = vld [vmem:[%s2448 + $0x51] sm:$0xff]
        %v2847 = vld [vmem:[%s2448 + $0x61] sm:$0xff]
        %v2848 = vld [vmem:[%s2448 + $0x69] sm:$0xff]
        %v2849 = vld [vmem:[%s2448 + $0x79] sm:$0xff]
        %v2850 = vld [vmem:[%s2448 + $0x81] sm:$0xff]
        %v2851 = vld [vmem:[%s2448 + $0x91] sm:$0xff]
        %v2852 = vld [vmem:[%s2448 + $0x99] sm:$0xff]
        %v2853 = vld [vmem:[%s2448 + $0xa9] sm:$0xff]
        %v2854 = vld [vmem:[%s2448 + $0xb1] sm:$0xff]
        %v2855 = vld [vmem:[%s2448 + $0xc1] sm:$0xff]
        %v2856 = vld [vmem:[%s2448 + $0xc9] sm:$0xff]
        %v2857 = vld [vmem:[%s2448 + $0xd9] sm:$0xff]
        %v2858 = vld [vmem:[%s2448 + $0xe1] sm:$0xff]
        %v2859 = vld [vmem:[%s2448 + $0xf1] sm:$0xff]
        %v2860 = vld [vmem:[%s2448 + $0xf9] sm:$0xff]
        %v2861 = vld [vmem:[%s2448 + $0x109] sm:$0xff]
        %v2862 = vld [vmem:[%s2448 + $0x111] sm:$0xff]
        %v2863 = vld [vmem:[%s2448 + $0x121] sm:$0xff]
        %v2864 = vld [vmem:[%s2448 + $0x129] sm:$0xff]
        %v2865 = vld [vmem:[%s2448 + $0x139] sm:$0xff]
        %v2866 = vld [vmem:[%s2448 + $0x141] sm:$0xff]
        %v2867 = vld [vmem:[%s2448 + $0x151] sm:$0xff]
        %v2868 = vld [vmem:[%s2448 + $0x159] sm:$0xff]
        %v2869 = vld [vmem:[%s2448 + $0x169] sm:$0xff]
        %v2870 = vld [vmem:[%s2448 + $0x171] sm:$0xff]
        %s2871 = scalar_lea.vmem %s1, 28
        %v2872 = vld [vmem:[%s2871] sm:$0xf]
        %v2874 = vsel %vm237, %v2839, 0
        %v2877 = vsel %vm237, %v2840, 0
        %v2880 = vsel %vm237, %v2841, 0
        %v2883 = vsel %vm237, %v2842, 0
        %v2886 = vsel %vm237, %v2843, 0
        %v2889 = vsel %vm237, %v2844, 0
        %v2892 = vsel %vm237, %v2845, 0
        %v2895 = vsel %vm237, %v2846, 0
        %v2898 = vsel %vm237, %v2847, 0
        %v2901 = vsel %vm237, %v2848, 0
        %v2904 = vsel %vm237, %v2849, 0
        %v2907 = vsel %vm237, %v2850, 0
        %v2910 = vsel %vm237, %v2851, 0
        %v2913 = vsel %vm237, %v2852, 0
        %v2916 = vsel %vm237, %v2853, 0
        %v2919 = vsel %vm237, %v2854, 0
        %v2922 = vsel %vm237, %v2855, 0
        %v2925 = vsel %vm237, %v2856, 0
        %v2928 = vsel %vm237, %v2857, 0
        %v2931 = vsel %vm237, %v2858, 0
        %v2934 = vsel %vm237, %v2859, 0
        %v2937 = vsel %vm237, %v2860, 0
        %v2940 = vsel %vm237, %v2861, 0
        %v2943 = vsel %vm237, %v2862, 0
        %v2946 = vsel %vm237, %v2863, 0
        %v2949 = vsel %vm237, %v2864, 0
        %v2952 = vsel %vm237, %v2865, 0
        %v2955 = vsel %vm237, %v2866, 0
        %v2958 = vsel %vm237, %v2867, 0
        %v2961 = vsel %vm237, %v2868, 0
        %v2964 = vsel %vm237, %v2869, 0
        %v2967 = vsel %vm237, %v2870, 0
        %v2970 = vsel %vm334, %v2872, 0
        %2972 = vmatprep.subr.mxu0 0.0
        %2973 = vmatpush1.msra.mxu0 0.0
        %2974 = vmatprep.subr.mxu0 0.0
        %2975 = vmatpush1.msra.mxu0 0.0
        %2976 = vmatprep.subr.mxu0 0.0
        %2977 = vmatpush1.msra.mxu0 0.0
        %2978 = vmatprep.subr.mxu0 0.0
        %2979 = vmatpush1.msra.mxu0 0.0
        %2980 = vmatprep.subr.mxu0 0.0
        %2981 = vmatpush1.msra.mxu0 0.0
        %2982 = vmatprep.subr.mxu0 0.0
        %2983 = vmatpush1.msra.mxu0 0.0
        %2984 = vmatprep.subr.mxu0 0.0
        %2985 = vmatpush1.msra.mxu0 0.0
        %2986 = vmatprep.subr.mxu0 0.0
        %2987 = vmatpush1.msra.mxu0 0.0
        %2988 = vmatprep.subr.mxu0 0.0
        %2989 = vmatpush1.msra.mxu0 0.0
        %2990 = vmatprep.subr.mxu0 0.0
        %2991 = vmatpush1.msra.mxu0 0.0
        %2992 = vmatprep.subr.mxu0 0.0
        %2993 = vmatpush1.msra.mxu0 0.0
        %2994 = vmatprep.subr.mxu0 0.0
        %2995 = vmatpush1.msra.mxu0 0.0
        %2996 = vmatprep.subr.mxu0 0.0
        %2997 = vmatpush1.msra.mxu0 0.0
        %2998 = vmatprep.subr.mxu0 0.0
        %2999 = vmatpush1.msra.mxu0 0.0
        %3000 = vmatprep.subr.mxu0 0.0
        %3001 = vmatpush1.msra.mxu0 0.0
        %3002 = vmatprep.subr.mxu0 0.0
        %3003 = vmatpush1.msra.mxu0 %v2970
        %3004 = vmatprep.subr.mxu0 0.0
        %3005 = vmatpush2.msra.mxu0 0.0
        %3006 = vmatprep.subr.mxu0 0.0
        %3007 = vmatpush2.msra.mxu0 0.0
        %3008 = vmatprep.subr.mxu0 0.0
        %3009 = vmatpush2.msra.mxu0 0.0
        %3010 = vmatprep.subr.mxu0 0.0
        %3011 = vmatpush2.msra.mxu0 0.0
        %3012 = vmatprep.subr.mxu0 0.0
        %3013 = vmatpush2.msra.mxu0 0.0
        %3014 = vmatprep.subr.mxu0 0.0
        %3015 = vmatpush2.msra.mxu0 0.0
        %3016 = vmatprep.subr.mxu0 0.0
        %3017 = vmatpush2.msra.mxu0 0.0
        %3018 = vmatprep.subr.mxu0 0.0
        %3019 = vmatpush2.msra.mxu0 0.0
        %3020 = vmatprep.subr.mxu0 0.0
        %3021 = vmatpush2.msra.mxu0 0.0
        %3022 = vmatprep.subr.mxu0 0.0
        %3023 = vmatpush2.msra.mxu0 0.0
        %3024 = vmatprep.subr.mxu0 0.0
        %3025 = vmatpush2.msra.mxu0 0.0
        %3026 = vmatprep.subr.mxu0 0.0
        %3027 = vmatpush2.msra.mxu0 0.0
        %3028 = vmatprep.subr.mxu0 0.0
        %3029 = vmatpush2.msra.mxu0 0.0
        %3030 = vmatprep.subr.mxu0 0.0
        %3031 = vmatpush2.msra.mxu0 0.0
        %3032 = vmatprep.subr.mxu0 0.0
        %3033 = vmatpush2.msra.mxu0 0.0
        %3034 = vmatprep.subr.mxu0 0.0
        %3035 = vmatpush2.msra.mxu0 0.0
        %3036 = vmatprep.mubr.f32.mxu0 0.0
        %3037 = vmatmul.mubr.f32.gmra.mxu0 %v2874
        %v3038 = vpop.f32.mrf.mxu0
        %v3039 = vadd.f32 0.0, %v3038
        %v3040 = vpop.f32.mrf.mxu0
        %3041 = vmatprep.mubr.f32.mxu0 0.0
        %3042 = vmatmul.mubr.f32.gmra.mxu0 %v2877
        %v3043 = vpop.f32.mrf.mxu0
        %v3044 = vadd.f32 0.0, %v3043
        %v3045 = vpop.f32.mrf.mxu0
        %3046 = vmatprep.mubr.f32.mxu0 0.0
        %3047 = vmatmul.mubr.f32.gmra.mxu0 %v2880
        %v3048 = vpop.f32.mrf.mxu0
        %v3049 = vadd.f32 0.0, %v3048
        %v3050 = vpop.f32.mrf.mxu0
        %3051 = vmatprep.mubr.f32.mxu0 0.0
        %3052 = vmatmul.mubr.f32.gmra.mxu0 %v2883
        %v3053 = vpop.f32.mrf.mxu0
        %v3054 = vadd.f32 0.0, %v3053
        %v3055 = vpop.f32.mrf.mxu0
        %3056 = vmatprep.mubr.f32.mxu0 0.0
        %3057 = vmatmul.mubr.f32.gmra.mxu0 %v2886
        %v3058 = vpop.f32.mrf.mxu0
        %v3059 = vadd.f32 0.0, %v3058
        %v3060 = vpop.f32.mrf.mxu0
        %3061 = vmatprep.mubr.f32.mxu0 0.0
        %3062 = vmatmul.mubr.f32.gmra.mxu0 %v2889
        %v3063 = vpop.f32.mrf.mxu0
        %v3064 = vadd.f32 0.0, %v3063
        %v3065 = vpop.f32.mrf.mxu0
        %3066 = vmatprep.mubr.f32.mxu0 0.0
        %3067 = vmatmul.mubr.f32.gmra.mxu0 %v2892
        %v3068 = vpop.f32.mrf.mxu0
        %v3069 = vadd.f32 0.0, %v3068
        %v3070 = vpop.f32.mrf.mxu0
        %3071 = vmatprep.mubr.f32.mxu0 0.0
        %3072 = vmatmul.mubr.f32.gmra.mxu0 %v2895
        %v3073 = vpop.f32.mrf.mxu0
        %v3074 = vadd.f32 0.0, %v3073
        %v3075 = vpop.f32.mrf.mxu0
        %3076 = vmatprep.mubr.f32.mxu0 0.0
        %3077 = vmatmul.mubr.f32.gmra.mxu0 %v2898
        %v3078 = vpop.f32.mrf.mxu0
        %v3079 = vadd.f32 0.0, %v3078
        %v3080 = vpop.f32.mrf.mxu0
        %3081 = vmatprep.mubr.f32.mxu0 0.0
        %3082 = vmatmul.mubr.f32.gmra.mxu0 %v2901
        %v3083 = vpop.f32.mrf.mxu0
        %v3084 = vadd.f32 0.0, %v3083
        %v3085 = vpop.f32.mrf.mxu0
        %3086 = vmatprep.mubr.f32.mxu0 0.0
        %3087 = vmatmul.mubr.f32.gmra.mxu0 %v2904
        %v3088 = vpop.f32.mrf.mxu0
        %v3089 = vadd.f32 0.0, %v3088
        %v3090 = vpop.f32.mrf.mxu0
        %3091 = vmatprep.mubr.f32.mxu0 0.0
        %3092 = vmatmul.mubr.f32.gmra.mxu0 %v2907
        %v3093 = vpop.f32.mrf.mxu0
        %v3094 = vadd.f32 0.0, %v3093
        %v3095 = vpop.f32.mrf.mxu0
        %3096 = vmatprep.mubr.f32.mxu0 0.0
        %3097 = vmatmul.mubr.f32.gmra.mxu0 %v2910
        %v3098 = vpop.f32.mrf.mxu0
        %v3099 = vadd.f32 0.0, %v3098
        %v3100 = vpop.f32.mrf.mxu0
        %3101 = vmatprep.mubr.f32.mxu0 0.0
        %3102 = vmatmul.mubr.f32.gmra.mxu0 %v2913
        %v3103 = vpop.f32.mrf.mxu0
        %v3104 = vadd.f32 0.0, %v3103
        %v3105 = vpop.f32.mrf.mxu0
        %3106 = vmatprep.mubr.f32.mxu0 0.0
        %3107 = vmatmul.mubr.f32.gmra.mxu0 %v2916
        %v3108 = vpop.f32.mrf.mxu0
        %v3109 = vadd.f32 0.0, %v3108
        %v3110 = vpop.f32.mrf.mxu0
        %3111 = vmatprep.mubr.f32.mxu0 0.0
        %3112 = vmatmul.mubr.f32.gmra.mxu0 %v2919
        %v3113 = vpop.f32.mrf.mxu0
        %v3114 = vadd.f32 0.0, %v3113
        %v3115 = vpop.f32.mrf.mxu0
        %3116 = vmatprep.mubr.f32.mxu0 0.0
        %3117 = vmatmul.mubr.f32.gmra.mxu0 %v2922
        %v3118 = vpop.f32.mrf.mxu0
        %v3119 = vadd.f32 0.0, %v3118
        %v3120 = vpop.f32.mrf.mxu0
        %3121 = vmatprep.mubr.f32.mxu0 0.0
        %3122 = vmatmul.mubr.f32.gmra.mxu0 %v2925
        %v3123 = vpop.f32.mrf.mxu0
        %v3124 = vadd.f32 0.0, %v3123
        %v3125 = vpop.f32.mrf.mxu0
        %3126 = vmatprep.mubr.f32.mxu0 0.0
        %3127 = vmatmul.mubr.f32.gmra.mxu0 %v2928
        %v3128 = vpop.f32.mrf.mxu0
        %v3129 = vadd.f32 0.0, %v3128
        %v3130 = vpop.f32.mrf.mxu0
        %3131 = vmatprep.mubr.f32.mxu0 0.0
        %3132 = vmatmul.mubr.f32.gmra.mxu0 %v2931
        %v3133 = vpop.f32.mrf.mxu0
        %v3134 = vadd.f32 0.0, %v3133
        %v3135 = vpop.f32.mrf.mxu0
        %3136 = vmatprep.mubr.f32.mxu0 0.0
        %3137 = vmatmul.mubr.f32.gmra.mxu0 %v2934
        %v3138 = vpop.f32.mrf.mxu0
        %v3139 = vadd.f32 0.0, %v3138
        %v3140 = vpop.f32.mrf.mxu0
        %3141 = vmatprep.mubr.f32.mxu0 0.0
        %3142 = vmatmul.mubr.f32.gmra.mxu0 %v2937
        %v3143 = vpop.f32.mrf.mxu0
        %v3144 = vadd.f32 0.0, %v3143
        %v3145 = vpop.f32.mrf.mxu0
        %3146 = vmatprep.mubr.f32.mxu0 0.0
        %3147 = vmatmul.mubr.f32.gmra.mxu0 %v2940
        %v3148 = vpop.f32.mrf.mxu0
        %v3149 = vadd.f32 0.0, %v3148
        %v3150 = vpop.f32.mrf.mxu0
        %3151 = vmatprep.mubr.f32.mxu0 0.0
        %3152 = vmatmul.mubr.f32.gmra.mxu0 %v2943
        %v3153 = vpop.f32.mrf.mxu0
        %v3154 = vadd.f32 0.0, %v3153
        %v3155 = vpop.f32.mrf.mxu0
        %3156 = vmatprep.mubr.f32.mxu0 0.0
        %3157 = vmatmul.mubr.f32.gmra.mxu0 %v2946
        %v3158 = vpop.f32.mrf.mxu0
        %v3159 = vadd.f32 0.0, %v3158
        %v3160 = vpop.f32.mrf.mxu0
        %3161 = vmatprep.mubr.f32.mxu0 0.0
        %3162 = vmatmul.mubr.f32.gmra.mxu0 %v2949
        %v3163 = vpop.f32.mrf.mxu0
        %v3164 = vadd.f32 0.0, %v3163
        %v3165 = vpop.f32.mrf.mxu0
        %3166 = vmatprep.mubr.f32.mxu0 0.0
        %3167 = vmatmul.mubr.f32.gmra.mxu0 %v2952
        %v3168 = vpop.f32.mrf.mxu0
        %v3169 = vadd.f32 0.0, %v3168
        %v3170 = vpop.f32.mrf.mxu0
        %3171 = vmatprep.mubr.f32.mxu0 0.0
        %3172 = vmatmul.mubr.f32.gmra.mxu0 %v2955
        %v3173 = vpop.f32.mrf.mxu0
        %v3174 = vadd.f32 0.0, %v3173
        %v3175 = vpop.f32.mrf.mxu0
        %3176 = vmatprep.mubr.f32.mxu0 0.0
        %3177 = vmatmul.mubr.f32.gmra.mxu0 %v2958
        %v3178 = vpop.f32.mrf.mxu0
        %v3179 = vadd.f32 0.0, %v3178
        %v3180 = vpop.f32.mrf.mxu0
        %3181 = vmatprep.mubr.f32.mxu0 0.0
        %3182 = vmatmul.mubr.f32.gmra.mxu0 %v2961
        %v3183 = vpop.f32.mrf.mxu0
        %v3184 = vadd.f32 0.0, %v3183
        %v3185 = vpop.f32.mrf.mxu0
        %3186 = vmatprep.mubr.f32.mxu0 0.0
        %3187 = vmatmul.mubr.f32.gmra.mxu0 %v2964
        %v3188 = vpop.f32.mrf.mxu0
        %v3189 = vadd.f32 0.0, %v3188
        %v3190 = vpop.f32.mrf.mxu0
        %3191 = vmatprep.mubr.f32.mxu0 0.0
        %3192 = vmatmul.mubr.f32.gmra.mxu0 %v2967
        %v3193 = vpop.f32.mrf.mxu0
        %v3194 = vadd.f32 0.0, %v3193
        %v3195 = vpop.f32.mrf.mxu0
        %3196 = vdwg.mxu0
        %v3197 = vadd.f32 %v2807, %v3039
        %v3198 = vadd.f32 %v2808, %v3044
        %v3199 = vadd.f32 %v2809, %v3049
        %v3200 = vadd.f32 %v2810, %v3054
        %v3201 = vadd.f32 %v2811, %v3059
        %v3202 = vadd.f32 %v2812, %v3064
        %v3203 = vadd.f32 %v2813, %v3069
        %v3204 = vadd.f32 %v2814, %v3074
        %v3205 = vadd.f32 %v2815, %v3079
        %v3206 = vadd.f32 %v2816, %v3084
        %v3207 = vadd.f32 %v2817, %v3089
        %v3208 = vadd.f32 %v2818, %v3094
        %v3209 = vadd.f32 %v2819, %v3099
        %v3210 = vadd.f32 %v2820, %v3104
        %v3211 = vadd.f32 %v2821, %v3109
        %v3212 = vadd.f32 %v2822, %v3114
        %v3213 = vadd.f32 %v2823, %v3119
        %v3214 = vadd.f32 %v2824, %v3124
        %v3215 = vadd.f32 %v2825, %v3129
        %v3216 = vadd.f32 %v2826, %v3134
        %v3217 = vadd.f32 %v2827, %v3139
        %v3218 = vadd.f32 %v2828, %v3144
        %v3219 = vadd.f32 %v2829, %v3149
        %v3220 = vadd.f32 %v2830, %v3154
        %v3221 = vadd.f32 %v2831, %v3159
        %v3222 = vadd.f32 %v2832, %v3164
        %v3223 = vadd.f32 %v2833, %v3169
        %v3224 = vadd.f32 %v2834, %v3174
        %v3225 = vadd.f32 %v2835, %v3179
        %v3226 = vadd.f32 %v2836, %v3184
        %v3227 = vadd.f32 %v2837, %v3189
        %v3228 = vadd.f32 %v2838, %v3194
        %v3229 = vld [vmem:[%s2448 + $0x2] sm:$0xff]
        %v3230 = vld [vmem:[%s2448 + $0xa] sm:$0xff]
        %v3231 = vld [vmem:[%s2448 + $0x1a] sm:$0xff]
        %v3232 = vld [vmem:[%s2448 + $0x22] sm:$0xff]
        %v3233 = vld [vmem:[%s2448 + $0x32] sm:$0xff]
        %v3234 = vld [vmem:[%s2448 + $0x3a] sm:$0xff]
        %v3235 = vld [vmem:[%s2448 + $0x4a] sm:$0xff]
        %v3236 = vld [vmem:[%s2448 + $0x52] sm:$0xff]
        %v3237 = vld [vmem:[%s2448 + $0x62] sm:$0xff]
        %v3238 = vld [vmem:[%s2448 + $0x6a] sm:$0xff]
        %v3239 = vld [vmem:[%s2448 + $0x7a] sm:$0xff]
        %v3240 = vld [vmem:[%s2448 + $0x82] sm:$0xff]
        %v3241 = vld [vmem:[%s2448 + $0x92] sm:$0xff]
        %v3242 = vld [vmem:[%s2448 + $0x9a] sm:$0xff]
        %v3243 = vld [vmem:[%s2448 + $0xaa] sm:$0xff]
        %v3244 = vld [vmem:[%s2448 + $0xb2] sm:$0xff]
        %v3245 = vld [vmem:[%s2448 + $0xc2] sm:$0xff]
        %v3246 = vld [vmem:[%s2448 + $0xca] sm:$0xff]
        %v3247 = vld [vmem:[%s2448 + $0xda] sm:$0xff]
        %v3248 = vld [vmem:[%s2448 + $0xe2] sm:$0xff]
        %v3249 = vld [vmem:[%s2448 + $0xf2] sm:$0xff]
        %v3250 = vld [vmem:[%s2448 + $0xfa] sm:$0xff]
        %v3251 = vld [vmem:[%s2448 + $0x10a] sm:$0xff]
        %v3252 = vld [vmem:[%s2448 + $0x112] sm:$0xff]
        %v3253 = vld [vmem:[%s2448 + $0x122] sm:$0xff]
        %v3254 = vld [vmem:[%s2448 + $0x12a] sm:$0xff]
        %v3255 = vld [vmem:[%s2448 + $0x13a] sm:$0xff]
        %v3256 = vld [vmem:[%s2448 + $0x142] sm:$0xff]
        %v3257 = vld [vmem:[%s2448 + $0x152] sm:$0xff]
        %v3258 = vld [vmem:[%s2448 + $0x15a] sm:$0xff]
        %v3259 = vld [vmem:[%s2448 + $0x16a] sm:$0xff]
        %v3260 = vld [vmem:[%s2448 + $0x172] sm:$0xff]
        %s3261 = scalar_lea.vmem %s1, 32
        %v3262 = vld [vmem:[%s3261] sm:$0xf]
        %v3264 = vsel %vm237, %v3229, 0
        %v3267 = vsel %vm237, %v3230, 0
        %v3270 = vsel %vm237, %v3231, 0
        %v3273 = vsel %vm237, %v3232, 0
        %v3276 = vsel %vm237, %v3233, 0
        %v3279 = vsel %vm237, %v3234, 0
        %v3282 = vsel %vm237, %v3235, 0
        %v3285 = vsel %vm237, %v3236, 0
        %v3288 = vsel %vm237, %v3237, 0
        %v3291 = vsel %vm237, %v3238, 0
        %v3294 = vsel %vm237, %v3239, 0
        %v3297 = vsel %vm237, %v3240, 0
        %v3300 = vsel %vm237, %v3241, 0
        %v3303 = vsel %vm237, %v3242, 0
        %v3306 = vsel %vm237, %v3243, 0
        %v3309 = vsel %vm237, %v3244, 0
        %v3312 = vsel %vm237, %v3245, 0
        %v3315 = vsel %vm237, %v3246, 0
        %v3318 = vsel %vm237, %v3247, 0
        %v3321 = vsel %vm237, %v3248, 0
        %v3324 = vsel %vm237, %v3249, 0
        %v3327 = vsel %vm237, %v3250, 0
        %v3330 = vsel %vm237, %v3251, 0
        %v3333 = vsel %vm237, %v3252, 0
        %v3336 = vsel %vm237, %v3253, 0
        %v3339 = vsel %vm237, %v3254, 0
        %v3342 = vsel %vm237, %v3255, 0
        %v3345 = vsel %vm237, %v3256, 0
        %v3348 = vsel %vm237, %v3257, 0
        %v3351 = vsel %vm237, %v3258, 0
        %v3354 = vsel %vm237, %v3259, 0
        %v3357 = vsel %vm237, %v3260, 0
        %v3360 = vsel %vm334, %v3262, 0
        %3362 = vmatprep.subr.mxu0 0.0
        %3363 = vmatpush1.msra.mxu0 0.0
        %3364 = vmatprep.subr.mxu0 0.0
        %3365 = vmatpush1.msra.mxu0 0.0
        %3366 = vmatprep.subr.mxu0 0.0
        %3367 = vmatpush1.msra.mxu0 0.0
        %3368 = vmatprep.subr.mxu0 0.0
        %3369 = vmatpush1.msra.mxu0 0.0
        %3370 = vmatprep.subr.mxu0 0.0
        %3371 = vmatpush1.msra.mxu0 0.0
        %3372 = vmatprep.subr.mxu0 0.0
        %3373 = vmatpush1.msra.mxu0 0.0
        %3374 = vmatprep.subr.mxu0 0.0
        %3375 = vmatpush1.msra.mxu0 0.0
        %3376 = vmatprep.subr.mxu0 0.0
        %3377 = vmatpush1.msra.mxu0 0.0
        %3378 = vmatprep.subr.mxu0 0.0
        %3379 = vmatpush1.msra.mxu0 0.0
        %3380 = vmatprep.subr.mxu0 0.0
        %3381 = vmatpush1.msra.mxu0 0.0
        %3382 = vmatprep.subr.mxu0 0.0
        %3383 = vmatpush1.msra.mxu0 0.0
        %3384 = vmatprep.subr.mxu0 0.0
        %3385 = vmatpush1.msra.mxu0 0.0
        %3386 = vmatprep.subr.mxu0 0.0
        %3387 = vmatpush1.msra.mxu0 0.0
        %3388 = vmatprep.subr.mxu0 0.0
        %3389 = vmatpush1.msra.mxu0 0.0
        %3390 = vmatprep.subr.mxu0 0.0
        %3391 = vmatpush1.msra.mxu0 0.0
        %3392 = vmatprep.subr.mxu0 0.0
        %3393 = vmatpush1.msra.mxu0 %v3360
        %3394 = vmatprep.subr.mxu0 0.0
        %3395 = vmatpush2.msra.mxu0 0.0
        %3396 = vmatprep.subr.mxu0 0.0
        %3397 = vmatpush2.msra.mxu0 0.0
        %3398 = vmatprep.subr.mxu0 0.0
        %3399 = vmatpush2.msra.mxu0 0.0
        %3400 = vmatprep.subr.mxu0 0.0
        %3401 = vmatpush2.msra.mxu0 0.0
        %3402 = vmatprep.subr.mxu0 0.0
        %3403 = vmatpush2.msra.mxu0 0.0
        %3404 = vmatprep.subr.mxu0 0.0
        %3405 = vmatpush2.msra.mxu0 0.0
        %3406 = vmatprep.subr.mxu0 0.0
        %3407 = vmatpush2.msra.mxu0 0.0
        %3408 = vmatprep.subr.mxu0 0.0
        %3409 = vmatpush2.msra.mxu0 0.0
        %3410 = vmatprep.subr.mxu0 0.0
        %3411 = vmatpush2.msra.mxu0 0.0
        %3412 = vmatprep.subr.mxu0 0.0
        %3413 = vmatpush2.msra.mxu0 0.0
        %3414 = vmatprep.subr.mxu0 0.0
        %3415 = vmatpush2.msra.mxu0 0.0
        %3416 = vmatprep.subr.mxu0 0.0
        %3417 = vmatpush2.msra.mxu0 0.0
        %3418 = vmatprep.subr.mxu0 0.0
        %3419 = vmatpush2.msra.mxu0 0.0
        %3420 = vmatprep.subr.mxu0 0.0
        %3421 = vmatpush2.msra.mxu0 0.0
        %3422 = vmatprep.subr.mxu0 0.0
        %3423 = vmatpush2.msra.mxu0 0.0
        %3424 = vmatprep.subr.mxu0 0.0
        %3425 = vmatpush2.msra.mxu0 0.0
        %3426 = vmatprep.mubr.f32.mxu0 0.0
        %3427 = vmatmul.mubr.f32.gmra.mxu0 %v3264
        %v3428 = vpop.f32.mrf.mxu0
        %v3429 = vadd.f32 0.0, %v3428
        %v3430 = vpop.f32.mrf.mxu0
        %3431 = vmatprep.mubr.f32.mxu0 0.0
        %3432 = vmatmul.mubr.f32.gmra.mxu0 %v3267
        %v3433 = vpop.f32.mrf.mxu0
        %v3434 = vadd.f32 0.0, %v3433
        %v3435 = vpop.f32.mrf.mxu0
        %3436 = vmatprep.mubr.f32.mxu0 0.0
        %3437 = vmatmul.mubr.f32.gmra.mxu0 %v3270
        %v3438 = vpop.f32.mrf.mxu0
        %v3439 = vadd.f32 0.0, %v3438
        %v3440 = vpop.f32.mrf.mxu0
        %3441 = vmatprep.mubr.f32.mxu0 0.0
        %3442 = vmatmul.mubr.f32.gmra.mxu0 %v3273
        %v3443 = vpop.f32.mrf.mxu0
        %v3444 = vadd.f32 0.0, %v3443
        %v3445 = vpop.f32.mrf.mxu0
        %3446 = vmatprep.mubr.f32.mxu0 0.0
        %3447 = vmatmul.mubr.f32.gmra.mxu0 %v3276
        %v3448 = vpop.f32.mrf.mxu0
        %v3449 = vadd.f32 0.0, %v3448
        %v3450 = vpop.f32.mrf.mxu0
        %3451 = vmatprep.mubr.f32.mxu0 0.0
        %3452 = vmatmul.mubr.f32.gmra.mxu0 %v3279
        %v3453 = vpop.f32.mrf.mxu0
        %v3454 = vadd.f32 0.0, %v3453
        %v3455 = vpop.f32.mrf.mxu0
        %3456 = vmatprep.mubr.f32.mxu0 0.0
        %3457 = vmatmul.mubr.f32.gmra.mxu0 %v3282
        %v3458 = vpop.f32.mrf.mxu0
        %v3459 = vadd.f32 0.0, %v3458
        %v3460 = vpop.f32.mrf.mxu0
        %3461 = vmatprep.mubr.f32.mxu0 0.0
        %3462 = vmatmul.mubr.f32.gmra.mxu0 %v3285
        %v3463 = vpop.f32.mrf.mxu0
        %v3464 = vadd.f32 0.0, %v3463
        %v3465 = vpop.f32.mrf.mxu0
        %3466 = vmatprep.mubr.f32.mxu0 0.0
        %3467 = vmatmul.mubr.f32.gmra.mxu0 %v3288
        %v3468 = vpop.f32.mrf.mxu0
        %v3469 = vadd.f32 0.0, %v3468
        %v3470 = vpop.f32.mrf.mxu0
        %3471 = vmatprep.mubr.f32.mxu0 0.0
        %3472 = vmatmul.mubr.f32.gmra.mxu0 %v3291
        %v3473 = vpop.f32.mrf.mxu0
        %v3474 = vadd.f32 0.0, %v3473
        %v3475 = vpop.f32.mrf.mxu0
        %3476 = vmatprep.mubr.f32.mxu0 0.0
        %3477 = vmatmul.mubr.f32.gmra.mxu0 %v3294
        %v3478 = vpop.f32.mrf.mxu0
        %v3479 = vadd.f32 0.0, %v3478
        %v3480 = vpop.f32.mrf.mxu0
        %3481 = vmatprep.mubr.f32.mxu0 0.0
        %3482 = vmatmul.mubr.f32.gmra.mxu0 %v3297
        %v3483 = vpop.f32.mrf.mxu0
        %v3484 = vadd.f32 0.0, %v3483
        %v3485 = vpop.f32.mrf.mxu0
        %3486 = vmatprep.mubr.f32.mxu0 0.0
        %3487 = vmatmul.mubr.f32.gmra.mxu0 %v3300
        %v3488 = vpop.f32.mrf.mxu0
        %v3489 = vadd.f32 0.0, %v3488
        %v3490 = vpop.f32.mrf.mxu0
        %3491 = vmatprep.mubr.f32.mxu0 0.0
        %3492 = vmatmul.mubr.f32.gmra.mxu0 %v3303
        %v3493 = vpop.f32.mrf.mxu0
        %v3494 = vadd.f32 0.0, %v3493
        %v3495 = vpop.f32.mrf.mxu0
        %3496 = vmatprep.mubr.f32.mxu0 0.0
        %3497 = vmatmul.mubr.f32.gmra.mxu0 %v3306
        %v3498 = vpop.f32.mrf.mxu0
        %v3499 = vadd.f32 0.0, %v3498
        %v3500 = vpop.f32.mrf.mxu0
        %3501 = vmatprep.mubr.f32.mxu0 0.0
        %3502 = vmatmul.mubr.f32.gmra.mxu0 %v3309
        %v3503 = vpop.f32.mrf.mxu0
        %v3504 = vadd.f32 0.0, %v3503
        %v3505 = vpop.f32.mrf.mxu0
        %3506 = vmatprep.mubr.f32.mxu0 0.0
        %3507 = vmatmul.mubr.f32.gmra.mxu0 %v3312
        %v3508 = vpop.f32.mrf.mxu0
        %v3509 = vadd.f32 0.0, %v3508
        %v3510 = vpop.f32.mrf.mxu0
        %3511 = vmatprep.mubr.f32.mxu0 0.0
        %3512 = vmatmul.mubr.f32.gmra.mxu0 %v3315
        %v3513 = vpop.f32.mrf.mxu0
        %v3514 = vadd.f32 0.0, %v3513
        %v3515 = vpop.f32.mrf.mxu0
        %3516 = vmatprep.mubr.f32.mxu0 0.0
        %3517 = vmatmul.mubr.f32.gmra.mxu0 %v3318
        %v3518 = vpop.f32.mrf.mxu0
        %v3519 = vadd.f32 0.0, %v3518
        %v3520 = vpop.f32.mrf.mxu0
        %3521 = vmatprep.mubr.f32.mxu0 0.0
        %3522 = vmatmul.mubr.f32.gmra.mxu0 %v3321
        %v3523 = vpop.f32.mrf.mxu0
        %v3524 = vadd.f32 0.0, %v3523
        %v3525 = vpop.f32.mrf.mxu0
        %3526 = vmatprep.mubr.f32.mxu0 0.0
        %3527 = vmatmul.mubr.f32.gmra.mxu0 %v3324
        %v3528 = vpop.f32.mrf.mxu0
        %v3529 = vadd.f32 0.0, %v3528
        %v3530 = vpop.f32.mrf.mxu0
        %3531 = vmatprep.mubr.f32.mxu0 0.0
        %3532 = vmatmul.mubr.f32.gmra.mxu0 %v3327
        %v3533 = vpop.f32.mrf.mxu0
        %v3534 = vadd.f32 0.0, %v3533
        %v3535 = vpop.f32.mrf.mxu0
        %3536 = vmatprep.mubr.f32.mxu0 0.0
        %3537 = vmatmul.mubr.f32.gmra.mxu0 %v3330
        %v3538 = vpop.f32.mrf.mxu0
        %v3539 = vadd.f32 0.0, %v3538
        %v3540 = vpop.f32.mrf.mxu0
        %3541 = vmatprep.mubr.f32.mxu0 0.0
        %3542 = vmatmul.mubr.f32.gmra.mxu0 %v3333
        %v3543 = vpop.f32.mrf.mxu0
        %v3544 = vadd.f32 0.0, %v3543
        %v3545 = vpop.f32.mrf.mxu0
        %3546 = vmatprep.mubr.f32.mxu0 0.0
        %3547 = vmatmul.mubr.f32.gmra.mxu0 %v3336
        %v3548 = vpop.f32.mrf.mxu0
        %v3549 = vadd.f32 0.0, %v3548
        %v3550 = vpop.f32.mrf.mxu0
        %3551 = vmatprep.mubr.f32.mxu0 0.0
        %3552 = vmatmul.mubr.f32.gmra.mxu0 %v3339
        %v3553 = vpop.f32.mrf.mxu0
        %v3554 = vadd.f32 0.0, %v3553
        %v3555 = vpop.f32.mrf.mxu0
        %3556 = vmatprep.mubr.f32.mxu0 0.0
        %3557 = vmatmul.mubr.f32.gmra.mxu0 %v3342
        %v3558 = vpop.f32.mrf.mxu0
        %v3559 = vadd.f32 0.0, %v3558
        %v3560 = vpop.f32.mrf.mxu0
        %3561 = vmatprep.mubr.f32.mxu0 0.0
        %3562 = vmatmul.mubr.f32.gmra.mxu0 %v3345
        %v3563 = vpop.f32.mrf.mxu0
        %v3564 = vadd.f32 0.0, %v3563
        %v3565 = vpop.f32.mrf.mxu0
        %3566 = vmatprep.mubr.f32.mxu0 0.0
        %3567 = vmatmul.mubr.f32.gmra.mxu0 %v3348
        %v3568 = vpop.f32.mrf.mxu0
        %v3569 = vadd.f32 0.0, %v3568
        %v3570 = vpop.f32.mrf.mxu0
        %3571 = vmatprep.mubr.f32.mxu0 0.0
        %3572 = vmatmul.mubr.f32.gmra.mxu0 %v3351
        %v3573 = vpop.f32.mrf.mxu0
        %v3574 = vadd.f32 0.0, %v3573
        %v3575 = vpop.f32.mrf.mxu0
        %3576 = vmatprep.mubr.f32.mxu0 0.0
        %3577 = vmatmul.mubr.f32.gmra.mxu0 %v3354
        %v3578 = vpop.f32.mrf.mxu0
        %v3579 = vadd.f32 0.0, %v3578
        %v3580 = vpop.f32.mrf.mxu0
        %3581 = vmatprep.mubr.f32.mxu0 0.0
        %3582 = vmatmul.mubr.f32.gmra.mxu0 %v3357
        %v3583 = vpop.f32.mrf.mxu0
        %v3584 = vadd.f32 0.0, %v3583
        %v3585 = vpop.f32.mrf.mxu0
        %3586 = vdwg.mxu0
        %v3587 = vadd.f32 %v3197, %v3429
        %v3588 = vadd.f32 %v3198, %v3434
        %v3589 = vadd.f32 %v3199, %v3439
        %v3590 = vadd.f32 %v3200, %v3444
        %v3591 = vadd.f32 %v3201, %v3449
        %v3592 = vadd.f32 %v3202, %v3454
        %v3593 = vadd.f32 %v3203, %v3459
        %v3594 = vadd.f32 %v3204, %v3464
        %v3595 = vadd.f32 %v3205, %v3469
        %v3596 = vadd.f32 %v3206, %v3474
        %v3597 = vadd.f32 %v3207, %v3479
        %v3598 = vadd.f32 %v3208, %v3484
        %v3599 = vadd.f32 %v3209, %v3489
        %v3600 = vadd.f32 %v3210, %v3494
        %v3601 = vadd.f32 %v3211, %v3499
        %v3602 = vadd.f32 %v3212, %v3504
        %v3603 = vadd.f32 %v3213, %v3509
        %v3604 = vadd.f32 %v3214, %v3514
        %v3605 = vadd.f32 %v3215, %v3519
        %v3606 = vadd.f32 %v3216, %v3524
        %v3607 = vadd.f32 %v3217, %v3529
        %v3608 = vadd.f32 %v3218, %v3534
        %v3609 = vadd.f32 %v3219, %v3539
        %v3610 = vadd.f32 %v3220, %v3544
        %v3611 = vadd.f32 %v3221, %v3549
        %v3612 = vadd.f32 %v3222, %v3554
        %v3613 = vadd.f32 %v3223, %v3559
        %v3614 = vadd.f32 %v3224, %v3564
        %v3615 = vadd.f32 %v3225, %v3569
        %v3616 = vadd.f32 %v3226, %v3574
        %v3617 = vadd.f32 %v3227, %v3579
        %v3618 = vadd.f32 %v3228, %v3584
        %v3619 = vadd.f32 %v3587, %v3588
        %v3620 = vadd.f32 %v3619, %v3589
        %v3621 = vadd.f32 %v3620, %v3590
        %v3622 = vadd.f32 %v3621, %v3591
        %v3623 = vadd.f32 %v3622, %v3592
        %v3624 = vadd.f32 %v3623, %v3593
        %v3625 = vadd.f32 %v3624, %v3594
        %v3626 = vadd.f32 %v3625, %v3595
        %v3627 = vadd.f32 %v3626, %v3596
        %v3628 = vadd.f32 %v3627, %v3597
        %v3629 = vadd.f32 %v3628, %v3598
        %v3630 = vadd.f32 %v3629, %v3599
        %v3631 = vadd.f32 %v3630, %v3600
        %v3632 = vadd.f32 %v3631, %v3601
        %v3633 = vadd.f32 %v3632, %v3602
        %v3634 = vadd.f32 %v3633, %v3603
        %v3635 = vadd.f32 %v3634, %v3604
        %v3636 = vadd.f32 %v3635, %v3605
        %v3637 = vadd.f32 %v3636, %v3606
        %v3638 = vadd.f32 %v3637, %v3607
        %v3639 = vadd.f32 %v3638, %v3608
        %v3640 = vadd.f32 %v3639, %v3609
        %v3641 = vadd.f32 %v3640, %v3610
        %v3642 = vadd.f32 %v3641, %v3611
        %v3643 = vadd.f32 %v3642, %v3612
        %v3644 = vadd.f32 %v3643, %v3613
        %v3645 = vadd.f32 %v3644, %v3614
        %v3646 = vadd.f32 %v3645, %v3615
        %v3647 = vadd.f32 %v3646, %v3616
        %v3648 = vadd.f32 %v3647, %v3617
        %v3649 = vadd.f32 %v3648, %v3618
        %v3650 = vrot.slane %v3649, 4
        %v3651 = vadd.f32 %v3649, %v3650
        %v3652 = vrot.slane %v3651, 2
        %v3653 = vadd.f32 %v3651, %v3652
        %v3654 = vrot.slane %v3653, 1
        %v3655 = vadd.f32 %v3653, %v3654
        %v3656 = vmul.f32 %v3587, %v3587
        %v3657 = vmul.f32 %v3588, %v3588
        %v3658 = vmul.f32 %v3589, %v3589
        %v3659 = vmul.f32 %v3590, %v3590
        %v3660 = vmul.f32 %v3591, %v3591
        %v3661 = vmul.f32 %v3592, %v3592
        %v3662 = vmul.f32 %v3593, %v3593
        %v3663 = vmul.f32 %v3594, %v3594
        %v3664 = vmul.f32 %v3595, %v3595
        %v3665 = vmul.f32 %v3596, %v3596
        %v3666 = vmul.f32 %v3597, %v3597
        %v3667 = vmul.f32 %v3598, %v3598
        %v3668 = vmul.f32 %v3599, %v3599
        %v3669 = vmul.f32 %v3600, %v3600
        %v3670 = vmul.f32 %v3601, %v3601
        %v3671 = vmul.f32 %v3602, %v3602
        %v3672 = vmul.f32 %v3603, %v3603
        %v3673 = vmul.f32 %v3604, %v3604
        %v3674 = vmul.f32 %v3605, %v3605
        %v3675 = vmul.f32 %v3606, %v3606
        %v3676 = vmul.f32 %v3607, %v3607
        %v3677 = vmul.f32 %v3608, %v3608
        %v3678 = vmul.f32 %v3609, %v3609
        %v3679 = vmul.f32 %v3610, %v3610
        %v3680 = vmul.f32 %v3611, %v3611
        %v3681 = vmul.f32 %v3612, %v3612
        %v3682 = vmul.f32 %v3613, %v3613
        %v3683 = vmul.f32 %v3614, %v3614
        %v3684 = vmul.f32 %v3615, %v3615
        %v3685 = vmul.f32 %v3616, %v3616
        %v3686 = vmul.f32 %v3617, %v3617
        %v3687 = vmul.f32 %v3618, %v3618
        %v3688 = vadd.f32 %v3656, %v3657
        %v3689 = vadd.f32 %v3688, %v3658
        %v3690 = vadd.f32 %v3689, %v3659
        %v3691 = vadd.f32 %v3690, %v3660
        %v3692 = vadd.f32 %v3691, %v3661
        %v3693 = vadd.f32 %v3692, %v3662
        %v3694 = vadd.f32 %v3693, %v3663
        %v3695 = vadd.f32 %v3694, %v3664
        %v3696 = vadd.f32 %v3695, %v3665
        %v3697 = vadd.f32 %v3696, %v3666
        %v3698 = vadd.f32 %v3697, %v3667
        %v3699 = vadd.f32 %v3698, %v3668
        %v3700 = vadd.f32 %v3699, %v3669
        %v3701 = vadd.f32 %v3700, %v3670
        %v3702 = vadd.f32 %v3701, %v3671
        %v3703 = vadd.f32 %v3702, %v3672
        %v3704 = vadd.f32 %v3703, %v3673
        %v3705 = vadd.f32 %v3704, %v3674
        %v3706 = vadd.f32 %v3705, %v3675
        %v3707 = vadd.f32 %v3706, %v3676
        %v3708 = vadd.f32 %v3707, %v3677
        %v3709 = vadd.f32 %v3708, %v3678
        %v3710 = vadd.f32 %v3709, %v3679
        %v3711 = vadd.f32 %v3710, %v3680
        %v3712 = vadd.f32 %v3711, %v3681
        %v3713 = vadd.f32 %v3712, %v3682
        %v3714 = vadd.f32 %v3713, %v3683
        %v3715 = vadd.f32 %v3714, %v3684
        %v3716 = vadd.f32 %v3715, %v3685
        %v3717 = vadd.f32 %v3716, %v3686
        %v3718 = vadd.f32 %v3717, %v3687
        %v3719 = vrot.slane %v3718, 4
        %v3720 = vadd.f32 %v3718, %v3719
        %v3721 = vrot.slane %v3720, 2
        %v3722 = vadd.f32 %v3720, %v3721
        %v3723 = vrot.slane %v3722, 1
        %v3724 = vadd.f32 %v3722, %v3723
        %vm3725 = vcmask 1040384
        %v3726 = vsel %vm3725, %v3655, %v3724
        %3727 = vst [vmem:[%s160] sm:$0x3] %v3726
        %s3728 = sand.u32 %s87, 1
        %s3729 = scalar_lea.sflag [#allocation3], %s3728
        %s3730 = sand.u32 %s87, 1
        %s3731 = smul.addr %s3730, 2
        %s3732 = scalar_lea.vmem [#allocation2], %s3731
        // Predicated region
        $region29: #{tpu_custom_call.1} parent=27 // pred_check
          %p3733 = pneg %p97
        $region30: #{tpu_custom_call.1} parent=27 // pred_check_branch
          %3735 = sbr.rel (%p3733) target = $region32
        $region31: #{tpu_custom_call.1} parent=27 // pred_region
          %s3737 = ssub.s32 32, 32
          %3738 = vsyncadd %s3729, %s3737
          %s3739 = sadd.s32 %s21, %s20
          %s3740 = smul.addr %s3739, 32
          %s3741 = scalar_lea.hbm %s2, %s3740
          %s3743 = sshll.u32 %s3732, 4
          %s3744 = int_to_ptr.vmem [resolvable:$true] %s3743
          %3746 = dma.vmem_to_hbm [thread:$0]  %s3744, 32, %s3741, %s3729
        $region32: #{tpu_custom_call.1} parent=27 // pred_fallthru
          _
      $region28: #{tpu_custom_call.1} parent=5 // pred_fallthru
        _
      %p3747 = scmp.le.s32.totalorder 2, %s11
      // Predicated region
      $region33: #{tpu_custom_call.1} parent=5 // pred_check
        %p3748 = pneg %p3747
      $region34: #{tpu_custom_call.1} parent=5 // pred_check_branch
        %3750 = sbr.rel (%p3748) target = $region36
      $region35: #{tpu_custom_call.1} parent=5 // pred_region
        %s3751 = ssub.s32 %s11, 2
        // Predicated region
        $region37: #{tpu_custom_call.1} parent=35 // pred_check
          %p3752 = pneg %p103
        $region38: #{tpu_custom_call.1} parent=35 // pred_check_branch
          %3754 = sbr.rel (%p3752) target = $region40
        $region39: #{tpu_custom_call.1} parent=35 // pred_region
          %s3755 = sand.u32 %s88, 1
          %s3756 = scalar_lea.sflag [#allocation3], %s3755
          %s3757 = sand.u32 %s88, 1
          %s3758 = smul.addr %s3757, 2
          %s3759 = scalar_lea.vmem [#allocation2], %s3758
          %3760 = dma.done %s3756, 32
        $region40: #{tpu_custom_call.1} parent=35 // pred_fallthru
          _
      $region36: #{tpu_custom_call.1} parent=5 // pred_fallthru
        _
    $region6: #{tpu_custom_call.1} parent=1 // loop_footer
      %s15 = sadd.s32 1, %s11
    $region7: #{tpu_custom_call.1} parent=1 // loop_footer_branch
      %10 = sbr.rel target = $region3
    $region8: #{tpu_custom_call.1} parent=1 // loop_exit
      _
    %3761 = vsyncpa [#allocation3], 1
    %s3762 = scalar_lea.sflag [#allocation3], 1
    %3763 = vsyncpa %s3762, 1

</llo_original>
